<compile_context>
chip_gen: v5e
topology: v5e:2x2
jax: 0.10.0
libtpu: 0.0.40
codegen_flags: <defaults>
</compile_context>

<pallas_src>
import functools

import jax
import jax.numpy as jnp
from jax.experimental import pallas as pl
from jax.experimental.pallas import tpu as pltpu

LANE = 128


def _ceil_to(x, m):
    return ((x + m - 1) // m) * m


def _pick_tile(dim, pref=256):
    # 256 tiles feed the v6e/v7x 2x256^2 MXU; 128 is the v5e quantum / fallback.
    return pref if dim % pref == 0 else 128


def _pad_to(arr, shape):
    return jnp.pad(arr, [(0, s - d) for d, s in zip(arr.shape, shape)])


# ----------------------------------------------------------------------------
# Tiled fused matmul kernel: out = act((mask? * x) @ w + b)
#   x: [tm, tk] bf16   w: [tk, tn] bf16   b: [1, tn] f32   mask: [tm, 1] bf16
# ----------------------------------------------------------------------------
def _mm_kernel(*refs, activation, with_mask):
    if with_mask:
        mask_ref, x_ref, w_ref, b_ref, o_ref, acc_ref = refs
    else:
        x_ref, w_ref, b_ref, o_ref, acc_ref = refs

    k = pl.program_id(2)

    @pl.when(k == 0)
    def _():
        acc_ref[...] = jnp.zeros_like(acc_ref)

    x = x_ref[...]
    if with_mask:
        # mask is 0/1 in bf16 -> exact; applied once per x tile.
        x = x * mask_ref[...]

    acc_ref[...] += jnp.dot(x, w_ref[...], preferred_element_type=jnp.float32)

    @pl.when(k == pl.num_programs(2) - 1)
    def _():
        r = acc_ref[...] + b_ref[...]          # bias only in finalize (f32)
        if activation == "relu":
            r = jnp.maximum(r, 0.0)
        o_ref[...] = r.astype(o_ref.dtype)


def matmul_bias_act(x, w, b, *, activation=None, mask=None,
                    out_dtype=jnp.float32):
    """Tiled Pallas matmul with fused bias / activation / optional row mask.

    All dims must already be padded: M,K,N multiples of 128.
    """
    M, K = x.shape
    K2, N = w.shape
    assert K == K2 and M % LANE == 0 and K % LANE == 0 and N % LANE == 0

    tm, tn, tk = _pick_tile(M), _pick_tile(N), _pick_tile(K)
    grid = (M // tm, N // tn, K // tk)

    kernel = functools.partial(_mm_kernel, activation=activation,
                               with_mask=mask is not None)

    in_specs = []
    args = []
    if mask is not None:
        in_specs.append(pl.BlockSpec((tm, 1), lambda i, j, k: (i, 0)))
        args.append(mask)
    in_specs += [
        pl.BlockSpec((tm, tk), lambda i, j, k: (i, k)),
        pl.BlockSpec((tk, tn), lambda i, j, k: (k, j)),
        pl.BlockSpec((1, tn), lambda i, j, k: (0, j)),
    ]
    args += [x, w, b]

    flops = 2 * M * N * K
    bytes_accessed = (x.size * x.dtype.itemsize
                      + w.size * w.dtype.itemsize
                      + b.size * 4
                      + M * N * jnp.dtype(out_dtype).itemsize)

    return pl.pallas_call(
        kernel,
        out_shape=jax.ShapeDtypeStruct((M, N), out_dtype),
        grid_spec=pltpu.PrefetchScalarGridSpec(
            num_scalar_prefetch=0,
            grid=grid,
            in_specs=in_specs,
            out_specs=pl.BlockSpec((tm, tn), lambda i, j, k: (i, j)),
            scratch_shapes=[pltpu.VMEM((tm, tn), jnp.float32)],
        ),
        compiler_params=pltpu.CompilerParams(
            dimension_semantics=("parallel", "parallel", "arbitrary"),
            vmem_limit_bytes=64 * 1024 * 1024,
        ),
        cost_estimate=pl.CostEstimate(flops=flops, transcendentals=0,
                                      bytes_accessed=bytes_accessed),
    )(*args)


# ----------------------------------------------------------------------------
# Glue: dense symmetric-normalized adjacency (PyG gcn_norm semantics:
# duplicate edges sum, self loops added with weight 1).
# ----------------------------------------------------------------------------
def build_norm_adj(edge_index, num_nodes):
    src, dst = edge_index[0], edge_index[1]
    a = jnp.zeros((num_nodes, num_nodes), jnp.float32)
    a = a.at[dst, src].add(1.0)                       # messages src -> dst
    a = a + jnp.eye(num_nodes, dtype=jnp.float32)     # self loops
    deg = a.sum(axis=1)
    dinv = jnp.where(deg > 0, jax.lax.rsqrt(deg), 0.0)
    return dinv[:, None] * a * dinv[None, :]


# ----------------------------------------------------------------------------
# Forward pass: pad to lane-dense shapes, cast operands to bf16, run the six
# fused tiled matmuls, slice back to the original shapes.
# ----------------------------------------------------------------------------
def graphmae_forward(x, edge_index, mask_vector, params):
    n, in_dim = x.shape
    hid = params["w1"].shape[1]
    lat = params["w2"].shape[1]

    a = build_norm_adj(edge_index, n)

    np_ = _ceil_to(n, LANE)
    ip = _ceil_to(in_dim, LANE)
    hp = _ceil_to(hid, LANE)
    lp = _ceil_to(lat, LANE)

    f32, bf16 = jnp.float32, jnp.bfloat16
    xp = _pad_to(x, (np_, ip)).astype(bf16)
    mp = _pad_to(mask_vector, (np_, 1)).astype(bf16)
    ap = _pad_to(a, (np_, np_)).astype(bf16)
    w1 = _pad_to(params["w1"], (ip, hp)).astype(bf16)
    w2 = _pad_to(params["w2"], (hp, lp)).astype(bf16)
    w3 = _pad_to(params["w3"], (lp, hp)).astype(bf16)
    w4 = _pad_to(params["w4"], (hp, ip)).astype(bf16)
    b1 = _pad_to(params["b1"], (1, hp)).astype(f32)
    b2 = _pad_to(params["b2"], (1, lp)).astype(f32)
    b3 = _pad_to(params["b3"], (1, hp)).astype(f32)
    b4 = _pad_to(params["b4"], (1, ip)).astype(f32)
    zero_h = jnp.zeros((1, hp), f32)
    zero_l = jnp.zeros((1, lp), f32)

    # encoder: h = relu(A @ ((x * mask) @ W1) + b1)
    t1 = matmul_bias_act(xp, w1, zero_h, mask=mp, out_dtype=bf16)
    h1 = matmul_bias_act(ap, t1, b1, activation="relu", out_dtype=bf16)
    # encoder: z = A @ (h @ W2) + b2
    t2 = matmul_bias_act(h1, w2, zero_l, out_dtype=bf16)
    zp = matmul_bias_act(ap, t2, b2, out_dtype=f32)
    # decoder: x_rec = (relu(z @ W3 + b3)) @ W4 + b4
    d = matmul_bias_act(zp.astype(bf16), w3, b3, activation="relu",
                        out_dtype=bf16)
    xr = matmul_bias_act(d, w4, b4, out_dtype=f32)

    return xr[:n, :in_dim], zp[:n, :lat]


# ----------------------------------------------------------------------------
# References for correctness checks.
# ----------------------------------------------------------------------------
def graphmae_ref_f32(x, edge_index, mask_vector, params):
    a = build_norm_adj(edge_index, x.shape[0])
    x_in = x * mask_vector
    h = jnp.maximum(a @ (x_in @ params["w1"]) + params["b1"], 0.0)
    z = a @ (h @ params["w2"]) + params["b2"]
    d = jnp.maximum(z @ params["w3"] + params["b3"], 0.0)
    x_rec = d @ params["w4"] + params["b4"]
    return x_rec, z


def graphmae_ref_bf16(x, edge_index, mask_vector, params):
    """Mirrors the kernel's bf16-operand / f32-accumulate numerics exactly."""
    bf16, f32 = jnp.bfloat16, jnp.float32
    a = build_norm_adj(edge_index, x.shape[0]).astype(bf16)

    def mm(l, r):
        return jnp.dot(l.astype(bf16), r.astype(bf16),
                       preferred_element_type=f32)

    x_in = x * mask_vector
    t1 = mm(x_in, params["w1"]).astype(bf16)
    h1 = jnp.maximum(mm(a, t1) + params["b1"], 0.0).astype(bf16)
    t2 = mm(h1, params["w2"]).astype(bf16)
    z = mm(a, t2) + params["b2"]
    d = jnp.maximum(mm(z, params["w3"]) + params["b3"], 0.0).astype(bf16)
    xr = mm(d, params["w4"]) + params["b4"]
    return xr, z


if __name__ == "__main__":
    # Small-but-nontrivial shapes: node/feature dims are intentionally NOT
    # multiples of 128 so the padding / multi-tile grid path is exercised
    # (N=300 pads to 384 -> 3x128 row tiles and a 3-step K reduction for A).
    N, IN_DIM, HIDDEN_DIM, LATENT_DIM = 300, 64, 48, 32
    MASK_RATIO = 0.3

    key = jax.random.PRNGKey(0)
    kx, km, k1, k2, k3, k4 = jax.random.split(key, 6)

    x = jax.random.normal(kx, (N, IN_DIM), jnp.float32)

    # deterministic undirected edge list (ring + a few chords)
    src = jnp.arange(N, dtype=jnp.int32)
    dst = (src + 1) % N
    chord_s = jnp.array([0, 3, 5, 7], jnp.int32)
    chord_d = jnp.array([150, 151, 213, 299], jnp.int32)
    s = jnp.concatenate([src, dst, chord_s, chord_d])
    d = jnp.concatenate([dst, src, chord_d, chord_s])
    edge_index = jnp.stack([s, d], axis=0)                   # [2, E]

    # mask_vector: 1.0 = keep node, 0.0 = masked node
    mask = jax.random.uniform(km, (N,)) < MASK_RATIO
    mask_vector = (~mask).astype(jnp.float32)[:, None]       # [N, 1]

    def init_w(k, shape, fan_in):
        return jax.random.normal(k, shape, jnp.float32) / jnp.sqrt(fan_in)

    params = {
        "w1": init_w(k1, (IN_DIM, HIDDEN_DIM), IN_DIM),
        "b1": jnp.zeros((1, HIDDEN_DIM), jnp.float32),
        "w2": init_w(k2, (HIDDEN_DIM, LATENT_DIM), HIDDEN_DIM),
        "b2": jnp.zeros((1, LATENT_DIM), jnp.float32),
        "w3": init_w(k3, (LATENT_DIM, HIDDEN_DIM), LATENT_DIM),
        "b3": jnp.full((1, HIDDEN_DIM), 0.01, jnp.float32),
        "w4": init_w(k4, (HIDDEN_DIM, IN_DIM), HIDDEN_DIM),
        "b4": jnp.full((1, IN_DIM), 0.01, jnp.float32),
    }

    fwd = jax.jit(graphmae_forward)
    x_recon, z = jax.block_until_ready(fwd(x, edge_index, mask_vector, params))

    assert x_recon.shape == (N, IN_DIM) and z.shape == (N, LATENT_DIM)

    # exact-numerics check vs. a bf16-operand / f32-accumulate JAX reference
    xr_bf, z_bf = graphmae_ref_bf16(x, edge_index, mask_vector, params)
    assert jnp.allclose(x_recon, xr_bf, atol=1e-3, rtol=1e-3)
    assert jnp.allclose(z, z_bf, atol=1e-3, rtol=1e-3)

    # sanity check vs. the full-f32 module semantics (bf16 quantization slack)
    xr_f32, z_f32 = graphmae_ref_f32(x, edge_index, mask_vector, params)
    assert jnp.allclose(x_recon, xr_f32, atol=5e-2, rtol=5e-2)
    assert jnp.allclose(z, z_f32, atol=5e-2, rtol=5e-2)

    print("KERNEL_OK")
</pallas_src>

<mosaic_0001>
module attributes {stable_mosaic.version = 11 : i64} {
  func.func @_mm_kernel(%arg0: i32, %arg1: i32, %arg2: i32, %arg3: memref<128x1xbf16, #tpu.memory_space<vmem>>, %arg4: memref<128x128xbf16, #tpu.memory_space<vmem>>, %arg5: memref<128x128xbf16, #tpu.memory_space<vmem>>, %arg6: memref<1x128xf32, #tpu.memory_space<vmem>>, %arg7: memref<128x128xbf16, #tpu.memory_space<vmem>>, %arg8: memref<128x128xf32, #tpu.memory_space<vmem>>) attributes {dimension_semantics = [#tpu.dimension_semantics<parallel>, #tpu.dimension_semantics<parallel>, #tpu.dimension_semantics<arbitrary>], iteration_bounds = array<i64: 3, 1, 1>, scalar_prefetch = 0 : i64, scratch_operands = 1 : i64, tpu.core_type = #tpu.core_type<tc>, window_params = [{transform_indices = @transform_0, window_bounds = array<i64: 128, 1>}, {transform_indices = @transform_1, window_bounds = array<i64: 128, 128>}, {transform_indices = @transform_2, window_bounds = array<i64: 128, 128>}, {transform_indices = @transform_3, window_bounds = array<i64: 1, 128>}, {transform_indices = @transform_4, window_bounds = array<i64: 128, 128>}]} {
    %c0_i32 = arith.constant 0 : i32
    %0 = arith.cmpi eq, %arg2, %c0_i32 : i32
    %1 = arith.extui %0 : i1 to i32
    %c0_i32_0 = arith.constant 0 : i32
    %2 = arith.cmpi ne, %1, %c0_i32_0 : i32
    scf.if %2 {
      %cst_12 = arith.constant 0.000000e+00 : f32
      %15 = vector.broadcast %cst_12 : f32 to vector<128x128xf32>
      %c0_13 = arith.constant 0 : index
      %c0_14 = arith.constant 0 : index
      %16 = vector.load %arg8[%c0_13, %c0_14] : memref<128x128xf32, #tpu.memory_space<vmem>>, vector<128x128xf32>
      tpu.vector_store %arg8[%c0_13, %c0_14], %15 {strides = array<i32>} : memref<128x128xf32, #tpu.memory_space<vmem>>, vector<128x128xf32>,
    } else {
    }
    %c0 = arith.constant 0 : index
    %c0_1 = arith.constant 0 : index
    %3 = vector.load %arg4[%c0, %c0_1] : memref<128x128xbf16, #tpu.memory_space<vmem>>, vector<128x128xbf16>
    %c0_2 = arith.constant 0 : index
    %c0_3 = arith.constant 0 : index
    %4 = vector.load %arg3[%c0_2, %c0_3] : memref<128x1xbf16, #tpu.memory_space<vmem>>, vector<128x1xbf16>
    %5 = vector.broadcast %4 : vector<128x1xbf16> to vector<128x128xbf16>
    %6 = arith.mulf %3, %5 : vector<128x128xbf16>
    %c0_4 = arith.constant 0 : index
    %c0_5 = arith.constant 0 : index
    %7 = vector.load %arg8[%c0_4, %c0_5] : memref<128x128xf32, #tpu.memory_space<vmem>>, vector<128x128xf32>
    %c0_6 = arith.constant 0 : index
    %c0_7 = arith.constant 0 : index
    %8 = vector.load %arg5[%c0_6, %c0_7] : memref<128x128xbf16, #tpu.memory_space<vmem>>, vector<128x128xbf16>
    %cst = arith.constant dense<0.000000e+00> : vector<128x128xf32>
    %9 = tpu.matmul %6, %8, %cst {dimension_numbers = #tpu.dot_dimension_numbers<[1], [0], [0], [1], [0, 0, 1, 1], [], []>} : vector<128x128xbf16>, vector<128x128xbf16>, vector<128x128xf32> -> vector<128x128xf32>
    %10 = arith.addf %7, %9 : vector<128x128xf32>
    %c0_8 = arith.constant 0 : index
    %c0_9 = arith.constant 0 : index
    %11 = vector.load %arg8[%c0_8, %c0_9] : memref<128x128xf32, #tpu.memory_space<vmem>>, vector<128x128xf32>
    tpu.vector_store %arg8[%c0_8, %c0_9], %10 {strides = array<i32>} : memref<128x128xf32, #tpu.memory_space<vmem>>, vector<128x128xf32>,
    %c0_i32_10 = arith.constant 0 : i32
    %12 = arith.cmpi eq, %arg2, %c0_i32_10 : i32
    %13 = arith.extui %12 : i1 to i32
    %c0_i32_11 = arith.constant 0 : i32
    %14 = arith.cmpi ne, %13, %c0_i32_11 : i32
    scf.if %14 {
      %c0_12 = arith.constant 0 : index
      %c0_13 = arith.constant 0 : index
      %15 = vector.load %arg8[%c0_12, %c0_13] : memref<128x128xf32, #tpu.memory_space<vmem>>, vector<128x128xf32>
      %c0_14 = arith.constant 0 : index
      %c0_15 = arith.constant 0 : index
      %16 = vector.load %arg6[%c0_14, %c0_15] : memref<1x128xf32, #tpu.memory_space<vmem>>, vector<1x128xf32>
      %17 = vector.broadcast %16 : vector<1x128xf32> to vector<128x128xf32>
      %18 = arith.addf %15, %17 : vector<128x128xf32>
      %19 = arith.truncf %18 : vector<128x128xf32> to vector<128x128xbf16>
      %c0_16 = arith.constant 0 : index
      %c0_17 = arith.constant 0 : index
      %20 = vector.load %arg7[%c0_16, %c0_17] : memref<128x128xbf16, #tpu.memory_space<vmem>>, vector<128x128xbf16>
      tpu.vector_store %arg7[%c0_16, %c0_17], %19 {strides = array<i32>} : memref<128x128xbf16, #tpu.memory_space<vmem>>, vector<128x128xbf16>,
    } else {
    }
    return
  }
  func.func @transform_0(%arg0: i32, %arg1: i32, %arg2: i32) -> (i32, i32) {
    %c0_i32 = arith.constant 0 : i32
    %c0_i32_0 = arith.constant 0 : i32
    return %arg0, %c0_i32 : i32, i32
  }
  func.func @transform_1(%arg0: i32, %arg1: i32, %arg2: i32) -> (i32, i32) {
    %c0_i32 = arith.constant 0 : i32
    return %arg0, %arg2 : i32, i32
  }
  func.func @transform_2(%arg0: i32, %arg1: i32, %arg2: i32) -> (i32, i32) {
    %c0_i32 = arith.constant 0 : i32
    return %arg2, %arg1 : i32, i32
  }
  func.func @transform_3(%arg0: i32, %arg1: i32, %arg2: i32) -> (i32, i32) {
    %c0_i32 = arith.constant 0 : i32
    %c0_i32_0 = arith.constant 0 : i32
    return %c0_i32, %arg1 : i32, i32
  }
  func.func @transform_4(%arg0: i32, %arg1: i32, %arg2: i32) -> (i32, i32) {
    %c0_i32 = arith.constant 0 : i32
    return %arg0, %arg1 : i32, i32
  }
}

module attributes {stable_mosaic.version = 11 : i64} {
  func.func @_mm_kernel(%arg0: i32, %arg1: i32, %arg2: i32, %arg3: memref<128x128xbf16, #tpu.memory_space<vmem>>, %arg4: memref<128x128xbf16, #tpu.memory_space<vmem>>, %arg5: memref<1x128xf32, #tpu.memory_space<vmem>>, %arg6: memref<128x128xbf16, #tpu.memory_space<vmem>>, %arg7: memref<128x128xf32, #tpu.memory_space<vmem>>) attributes {dimension_semantics = [#tpu.dimension_semantics<parallel>, #tpu.dimension_semantics<parallel>, #tpu.dimension_semantics<arbitrary>], iteration_bounds = array<i64: 3, 1, 3>, scalar_prefetch = 0 : i64, scratch_operands = 1 : i64, tpu.core_type = #tpu.core_type<tc>, window_params = [{transform_indices = @transform_0, window_bounds = array<i64: 128, 128>}, {transform_indices = @transform_1, window_bounds = array<i64: 128, 128>}, {transform_indices = @transform_2, window_bounds = array<i64: 1, 128>}, {transform_indices = @transform_3, window_bounds = array<i64: 128, 128>}]} {
    %c0_i32 = arith.constant 0 : i32
    %0 = arith.cmpi eq, %arg2, %c0_i32 : i32
    %1 = arith.extui %0 : i1 to i32
    %c0_i32_0 = arith.constant 0 : i32
    %2 = arith.cmpi ne, %1, %c0_i32_0 : i32
    scf.if %2 {
      %cst_9 = arith.constant 0.000000e+00 : f32
      %12 = vector.broadcast %cst_9 : f32 to vector<128x128xf32>
      %c0_10 = arith.constant 0 : index
      %c0_11 = arith.constant 0 : index
      %13 = vector.load %arg7[%c0_10, %c0_11] : memref<128x128xf32, #tpu.memory_space<vmem>>, vector<128x128xf32>
      tpu.vector_store %arg7[%c0_10, %c0_11], %12 {strides = array<i32>} : memref<128x128xf32, #tpu.memory_space<vmem>>, vector<128x128xf32>,
    } else {
    }
    %c0 = arith.constant 0 : index
    %c0_1 = arith.constant 0 : index
    %3 = vector.load %arg3[%c0, %c0_1] : memref<128x128xbf16, #tpu.memory_space<vmem>>, vector<128x128xbf16>
    %c0_2 = arith.constant 0 : index
    %c0_3 = arith.constant 0 : index
    %4 = vector.load %arg7[%c0_2, %c0_3] : memref<128x128xf32, #tpu.memory_space<vmem>>, vector<128x128xf32>
    %c0_4 = arith.constant 0 : index
    %c0_5 = arith.constant 0 : index
    %5 = vector.load %arg4[%c0_4, %c0_5] : memref<128x128xbf16, #tpu.memory_space<vmem>>, vector<128x128xbf16>
    %cst = arith.constant dense<0.000000e+00> : vector<128x128xf32>
    %6 = tpu.matmul %3, %5, %cst {dimension_numbers = #tpu.dot_dimension_numbers<[1], [0], [0], [1], [0, 0, 1, 1], [], []>} : vector<128x128xbf16>, vector<128x128xbf16>, vector<128x128xf32> -> vector<128x128xf32>
    %7 = arith.addf %4, %6 : vector<128x128xf32>
    %c0_6 = arith.constant 0 : index
    %c0_7 = arith.constant 0 : index
    %8 = vector.load %arg7[%c0_6, %c0_7] : memref<128x128xf32, #tpu.memory_space<vmem>>, vector<128x128xf32>
    tpu.vector_store %arg7[%c0_6, %c0_7], %7 {strides = array<i32>} : memref<128x128xf32, #tpu.memory_space<vmem>>, vector<128x128xf32>,
    %c2_i32 = arith.constant 2 : i32
    %9 = arith.cmpi eq, %arg2, %c2_i32 : i32
    %10 = arith.extui %9 : i1 to i32
    %c0_i32_8 = arith.constant 0 : i32
    %11 = arith.cmpi ne, %10, %c0_i32_8 : i32
    scf.if %11 {
      %c0_9 = arith.constant 0 : index
      %c0_10 = arith.constant 0 : index
      %12 = vector.load %arg7[%c0_9, %c0_10] : memref<128x128xf32, #tpu.memory_space<vmem>>, vector<128x128xf32>
      %c0_11 = arith.constant 0 : index
      %c0_12 = arith.constant 0 : index
      %13 = vector.load %arg5[%c0_11, %c0_12] : memref<1x128xf32, #tpu.memory_space<vmem>>, vector<1x128xf32>
      %14 = vector.broadcast %13 : vector<1x128xf32> to vector<128x128xf32>
      %15 = arith.addf %12, %14 : vector<128x128xf32>
      %cst_13 = arith.constant 0.000000e+00 : f32
      %16 = vector.broadcast %cst_13 : f32 to vector<128x128xf32>
      %17 = arith.maximumf %15, %16 : vector<128x128xf32>
      %18 = arith.truncf %17 : vector<128x128xf32> to vector<128x128xbf16>
      %c0_14 = arith.constant 0 : index
      %c0_15 = arith.constant 0 : index
      %19 = vector.load %arg6[%c0_14, %c0_15] : memref<128x128xbf16, #tpu.memory_space<vmem>>, vector<128x128xbf16>
      tpu.vector_store %arg6[%c0_14, %c0_15], %18 {strides = array<i32>} : memref<128x128xbf16, #tpu.memory_space<vmem>>, vector<128x128xbf16>,
    } else {
    }
    return
  }
  func.func @transform_0(%arg0: i32, %arg1: i32, %arg2: i32) -> (i32, i32) {
    %c0_i32 = arith.constant 0 : i32
    return %arg0, %arg2 : i32, i32
  }
  func.func @transform_1(%arg0: i32, %arg1: i32, %arg2: i32) -> (i32, i32) {
    %c0_i32 = arith.constant 0 : i32
    return %arg2, %arg1 : i32, i32
  }
  func.func @transform_2(%arg0: i32, %arg1: i32, %arg2: i32) -> (i32, i32) {
    %c0_i32 = arith.constant 0 : i32
    %c0_i32_0 = arith.constant 0 : i32
    return %c0_i32, %arg1 : i32, i32
  }
  func.func @transform_3(%arg0: i32, %arg1: i32, %arg2: i32) -> (i32, i32) {
    %c0_i32 = arith.constant 0 : i32
    return %arg0, %arg1 : i32, i32
  }
}

module attributes {stable_mosaic.version = 11 : i64} {
  func.func @_mm_kernel(%arg0: i32, %arg1: i32, %arg2: i32, %arg3: memref<128x128xbf16, #tpu.memory_space<vmem>>, %arg4: memref<128x128xbf16, #tpu.memory_space<vmem>>, %arg5: memref<1x128xf32, #tpu.memory_space<vmem>>, %arg6: memref<128x128xbf16, #tpu.memory_space<vmem>>, %arg7: memref<128x128xf32, #tpu.memory_space<vmem>>) attributes {dimension_semantics = [#tpu.dimension_semantics<parallel>, #tpu.dimension_semantics<parallel>, #tpu.dimension_semantics<arbitrary>], iteration_bounds = array<i64: 3, 1, 1>, scalar_prefetch = 0 : i64, scratch_operands = 1 : i64, tpu.core_type = #tpu.core_type<tc>, window_params = [{transform_indices = @transform_0, window_bounds = array<i64: 128, 128>}, {transform_indices = @transform_1, window_bounds = array<i64: 128, 128>}, {transform_indices = @transform_2, window_bounds = array<i64: 1, 128>}, {transform_indices = @transform_3, window_bounds = array<i64: 128, 128>}]} {
    %c0_i32 = arith.constant 0 : i32
    %0 = arith.cmpi eq, %arg2, %c0_i32 : i32
    %1 = arith.extui %0 : i1 to i32
    %c0_i32_0 = arith.constant 0 : i32
    %2 = arith.cmpi ne, %1, %c0_i32_0 : i32
    scf.if %2 {
      %cst_10 = arith.constant 0.000000e+00 : f32
      %12 = vector.broadcast %cst_10 : f32 to vector<128x128xf32>
      %c0_11 = arith.constant 0 : index
      %c0_12 = arith.constant 0 : index
      %13 = vector.load %arg7[%c0_11, %c0_12] : memref<128x128xf32, #tpu.memory_space<vmem>>, vector<128x128xf32>
      tpu.vector_store %arg7[%c0_11, %c0_12], %12 {strides = array<i32>} : memref<128x128xf32, #tpu.memory_space<vmem>>, vector<128x128xf32>,
    } else {
    }
    %c0 = arith.constant 0 : index
    %c0_1 = arith.constant 0 : index
    %3 = vector.load %arg3[%c0, %c0_1] : memref<128x128xbf16, #tpu.memory_space<vmem>>, vector<128x128xbf16>
    %c0_2 = arith.constant 0 : index
    %c0_3 = arith.constant 0 : index
    %4 = vector.load %arg7[%c0_2, %c0_3] : memref<128x128xf32, #tpu.memory_space<vmem>>, vector<128x128xf32>
    %c0_4 = arith.constant 0 : index
    %c0_5 = arith.constant 0 : index
    %5 = vector.load %arg4[%c0_4, %c0_5] : memref<128x128xbf16, #tpu.memory_space<vmem>>, vector<128x128xbf16>
    %cst = arith.constant dense<0.000000e+00> : vector<128x128xf32>
    %6 = tpu.matmul %3, %5, %cst {dimension_numbers = #tpu.dot_dimension_numbers<[1], [0], [0], [1], [0, 0, 1, 1], [], []>} : vector<128x128xbf16>, vector<128x128xbf16>, vector<128x128xf32> -> vector<128x128xf32>
    %7 = arith.addf %4, %6 : vector<128x128xf32>
    %c0_6 = arith.constant 0 : index
    %c0_7 = arith.constant 0 : index
    %8 = vector.load %arg7[%c0_6, %c0_7] : memref<128x128xf32, #tpu.memory_space<vmem>>, vector<128x128xf32>
    tpu.vector_store %arg7[%c0_6, %c0_7], %7 {strides = array<i32>} : memref<128x128xf32, #tpu.memory_space<vmem>>, vector<128x128xf32>,
    %c0_i32_8 = arith.constant 0 : i32
    %9 = arith.cmpi eq, %arg2, %c0_i32_8 : i32
    %10 = arith.extui %9 : i1 to i32
    %c0_i32_9 = arith.constant 0 : i32
    %11 = arith.cmpi ne, %10, %c0_i32_9 : i32
    scf.if %11 {
      %c0_10 = arith.constant 0 : index
      %c0_11 = arith.constant 0 : index
      %12 = vector.load %arg7[%c0_10, %c0_11] : memref<128x128xf32, #tpu.memory_space<vmem>>, vector<128x128xf32>
      %c0_12 = arith.constant 0 : index
      %c0_13 = arith.constant 0 : index
      %13 = vector.load %arg5[%c0_12, %c0_13] : memref<1x128xf32, #tpu.memory_space<vmem>>, vector<1x128xf32>
      %14 = vector.broadcast %13 : vector<1x128xf32> to vector<128x128xf32>
      %15 = arith.addf %12, %14 : vector<128x128xf32>
      %16 = arith.truncf %15 : vector<128x128xf32> to vector<128x128xbf16>
      %c0_14 = arith.constant 0 : index
      %c0_15 = arith.constant 0 : index
      %17 = vector.load %arg6[%c0_14, %c0_15] : memref<128x128xbf16, #tpu.memory_space<vmem>>, vector<128x128xbf16>
      tpu.vector_store %arg6[%c0_14, %c0_15], %16 {strides = array<i32>} : memref<128x128xbf16, #tpu.memory_space<vmem>>, vector<128x128xbf16>,
    } else {
    }
    return
  }
  func.func @transform_0(%arg0: i32, %arg1: i32, %arg2: i32) -> (i32, i32) {
    %c0_i32 = arith.constant 0 : i32
    return %arg0, %arg2 : i32, i32
  }
  func.func @transform_1(%arg0: i32, %arg1: i32, %arg2: i32) -> (i32, i32) {
    %c0_i32 = arith.constant 0 : i32
    return %arg2, %arg1 : i32, i32
  }
  func.func @transform_2(%arg0: i32, %arg1: i32, %arg2: i32) -> (i32, i32) {
    %c0_i32 = arith.constant 0 : i32
    %c0_i32_0 = arith.constant 0 : i32
    return %c0_i32, %arg1 : i32, i32
  }
  func.func @transform_3(%arg0: i32, %arg1: i32, %arg2: i32) -> (i32, i32) {
    %c0_i32 = arith.constant 0 : i32
    return %arg0, %arg1 : i32, i32
  }
}

module attributes {stable_mosaic.version = 11 : i64} {
  func.func @_mm_kernel(%arg0: i32, %arg1: i32, %arg2: i32, %arg3: memref<128x128xbf16, #tpu.memory_space<vmem>>, %arg4: memref<128x128xbf16, #tpu.memory_space<vmem>>, %arg5: memref<1x128xf32, #tpu.memory_space<vmem>>, %arg6: memref<128x128xf32, #tpu.memory_space<vmem>>, %arg7: memref<128x128xf32, #tpu.memory_space<vmem>>) attributes {dimension_semantics = [#tpu.dimension_semantics<parallel>, #tpu.dimension_semantics<parallel>, #tpu.dimension_semantics<arbitrary>], iteration_bounds = array<i64: 3, 1, 3>, scalar_prefetch = 0 : i64, scratch_operands = 1 : i64, tpu.core_type = #tpu.core_type<tc>, window_params = [{transform_indices = @transform_0, window_bounds = array<i64: 128, 128>}, {transform_indices = @transform_1, window_bounds = array<i64: 128, 128>}, {transform_indices = @transform_2, window_bounds = array<i64: 1, 128>}, {transform_indices = @transform_3, window_bounds = array<i64: 128, 128>}]} {
    %c0_i32 = arith.constant 0 : i32
    %0 = arith.cmpi eq, %arg2, %c0_i32 : i32
    %1 = arith.extui %0 : i1 to i32
    %c0_i32_0 = arith.constant 0 : i32
    %2 = arith.cmpi ne, %1, %c0_i32_0 : i32
    scf.if %2 {
      %cst_9 = arith.constant 0.000000e+00 : f32
      %12 = vector.broadcast %cst_9 : f32 to vector<128x128xf32>
      %c0_10 = arith.constant 0 : index
      %c0_11 = arith.constant 0 : index
      %13 = vector.load %arg7[%c0_10, %c0_11] : memref<128x128xf32, #tpu.memory_space<vmem>>, vector<128x128xf32>
      tpu.vector_store %arg7[%c0_10, %c0_11], %12 {strides = array<i32>} : memref<128x128xf32, #tpu.memory_space<vmem>>, vector<128x128xf32>,
    } else {
    }
    %c0 = arith.constant 0 : index
    %c0_1 = arith.constant 0 : index
    %3 = vector.load %arg3[%c0, %c0_1] : memref<128x128xbf16, #tpu.memory_space<vmem>>, vector<128x128xbf16>
    %c0_2 = arith.constant 0 : index
    %c0_3 = arith.constant 0 : index
    %4 = vector.load %arg7[%c0_2, %c0_3] : memref<128x128xf32, #tpu.memory_space<vmem>>, vector<128x128xf32>
    %c0_4 = arith.constant 0 : index
    %c0_5 = arith.constant 0 : index
    %5 = vector.load %arg4[%c0_4, %c0_5] : memref<128x128xbf16, #tpu.memory_space<vmem>>, vector<128x128xbf16>
    %cst = arith.constant dense<0.000000e+00> : vector<128x128xf32>
    %6 = tpu.matmul %3, %5, %cst {dimension_numbers = #tpu.dot_dimension_numbers<[1], [0], [0], [1], [0, 0, 1, 1], [], []>} : vector<128x128xbf16>, vector<128x128xbf16>, vector<128x128xf32> -> vector<128x128xf32>
    %7 = arith.addf %4, %6 : vector<128x128xf32>
    %c0_6 = arith.constant 0 : index
    %c0_7 = arith.constant 0 : index
    %8 = vector.load %arg7[%c0_6, %c0_7] : memref<128x128xf32, #tpu.memory_space<vmem>>, vector<128x128xf32>
    tpu.vector_store %arg7[%c0_6, %c0_7], %7 {strides = array<i32>} : memref<128x128xf32, #tpu.memory_space<vmem>>, vector<128x128xf32>,
    %c2_i32 = arith.constant 2 : i32
    %9 = arith.cmpi eq, %arg2, %c2_i32 : i32
    %10 = arith.extui %9 : i1 to i32
    %c0_i32_8 = arith.constant 0 : i32
    %11 = arith.cmpi ne, %10, %c0_i32_8 : i32
    scf.if %11 {
      %c0_9 = arith.constant 0 : index
      %c0_10 = arith.constant 0 : index
      %12 = vector.load %arg7[%c0_9, %c0_10] : memref<128x128xf32, #tpu.memory_space<vmem>>, vector<128x128xf32>
      %c0_11 = arith.constant 0 : index
      %c0_12 = arith.constant 0 : index
      %13 = vector.load %arg5[%c0_11, %c0_12] : memref<1x128xf32, #tpu.memory_space<vmem>>, vector<1x128xf32>
      %14 = vector.broadcast %13 : vector<1x128xf32> to vector<128x128xf32>
      %15 = arith.addf %12, %14 : vector<128x128xf32>
      %c0_13 = arith.constant 0 : index
      %c0_14 = arith.constant 0 : index
      %16 = vector.load %arg6[%c0_13, %c0_14] : memref<128x128xf32, #tpu.memory_space<vmem>>, vector<128x128xf32>
      tpu.vector_store %arg6[%c0_13, %c0_14], %15 {strides = array<i32>} : memref<128x128xf32, #tpu.memory_space<vmem>>, vector<128x128xf32>,
    } else {
    }
    return
  }
  func.func @transform_0(%arg0: i32, %arg1: i32, %arg2: i32) -> (i32, i32) {
    %c0_i32 = arith.constant 0 : i32
    return %arg0, %arg2 : i32, i32
  }
  func.func @transform_1(%arg0: i32, %arg1: i32, %arg2: i32) -> (i32, i32) {
    %c0_i32 = arith.constant 0 : i32
    return %arg2, %arg1 : i32, i32
  }
  func.func @transform_2(%arg0: i32, %arg1: i32, %arg2: i32) -> (i32, i32) {
    %c0_i32 = arith.constant 0 : i32
    %c0_i32_0 = arith.constant 0 : i32
    return %c0_i32, %arg1 : i32, i32
  }
  func.func @transform_3(%arg0: i32, %arg1: i32, %arg2: i32) -> (i32, i32) {
    %c0_i32 = arith.constant 0 : i32
    return %arg0, %arg1 : i32, i32
  }
}

module attributes {stable_mosaic.version = 11 : i64} {
  func.func @_mm_kernel(%arg0: i32, %arg1: i32, %arg2: i32, %arg3: memref<128x128xbf16, #tpu.memory_space<vmem>>, %arg4: memref<128x128xbf16, #tpu.memory_space<vmem>>, %arg5: memref<1x128xf32, #tpu.memory_space<vmem>>, %arg6: memref<128x128xbf16, #tpu.memory_space<vmem>>, %arg7: memref<128x128xf32, #tpu.memory_space<vmem>>) attributes {dimension_semantics = [#tpu.dimension_semantics<parallel>, #tpu.dimension_semantics<parallel>, #tpu.dimension_semantics<arbitrary>], iteration_bounds = array<i64: 3, 1, 1>, scalar_prefetch = 0 : i64, scratch_operands = 1 : i64, tpu.core_type = #tpu.core_type<tc>, window_params = [{transform_indices = @transform_0, window_bounds = array<i64: 128, 128>}, {transform_indices = @transform_1, window_bounds = array<i64: 128, 128>}, {transform_indices = @transform_2, window_bounds = array<i64: 1, 128>}, {transform_indices = @transform_3, window_bounds = array<i64: 128, 128>}]} {
    %c0_i32 = arith.constant 0 : i32
    %0 = arith.cmpi eq, %arg2, %c0_i32 : i32
    %1 = arith.extui %0 : i1 to i32
    %c0_i32_0 = arith.constant 0 : i32
    %2 = arith.cmpi ne, %1, %c0_i32_0 : i32
    scf.if %2 {
      %cst_10 = arith.constant 0.000000e+00 : f32
      %12 = vector.broadcast %cst_10 : f32 to vector<128x128xf32>
      %c0_11 = arith.constant 0 : index
      %c0_12 = arith.constant 0 : index
      %13 = vector.load %arg7[%c0_11, %c0_12] : memref<128x128xf32, #tpu.memory_space<vmem>>, vector<128x128xf32>
      tpu.vector_store %arg7[%c0_11, %c0_12], %12 {strides = array<i32>} : memref<128x128xf32, #tpu.memory_space<vmem>>, vector<128x128xf32>,
    } else {
    }
    %c0 = arith.constant 0 : index
    %c0_1 = arith.constant 0 : index
    %3 = vector.load %arg3[%c0, %c0_1] : memref<128x128xbf16, #tpu.memory_space<vmem>>, vector<128x128xbf16>
    %c0_2 = arith.constant 0 : index
    %c0_3 = arith.constant 0 : index
    %4 = vector.load %arg7[%c0_2, %c0_3] : memref<128x128xf32, #tpu.memory_space<vmem>>, vector<128x128xf32>
    %c0_4 = arith.constant 0 : index
    %c0_5 = arith.constant 0 : index
    %5 = vector.load %arg4[%c0_4, %c0_5] : memref<128x128xbf16, #tpu.memory_space<vmem>>, vector<128x128xbf16>
    %cst = arith.constant dense<0.000000e+00> : vector<128x128xf32>
    %6 = tpu.matmul %3, %5, %cst {dimension_numbers = #tpu.dot_dimension_numbers<[1], [0], [0], [1], [0, 0, 1, 1], [], []>} : vector<128x128xbf16>, vector<128x128xbf16>, vector<128x128xf32> -> vector<128x128xf32>
    %7 = arith.addf %4, %6 : vector<128x128xf32>
    %c0_6 = arith.constant 0 : index
    %c0_7 = arith.constant 0 : index
    %8 = vector.load %arg7[%c0_6, %c0_7] : memref<128x128xf32, #tpu.memory_space<vmem>>, vector<128x128xf32>
    tpu.vector_store %arg7[%c0_6, %c0_7], %7 {strides = array<i32>} : memref<128x128xf32, #tpu.memory_space<vmem>>, vector<128x128xf32>,
    %c0_i32_8 = arith.constant 0 : i32
    %9 = arith.cmpi eq, %arg2, %c0_i32_8 : i32
    %10 = arith.extui %9 : i1 to i32
    %c0_i32_9 = arith.constant 0 : i32
    %11 = arith.cmpi ne, %10, %c0_i32_9 : i32
    scf.if %11 {
      %c0_10 = arith.constant 0 : index
      %c0_11 = arith.constant 0 : index
      %12 = vector.load %arg7[%c0_10, %c0_11] : memref<128x128xf32, #tpu.memory_space<vmem>>, vector<128x128xf32>
      %c0_12 = arith.constant 0 : index
      %c0_13 = arith.constant 0 : index
      %13 = vector.load %arg5[%c0_12, %c0_13] : memref<1x128xf32, #tpu.memory_space<vmem>>, vector<1x128xf32>
      %14 = vector.broadcast %13 : vector<1x128xf32> to vector<128x128xf32>
      %15 = arith.addf %12, %14 : vector<128x128xf32>
      %cst_14 = arith.constant 0.000000e+00 : f32
      %16 = vector.broadcast %cst_14 : f32 to vector<128x128xf32>
      %17 = arith.maximumf %15, %16 : vector<128x128xf32>
      %18 = arith.truncf %17 : vector<128x128xf32> to vector<128x128xbf16>
      %c0_15 = arith.constant 0 : index
      %c0_16 = arith.constant 0 : index
      %19 = vector.load %arg6[%c0_15, %c0_16] : memref<128x128xbf16, #tpu.memory_space<vmem>>, vector<128x128xbf16>
      tpu.vector_store %arg6[%c0_15, %c0_16], %18 {strides = array<i32>} : memref<128x128xbf16, #tpu.memory_space<vmem>>, vector<128x128xbf16>,
    } else {
    }
    return
  }
  func.func @transform_0(%arg0: i32, %arg1: i32, %arg2: i32) -> (i32, i32) {
    %c0_i32 = arith.constant 0 : i32
    return %arg0, %arg2 : i32, i32
  }
  func.func @transform_1(%arg0: i32, %arg1: i32, %arg2: i32) -> (i32, i32) {
    %c0_i32 = arith.constant 0 : i32
    return %arg2, %arg1 : i32, i32
  }
  func.func @transform_2(%arg0: i32, %arg1: i32, %arg2: i32) -> (i32, i32) {
    %c0_i32 = arith.constant 0 : i32
    %c0_i32_0 = arith.constant 0 : i32
    return %c0_i32, %arg1 : i32, i32
  }
  func.func @transform_3(%arg0: i32, %arg1: i32, %arg2: i32) -> (i32, i32) {
    %c0_i32 = arith.constant 0 : i32
    return %arg0, %arg1 : i32, i32
  }
}

module attributes {stable_mosaic.version = 11 : i64} {
  func.func @_mm_kernel(%arg0: i32, %arg1: i32, %arg2: i32, %arg3: memref<128x128xbf16, #tpu.memory_space<vmem>>, %arg4: memref<128x128xbf16, #tpu.memory_space<vmem>>, %arg5: memref<1x128xf32, #tpu.memory_space<vmem>>, %arg6: memref<128x128xf32, #tpu.memory_space<vmem>>, %arg7: memref<128x128xf32, #tpu.memory_space<vmem>>) attributes {dimension_semantics = [#tpu.dimension_semantics<parallel>, #tpu.dimension_semantics<parallel>, #tpu.dimension_semantics<arbitrary>], iteration_bounds = array<i64: 3, 1, 1>, scalar_prefetch = 0 : i64, scratch_operands = 1 : i64, tpu.core_type = #tpu.core_type<tc>, window_params = [{transform_indices = @transform_0, window_bounds = array<i64: 128, 128>}, {transform_indices = @transform_1, window_bounds = array<i64: 128, 128>}, {transform_indices = @transform_2, window_bounds = array<i64: 1, 128>}, {transform_indices = @transform_3, window_bounds = array<i64: 128, 128>}]} {
    %c0_i32 = arith.constant 0 : i32
    %0 = arith.cmpi eq, %arg2, %c0_i32 : i32
    %1 = arith.extui %0 : i1 to i32
    %c0_i32_0 = arith.constant 0 : i32
    %2 = arith.cmpi ne, %1, %c0_i32_0 : i32
    scf.if %2 {
      %cst_10 = arith.constant 0.000000e+00 : f32
      %12 = vector.broadcast %cst_10 : f32 to vector<128x128xf32>
      %c0_11 = arith.constant 0 : index
      %c0_12 = arith.constant 0 : index
      %13 = vector.load %arg7[%c0_11, %c0_12] : memref<128x128xf32, #tpu.memory_space<vmem>>, vector<128x128xf32>
      tpu.vector_store %arg7[%c0_11, %c0_12], %12 {strides = array<i32>} : memref<128x128xf32, #tpu.memory_space<vmem>>, vector<128x128xf32>,
    } else {
    }
    %c0 = arith.constant 0 : index
    %c0_1 = arith.constant 0 : index
    %3 = vector.load %arg3[%c0, %c0_1] : memref<128x128xbf16, #tpu.memory_space<vmem>>, vector<128x128xbf16>
    %c0_2 = arith.constant 0 : index
    %c0_3 = arith.constant 0 : index
    %4 = vector.load %arg7[%c0_2, %c0_3] : memref<128x128xf32, #tpu.memory_space<vmem>>, vector<128x128xf32>
    %c0_4 = arith.constant 0 : index
    %c0_5 = arith.constant 0 : index
    %5 = vector.load %arg4[%c0_4, %c0_5] : memref<128x128xbf16, #tpu.memory_space<vmem>>, vector<128x128xbf16>
    %cst = arith.constant dense<0.000000e+00> : vector<128x128xf32>
    %6 = tpu.matmul %3, %5, %cst {dimension_numbers = #tpu.dot_dimension_numbers<[1], [0], [0], [1], [0, 0, 1, 1], [], []>} : vector<128x128xbf16>, vector<128x128xbf16>, vector<128x128xf32> -> vector<128x128xf32>
    %7 = arith.addf %4, %6 : vector<128x128xf32>
    %c0_6 = arith.constant 0 : index
    %c0_7 = arith.constant 0 : index
    %8 = vector.load %arg7[%c0_6, %c0_7] : memref<128x128xf32, #tpu.memory_space<vmem>>, vector<128x128xf32>
    tpu.vector_store %arg7[%c0_6, %c0_7], %7 {strides = array<i32>} : memref<128x128xf32, #tpu.memory_space<vmem>>, vector<128x128xf32>,
    %c0_i32_8 = arith.constant 0 : i32
    %9 = arith.cmpi eq, %arg2, %c0_i32_8 : i32
    %10 = arith.extui %9 : i1 to i32
    %c0_i32_9 = arith.constant 0 : i32
    %11 = arith.cmpi ne, %10, %c0_i32_9 : i32
    scf.if %11 {
      %c0_10 = arith.constant 0 : index
      %c0_11 = arith.constant 0 : index
      %12 = vector.load %arg7[%c0_10, %c0_11] : memref<128x128xf32, #tpu.memory_space<vmem>>, vector<128x128xf32>
      %c0_12 = arith.constant 0 : index
      %c0_13 = arith.constant 0 : index
      %13 = vector.load %arg5[%c0_12, %c0_13] : memref<1x128xf32, #tpu.memory_space<vmem>>, vector<1x128xf32>
      %14 = vector.broadcast %13 : vector<1x128xf32> to vector<128x128xf32>
      %15 = arith.addf %12, %14 : vector<128x128xf32>
      %c0_14 = arith.constant 0 : index
      %c0_15 = arith.constant 0 : index
      %16 = vector.load %arg6[%c0_14, %c0_15] : memref<128x128xf32, #tpu.memory_space<vmem>>, vector<128x128xf32>
      tpu.vector_store %arg6[%c0_14, %c0_15], %15 {strides = array<i32>} : memref<128x128xf32, #tpu.memory_space<vmem>>, vector<128x128xf32>,
    } else {
    }
    return
  }
  func.func @transform_0(%arg0: i32, %arg1: i32, %arg2: i32) -> (i32, i32) {
    %c0_i32 = arith.constant 0 : i32
    return %arg0, %arg2 : i32, i32
  }
  func.func @transform_1(%arg0: i32, %arg1: i32, %arg2: i32) -> (i32, i32) {
    %c0_i32 = arith.constant 0 : i32
    return %arg2, %arg1 : i32, i32
  }
  func.func @transform_2(%arg0: i32, %arg1: i32, %arg2: i32) -> (i32, i32) {
    %c0_i32 = arith.constant 0 : i32
    %c0_i32_0 = arith.constant 0 : i32
    return %c0_i32, %arg1 : i32, i32
  }
  func.func @transform_3(%arg0: i32, %arg1: i32, %arg2: i32) -> (i32, i32) {
    %c0_i32 = arith.constant 0 : i32
    return %arg0, %arg1 : i32, i32
  }
}

</mosaic_0001>

<llo_original>
// kernel: graphmae_forward.6
$region0: #{graphmae_forward.6}
  #allocation0 [shape = 'u32[]', space=smem, size = 0x4, offset = 0x4, fixed_abs, tag = 'smem constant byte address 0x4 - core index']
  #allocation1 [shape = 'u32[72,128]{1,0:T(1,128)}', space=vmem, size = 0x9000, scoped, tag = 'internal scratch']
  #allocation2 [shape = 'f32[128,128]{1,0:T(8,128)}', space=vmem, size = 0x10000, scoped, tag = 'scratch operand']
  %s0 = inlined_call_operand.vmem [shape: bf16[384,1], index: 0, kind: input, shape index: {}]
  %s1 = inlined_call_operand.vmem [shape: bf16[384,128], index: 1, kind: input, shape index: {}]
  %s2 = inlined_call_operand.vmem [shape: bf16[128,128], index: 2, kind: input, shape index: {}]
  %s3 = inlined_call_operand.vmem [shape: f32[1,128], index: 3, kind: input, shape index: {}]
  %s4 = inlined_call_operand.vmem [shape: bf16[384,128], index: 4, kind: output, shape index: {}]
  %s5 = sld [smem:[#allocation0]]
  $region57: #{graphmae_forward.6} parent=0
    _
  %s7 = ssub.s32 1, %s5
  %s8 = scalar_select 0, %s7, %s5
  loop: start=0, step=1, limit=5
  $region2: #{graphmae_forward.6} parent=0 // loop_pre_header
    _
  $region3: #{graphmae_forward.6} parent=0 // loop_header
    %s10 = sphi 0, %s14
    %p11 = scmp.ge.s32.totalorder %s10, 5
    %s17 = sphi 0, %s36
    %s18 = sphi 0, %s32
    %s19 = sphi 0, %s28
    %s20 = sphi 0, %s17
    %s21 = sphi 0, %s18
    %s22 = sphi 0, %s19
    %s23 = sphi 0, %s20
    %s24 = sphi 0, %s21
    %s25 = sphi 0, %s22
    %s39 = sphi 0, %s41
    %s42 = sphi 0, %s39
    %s43 = sphi 0, %s42
    %s59 = sphi 0, %s43
    %s67 = sphi 0, %s69
    %s70 = sphi 0, %s67
    %s71 = sphi 0, %s70
    %s87 = sphi 0, %s71
    %s95 = sphi 0, %s97
    %s98 = sphi 0, %s95
    %s99 = sphi 0, %s98
    %s115 = sphi 0, %s99
    %s121 = sphi 0, %s123
    %s124 = sphi 0, %s121
    %s125 = sphi 0, %s124
    %s141 = sphi 0, %s125
    %s149 = sphi 0, %s151
    %s152 = sphi 0, %s149
    %s153 = sphi 0, %s152
    %s169 = sphi 0, %s153
  $region4: #{graphmae_forward.6} parent=0 // loop_header_branch
    %13 = sbr.rel (%p11) target = $region8
  $region5: #{graphmae_forward.6} parent=0 // loop_body
    %s15 = ssub.s32 %s10, 1
    %s16 = ssub.s32 %s10, 2
    %s26 = sadd.s32 1, %s19
    %p27 = scmp.ge.s32.totalorder %s26, 1
    %s28 = scalar_select %p27, 0, %s26
    %s29 = sadd.s32 1, %s18
    %s30 = scalar_select %p27, %s29, %s18
    %p31 = scmp.ge.s32.totalorder %s30, 1
    %s32 = scalar_select %p31, 0, %s30
    %s33 = sadd.s32 1, %s17
    %s34 = scalar_select %p31, %s33, %s17
    %p35 = scmp.ge.s32.totalorder %s34, 3
    %s36 = scalar_select %p35, 0, %s34
    %s37 = ssub.s32 %s17, %s36
    %p38 = scmp.eq.s32.totalorder %s37, 0
    %s40 = sadd.s32 %s39, 1
    %s41 = scalar_select %p38, %s39, %s40
    %p44 = pneg %p38
    %p45 = scmp.eq.s32.totalorder %s10, 2
    %p46 = por %p44, %p45
    %p47 = scmp.ne.s32.totalorder %s39, %s42
    %p48 = scmp.eq.s32.totalorder %s10, 0
    %p49 = por %p47, %p48
    %p50 = scmp.ne.s32.totalorder %s39, %s42
    %p51 = scmp.eq.s32.totalorder %s15, 2
    %p52 = por %p50, %p51
    %p53 = scmp.ne.s32.totalorder %s42, %s43
    %p54 = scmp.eq.s32.totalorder %s15, 0
    %p55 = por %p53, %p54
    %p56 = scmp.ne.s32.totalorder %s42, %s43
    %p57 = scmp.eq.s32.totalorder %s16, 2
    %p58 = por %p56, %p57
    %p60 = scmp.ne.s32.totalorder %s43, %s59
    %p61 = scmp.eq.s32.totalorder %s16, 0
    %p62 = por %p60, %p61
    %s63 = ssub.s32 %s17, %s36
    %s64 = ssub.s32 %s19, %s28
    %s65 = sor.u32 %s63, %s64
    %p66 = scmp.eq.s32.totalorder %s65, 0
    %s68 = sadd.s32 %s67, 1
    %s69 = scalar_select %p66, %s67, %s68
    %p72 = pneg %p66
    %p73 = scmp.eq.s32.totalorder %s10, 2
    %p74 = por %p72, %p73
    %p75 = scmp.ne.s32.totalorder %s67, %s70
    %p76 = scmp.eq.s32.totalorder %s10, 0
    %p77 = por %p75, %p76
    %p78 = scmp.ne.s32.totalorder %s67, %s70
    %p79 = scmp.eq.s32.totalorder %s15, 2
    %p80 = por %p78, %p79
    %p81 = scmp.ne.s32.totalorder %s70, %s71
    %p82 = scmp.eq.s32.totalorder %s15, 0
    %p83 = por %p81, %p82
    %p84 = scmp.ne.s32.totalorder %s70, %s71
    %p85 = scmp.eq.s32.totalorder %s16, 2
    %p86 = por %p84, %p85
    %p88 = scmp.ne.s32.totalorder %s71, %s87
    %p89 = scmp.eq.s32.totalorder %s16, 0
    %p90 = por %p88, %p89
    %s91 = ssub.s32 %s19, %s28
    %s92 = ssub.s32 %s18, %s32
    %s93 = sor.u32 %s91, %s92
    %p94 = scmp.eq.s32.totalorder %s93, 0
    %s96 = sadd.s32 %s95, 1
    %s97 = scalar_select %p94, %s95, %s96
    %p100 = pneg %p94
    %p101 = scmp.eq.s32.totalorder %s10, 2
    %p102 = por %p100, %p101
    %p103 = scmp.ne.s32.totalorder %s95, %s98
    %p104 = scmp.eq.s32.totalorder %s10, 0
    %p105 = por %p103, %p104
    %p106 = scmp.ne.s32.totalorder %s95, %s98
    %p107 = scmp.eq.s32.totalorder %s15, 2
    %p108 = por %p106, %p107
    %p109 = scmp.ne.s32.totalorder %s98, %s99
    %p110 = scmp.eq.s32.totalorder %s15, 0
    %p111 = por %p109, %p110
    %p112 = scmp.ne.s32.totalorder %s98, %s99
    %p113 = scmp.eq.s32.totalorder %s16, 2
    %p114 = por %p112, %p113
    %p116 = scmp.ne.s32.totalorder %s99, %s115
    %p117 = scmp.eq.s32.totalorder %s16, 0
    %p118 = por %p116, %p117
    %s119 = ssub.s32 %s18, %s32
    %p120 = scmp.eq.s32.totalorder %s119, 0
    %s122 = sadd.s32 %s121, 1
    %s123 = scalar_select %p120, %s121, %s122
    %p126 = pneg %p120
    %p127 = scmp.eq.s32.totalorder %s10, 2
    %p128 = por %p126, %p127
    %p129 = scmp.ne.s32.totalorder %s121, %s124
    %p130 = scmp.eq.s32.totalorder %s10, 0
    %p131 = por %p129, %p130
    %p132 = scmp.ne.s32.totalorder %s121, %s124
    %p133 = scmp.eq.s32.totalorder %s15, 2
    %p134 = por %p132, %p133
    %p135 = scmp.ne.s32.totalorder %s124, %s125
    %p136 = scmp.eq.s32.totalorder %s15, 0
    %p137 = por %p135, %p136
    %p138 = scmp.ne.s32.totalorder %s124, %s125
    %p139 = scmp.eq.s32.totalorder %s16, 2
    %p140 = por %p138, %p139
    %p142 = scmp.ne.s32.totalorder %s125, %s141
    %p143 = scmp.eq.s32.totalorder %s16, 0
    %p144 = por %p142, %p143
    %s145 = ssub.s32 %s17, %s36
    %s146 = ssub.s32 %s18, %s32
    %s147 = sor.u32 %s145, %s146
    %p148 = scmp.eq.s32.totalorder %s147, 0
    %s150 = sadd.s32 %s149, 1
    %s151 = scalar_select %p148, %s149, %s150
    %p154 = pneg %p148
    %p155 = scmp.eq.s32.totalorder %s10, 2
    %p156 = por %p154, %p155
    %p157 = scmp.ne.s32.totalorder %s149, %s152
    %p158 = scmp.eq.s32.totalorder %s10, 0
    %p159 = por %p157, %p158
    %p160 = scmp.ne.s32.totalorder %s149, %s152
    %p161 = scmp.eq.s32.totalorder %s15, 2
    %p162 = por %p160, %p161
    %p163 = scmp.ne.s32.totalorder %s152, %s153
    %p164 = scmp.eq.s32.totalorder %s15, 0
    %p165 = por %p163, %p164
    %p166 = scmp.ne.s32.totalorder %s152, %s153
    %p167 = scmp.eq.s32.totalorder %s16, 2
    %p168 = por %p166, %p167
    %p170 = scmp.ne.s32.totalorder %s153, %s169
    %p171 = scmp.eq.s32.totalorder %s16, 0
    %p172 = por %p170, %p171
    %p173 = scmp.le.s32.totalorder 1, %s10
    %p174 = scmp.lt.s32.totalorder %s10, 4
    %p175 = pnand %p173, %p174
    %p176 = pneg %p175
    // Predicated region
    $region9: #{graphmae_forward.6} parent=5 // pred_check
      _
    $region10: #{graphmae_forward.6} parent=5 // pred_check_branch
      %178 = sbr.rel (%p175) target = $region12
    $region11: #{graphmae_forward.6} parent=5 // pred_region
      %s179 = ssub.s32 %s10, 1
      // Predicated region
      $region13: #{graphmae_forward.6} parent=11 // pred_check
        %p180 = pneg %p111
      $region14: #{graphmae_forward.6} parent=11 // pred_check_branch
        %182 = sbr.rel (%p180) target = $region16
      $region15: #{graphmae_forward.6} parent=11 // pred_region
        %s183 = smul.u32 16, %s22
        %p184 = scmp.lt.s32.totalorder %s183, 15
        %s185 = scalar_select %p184, %s183, 15
        %p186 = scmp.lt.s32.totalorder %s21, 0
        %s187 = scalar_select %p186, %s21, 0
        %s188 = sadd.s32 %s187, %s185
        %s189 = smul.addr %s188, 4
        %s190 = scalar_lea.vmem %s2, %s189
        %s191 = smul.u32 16, %s22
      $region16: #{graphmae_forward.6} parent=11 // pred_fallthru
        _
      // Predicated region
      $region17: #{graphmae_forward.6} parent=11 // pred_check
        %p192 = pneg %p137
      $region18: #{graphmae_forward.6} parent=11 // pred_check_branch
        %194 = sbr.rel (%p192) target = $region20
      $region19: #{graphmae_forward.6} parent=11 // pred_region
        %p195 = scmp.lt.s32.totalorder %s21, 0
        %s196 = scalar_select %p195, %s21, 0
        %s197 = scalar_lea.vmem %s3, %s196
      $region20: #{graphmae_forward.6} parent=11 // pred_fallthru
        _
    $region12: #{graphmae_forward.6} parent=5 // pred_fallthru
      _
    %p198 = scmp.lt.s32.totalorder %s10, 3
    // Predicated region
    $region21: #{graphmae_forward.6} parent=5 // pred_check
      %p199 = pneg %p198
    $region22: #{graphmae_forward.6} parent=5 // pred_check_branch
      %201 = sbr.rel (%p199) target = $region24
    $region23: #{graphmae_forward.6} parent=5 // pred_region
      // Predicated region
      $region25: #{graphmae_forward.6} parent=23 // pred_check
        %p202 = pneg %p49
      $region26: #{graphmae_forward.6} parent=23 // pred_check_branch
        %204 = sbr.rel (%p202) target = $region28
      $region27: #{graphmae_forward.6} parent=23 // pred_region
        %s205 = smul.u32 16, %s17
        %p206 = scmp.lt.s32.totalorder %s205, 47
        %s207 = scalar_select %p206, %s205, 47
        %s208 = smul.addr %s207, 4
        %s209 = scalar_lea.vmem %s0, %s208
        %s210 = smul.u32 16, %s17
      $region28: #{graphmae_forward.6} parent=23 // pred_fallthru
        _
      // Predicated region
      $region29: #{graphmae_forward.6} parent=23 // pred_check
        %p211 = pneg %p77
      $region30: #{graphmae_forward.6} parent=23 // pred_check_branch
        %213 = sbr.rel (%p211) target = $region32
      $region31: #{graphmae_forward.6} parent=23 // pred_region
        %s214 = smul.u32 16, %s17
        %p215 = scmp.lt.s32.totalorder %s214, 47
        %s216 = scalar_select %p215, %s214, 47
        %p217 = scmp.lt.s32.totalorder %s19, 0
        %s218 = scalar_select %p217, %s19, 0
        %s219 = sadd.s32 %s218, %s216
        %s220 = smul.addr %s219, 4
        %s221 = scalar_lea.vmem %s1, %s220
        %s222 = smul.u32 16, %s17
      $region32: #{graphmae_forward.6} parent=23 // pred_fallthru
        _
    $region24: #{graphmae_forward.6} parent=5 // pred_fallthru
      _
    %p223 = scmp.le.s32.totalorder 1, %s10
    %p224 = scmp.lt.s32.totalorder %s10, 4
    %p225 = pnand %p223, %p224
    %p226 = pneg %p225
    // Predicated region
    $region33: #{graphmae_forward.6} parent=5 // pred_check
      _
    $region34: #{graphmae_forward.6} parent=5 // pred_check_branch
      %228 = sbr.rel (%p225) target = $region36
    $region35: #{graphmae_forward.6} parent=5 // pred_region
      %s229 = ssub.s32 %s10, 1
      %s230 = smul.u32 16, %s20
      %p231 = scmp.lt.s32.totalorder %s230, 47
      %s232 = scalar_select %p231, %s230, 47
      %s233 = smul.addr %s232, 4
      %s234 = scalar_lea.vmem %s0, %s233
      %p235 = pneg %p55
      %p236 = pneg %p52
      %s237 = smul.u32 16, %s20
      %p238 = scmp.lt.s32.totalorder %s237, 47
      %s239 = scalar_select %p238, %s237, 47
      %p240 = scmp.lt.s32.totalorder %s22, 0
      %s241 = scalar_select %p240, %s22, 0
      %s242 = sadd.s32 %s241, %s239
      %s243 = smul.addr %s242, 4
      %s244 = scalar_lea.vmem %s1, %s243
      %p245 = pneg %p83
      %p246 = pneg %p80
      %s247 = smul.u32 16, %s22
      %p248 = scmp.lt.s32.totalorder %s247, 15
      %s249 = scalar_select %p248, %s247, 15
      %p250 = scmp.lt.s32.totalorder %s21, 0
      %s251 = scalar_select %p250, %s21, 0
      %s252 = sadd.s32 %s251, %s249
      %s253 = smul.addr %s252, 4
      %s254 = scalar_lea.vmem %s2, %s253
      %p255 = pneg %p111
      %p256 = pneg %p108
      %p257 = scmp.lt.s32.totalorder %s21, 0
      %s258 = scalar_select %p257, %s21, 0
      %s259 = scalar_lea.vmem %s3, %s258
      %p260 = pneg %p137
      %p261 = pneg %p134
      %p262 = pneg %p165
      %p263 = pneg %p162
      %s264 = smul.u32 16, %s20
      %p265 = scmp.lt.s32.totalorder %s264, 47
      %s266 = scalar_select %p265, %s264, 47
      %p267 = scmp.lt.s32.totalorder %s21, 0
      %s268 = scalar_select %p267, %s21, 0
      %s269 = sadd.s32 %s268, %s266
      %s270 = smul.addr %s269, 4
      %s271 = scalar_lea.vmem %s4, %s270
      %s272 = smul.u32 16, %s20
      %p273 = scmp.lt.s32.totalorder %s272, 47
      %s274 = scalar_select %p273, %s272, 47
      %s275 = smul.addr %s274, 4
      %s276 = scalar_lea.vmem %s0, %s275
      %s277 = smul.u32 16, %s20
      %s278 = smul.u32 16, %s20
      %p279 = scmp.lt.s32.totalorder %s278, 47
      %s280 = scalar_select %p279, %s278, 47
      %p281 = scmp.lt.s32.totalorder %s22, 0
      %s282 = scalar_select %p281, %s22, 0
      %s283 = sadd.s32 %s282, %s280
      %s284 = smul.addr %s283, 4
      %s285 = scalar_lea.vmem %s1, %s284
      %s286 = smul.u32 16, %s20
      %s287 = smul.u32 16, %s22
      %p288 = scmp.lt.s32.totalorder %s287, 15
      %s289 = scalar_select %p288, %s287, 15
      %p290 = scmp.lt.s32.totalorder %s21, 0
      %s291 = scalar_select %p290, %s21, 0
      %s292 = sadd.s32 %s291, %s289
      %s293 = smul.addr %s292, 4
      %s294 = scalar_lea.vmem %s2, %s293
      %s295 = smul.u32 16, %s22
      %p296 = scmp.lt.s32.totalorder %s21, 0
      %s297 = scalar_select %p296, %s21, 0
      %s298 = scalar_lea.vmem %s3, %s297
      %s299 = smul.u32 16, %s20
      %p300 = scmp.lt.s32.totalorder %s299, 47
      %s301 = scalar_select %p300, %s299, 47
      %p302 = scmp.lt.s32.totalorder %s21, 0
      %s303 = scalar_select %p302, %s21, 0
      %s304 = sadd.s32 %s303, %s301
      %s305 = smul.addr %s304, 4
      %s306 = scalar_lea.vmem %s4, %s305
      %s307 = smul.u32 16, %s20
      %p308 = scmp.eq.s32.totalorder %s22, 0
      // Predicated region
      $region37: #{graphmae_forward.6} parent=35 // pred_check
        %p309 = pneg %p308
      $region38: #{graphmae_forward.6} parent=35 // pred_check_branch
        %311 = sbr.rel (%p309) target = $region40
      $region39: #{graphmae_forward.6} parent=35 // pred_region
        %312 = vst [vmem:[#allocation2] sm:$0xff] 0.0
        %313 = vst [vmem:[#allocation2 + $0x8] sm:$0xff] 0.0
        %314 = vst [vmem:[#allocation2 + $0x10] sm:$0xff] 0.0
        %315 = vst [vmem:[#allocation2 + $0x18] sm:$0xff] 0.0
        %316 = vst [vmem:[#allocation2 + $0x20] sm:$0xff] 0.0
        %317 = vst [vmem:[#allocation2 + $0x28] sm:$0xff] 0.0
        %318 = vst [vmem:[#allocation2 + $0x30] sm:$0xff] 0.0
        %319 = vst [vmem:[#allocation2 + $0x38] sm:$0xff] 0.0
        %320 = vst [vmem:[#allocation2 + $0x40] sm:$0xff] 0.0
        %321 = vst [vmem:[#allocation2 + $0x48] sm:$0xff] 0.0
        %322 = vst [vmem:[#allocation2 + $0x50] sm:$0xff] 0.0
        %323 = vst [vmem:[#allocation2 + $0x58] sm:$0xff] 0.0
        %324 = vst [vmem:[#allocation2 + $0x60] sm:$0xff] 0.0
        %325 = vst [vmem:[#allocation2 + $0x68] sm:$0xff] 0.0
        %326 = vst [vmem:[#allocation2 + $0x70] sm:$0xff] 0.0
        %327 = vst [vmem:[#allocation2 + $0x78] sm:$0xff] 0.0
      $region40: #{graphmae_forward.6} parent=35 // pred_fallthru
        _
      %v328 = vld [vmem:[%s285] sm:$0xf]
      %v329 = vld [vmem:[%s285 + $0x4] sm:$0xf]
      %v330 = vld [vmem:[%s285 + $0x8] sm:$0xf]
      %v331 = vld [vmem:[%s285 + $0xc] sm:$0xf]
      %v332 = vld [vmem:[%s285 + $0x10] sm:$0xf]
      %v333 = vld [vmem:[%s285 + $0x14] sm:$0xf]
      %v334 = vld [vmem:[%s285 + $0x18] sm:$0xf]
      %v335 = vld [vmem:[%s285 + $0x1c] sm:$0xf]
      %v336 = vld [vmem:[%s285 + $0x20] sm:$0xf]
      %v337 = vld [vmem:[%s285 + $0x24] sm:$0xf]
      %v338 = vld [vmem:[%s285 + $0x28] sm:$0xf]
      %v339 = vld [vmem:[%s285 + $0x2c] sm:$0xf]
      %v340 = vld [vmem:[%s285 + $0x30] sm:$0xf]
      %v341 = vld [vmem:[%s285 + $0x34] sm:$0xf]
      %v342 = vld [vmem:[%s285 + $0x38] sm:$0xf]
      %v343 = vld [vmem:[%s285 + $0x3c] sm:$0xf]
      %v344 = vld [vmem:[%s276] sm:$0xf]
      %v345 = vld [vmem:[%s276 + $0x4] sm:$0xf]
      %v346 = vld [vmem:[%s276 + $0x8] sm:$0xf]
      %v347 = vld [vmem:[%s276 + $0xc] sm:$0xf]
      %v348 = vld [vmem:[%s276 + $0x10] sm:$0xf]
      %v349 = vld [vmem:[%s276 + $0x14] sm:$0xf]
      %v350 = vld [vmem:[%s276 + $0x18] sm:$0xf]
      %v351 = vld [vmem:[%s276 + $0x1c] sm:$0xf]
      %v352 = vld [vmem:[%s276 + $0x20] sm:$0xf]
      %v353 = vld [vmem:[%s276 + $0x24] sm:$0xf]
      %v354 = vld [vmem:[%s276 + $0x28] sm:$0xf]
      %v355 = vld [vmem:[%s276 + $0x2c] sm:$0xf]
      %v356 = vld [vmem:[%s276 + $0x30] sm:$0xf]
      %v357 = vld [vmem:[%s276 + $0x34] sm:$0xf]
      %v358 = vld [vmem:[%s276 + $0x38] sm:$0xf]
      %v359 = vld [vmem:[%s276 + $0x3c] sm:$0xf]
      %361 = vset.pattern.permute.xlu0 0
      %362 = vperm.xlu0 %361, %v344
      %v363 = vpop.permute.xlu0 %362
      %v366 = vunpack.c.l.s4 839922192
      %v367 = vunpack.c.0.s8 %v366
      %v368 = vperm.slane %v363, %v367
      %370 = vset.pattern.permute.xlu0 0
      %371 = vperm.xlu0 %370, %v345
      %v372 = vpop.permute.xlu0 %371
      %v375 = vunpack.c.l.s4 839922192
      %v376 = vunpack.c.0.s8 %v375
      %v377 = vperm.slane %v372, %v376
      %379 = vset.pattern.permute.xlu0 0
      %380 = vperm.xlu0 %379, %v346
      %v381 = vpop.permute.xlu0 %380
      %v384 = vunpack.c.l.s4 839922192
      %v385 = vunpack.c.0.s8 %v384
      %v386 = vperm.slane %v381, %v385
      %388 = vset.pattern.permute.xlu0 0
      %389 = vperm.xlu0 %388, %v347
      %v390 = vpop.permute.xlu0 %389
      %v393 = vunpack.c.l.s4 839922192
      %v394 = vunpack.c.0.s8 %v393
      %v395 = vperm.slane %v390, %v394
      %397 = vset.pattern.permute.xlu0 0
      %398 = vperm.xlu0 %397, %v348
      %v399 = vpop.permute.xlu0 %398
      %v402 = vunpack.c.l.s4 839922192
      %v403 = vunpack.c.0.s8 %v402
      %v404 = vperm.slane %v399, %v403
      %406 = vset.pattern.permute.xlu0 0
      %407 = vperm.xlu0 %406, %v349
      %v408 = vpop.permute.xlu0 %407
      %v411 = vunpack.c.l.s4 839922192
      %v412 = vunpack.c.0.s8 %v411
      %v413 = vperm.slane %v408, %v412
      %415 = vset.pattern.permute.xlu0 0
      %416 = vperm.xlu0 %415, %v350
      %v417 = vpop.permute.xlu0 %416
      %v420 = vunpack.c.l.s4 839922192
      %v421 = vunpack.c.0.s8 %v420
      %v422 = vperm.slane %v417, %v421
      %424 = vset.pattern.permute.xlu0 0
      %425 = vperm.xlu0 %424, %v351
      %v426 = vpop.permute.xlu0 %425
      %v429 = vunpack.c.l.s4 839922192
      %v430 = vunpack.c.0.s8 %v429
      %v431 = vperm.slane %v426, %v430
      %433 = vset.pattern.permute.xlu0 0
      %434 = vperm.xlu0 %433, %v352
      %v435 = vpop.permute.xlu0 %434
      %v438 = vunpack.c.l.s4 839922192
      %v439 = vunpack.c.0.s8 %v438
      %v440 = vperm.slane %v435, %v439
      %442 = vset.pattern.permute.xlu0 0
      %443 = vperm.xlu0 %442, %v353
      %v444 = vpop.permute.xlu0 %443
      %v447 = vunpack.c.l.s4 839922192
      %v448 = vunpack.c.0.s8 %v447
      %v449 = vperm.slane %v444, %v448
      %451 = vset.pattern.permute.xlu0 0
      %452 = vperm.xlu0 %451, %v354
      %v453 = vpop.permute.xlu0 %452
      %v456 = vunpack.c.l.s4 839922192
      %v457 = vunpack.c.0.s8 %v456
      %v458 = vperm.slane %v453, %v457
      %460 = vset.pattern.permute.xlu0 0
      %461 = vperm.xlu0 %460, %v355
      %v462 = vpop.permute.xlu0 %461
      %v465 = vunpack.c.l.s4 839922192
      %v466 = vunpack.c.0.s8 %v465
      %v467 = vperm.slane %v462, %v466
      %469 = vset.pattern.permute.xlu0 0
      %470 = vperm.xlu0 %469, %v356
      %v471 = vpop.permute.xlu0 %470
      %v474 = vunpack.c.l.s4 839922192
      %v475 = vunpack.c.0.s8 %v474
      %v476 = vperm.slane %v471, %v475
      %478 = vset.pattern.permute.xlu0 0
      %479 = vperm.xlu0 %478, %v357
      %v480 = vpop.permute.xlu0 %479
      %v483 = vunpack.c.l.s4 839922192
      %v484 = vunpack.c.0.s8 %v483
      %v485 = vperm.slane %v480, %v484
      %487 = vset.pattern.permute.xlu0 0
      %488 = vperm.xlu0 %487, %v358
      %v489 = vpop.permute.xlu0 %488
      %v492 = vunpack.c.l.s4 839922192
      %v493 = vunpack.c.0.s8 %v492
      %v494 = vperm.slane %v489, %v493
      %496 = vset.pattern.permute.xlu0 0
      %497 = vperm.xlu0 %496, %v359
      %v498 = vpop.permute.xlu0 %497
      %v501 = vunpack.c.l.s4 839922192
      %v502 = vunpack.c.0.s8 %v501
      %v503 = vperm.slane %v498, %v502
      %v504 = vunpack.c.l.bf16 %v328
      %v505 = vunpack.c.l.bf16 %v329
      %v506 = vunpack.c.l.bf16 %v330
      %v507 = vunpack.c.l.bf16 %v331
      %v508 = vunpack.c.l.bf16 %v332
      %v509 = vunpack.c.l.bf16 %v333
      %v510 = vunpack.c.l.bf16 %v334
      %v511 = vunpack.c.l.bf16 %v335
      %v512 = vunpack.c.l.bf16 %v336
      %v513 = vunpack.c.l.bf16 %v337
      %v514 = vunpack.c.l.bf16 %v338
      %v515 = vunpack.c.l.bf16 %v339
      %v516 = vunpack.c.l.bf16 %v340
      %v517 = vunpack.c.l.bf16 %v341
      %v518 = vunpack.c.l.bf16 %v342
      %v519 = vunpack.c.l.bf16 %v343
      %v520 = vunpack.c.l.bf16 %v368
      %v521 = vunpack.c.l.bf16 %v377
      %v522 = vunpack.c.l.bf16 %v386
      %v523 = vunpack.c.l.bf16 %v395
      %v524 = vunpack.c.l.bf16 %v404
      %v525 = vunpack.c.l.bf16 %v413
      %v526 = vunpack.c.l.bf16 %v422
      %v527 = vunpack.c.l.bf16 %v431
      %v528 = vunpack.c.l.bf16 %v440
      %v529 = vunpack.c.l.bf16 %v449
      %v530 = vunpack.c.l.bf16 %v458
      %v531 = vunpack.c.l.bf16 %v467
      %v532 = vunpack.c.l.bf16 %v476
      %v533 = vunpack.c.l.bf16 %v485
      %v534 = vunpack.c.l.bf16 %v494
      %v535 = vunpack.c.l.bf16 %v503
      %v536 = vmul.f32 %v504, %v520
      %v537 = vmul.f32 %v505, %v521
      %v538 = vmul.f32 %v506, %v522
      %v539 = vmul.f32 %v507, %v523
      %v540 = vmul.f32 %v508, %v524
      %v541 = vmul.f32 %v509, %v525
      %v542 = vmul.f32 %v510, %v526
      %v543 = vmul.f32 %v511, %v527
      %v544 = vmul.f32 %v512, %v528
      %v545 = vmul.f32 %v513, %v529
      %v546 = vmul.f32 %v514, %v530
      %v547 = vmul.f32 %v515, %v531
      %v548 = vmul.f32 %v516, %v532
      %v549 = vmul.f32 %v517, %v533
      %v550 = vmul.f32 %v518, %v534
      %v551 = vmul.f32 %v519, %v535
      %v552 = vpack.c.bf16 %v537, %v536
      %v553 = vpack.c.bf16 %v539, %v538
      %v554 = vpack.c.bf16 %v541, %v540
      %v555 = vpack.c.bf16 %v543, %v542
      %v556 = vpack.c.bf16 %v545, %v544
      %v557 = vpack.c.bf16 %v547, %v546
      %v558 = vpack.c.bf16 %v549, %v548
      %v559 = vpack.c.bf16 %v551, %v550
      %v560 = vld [vmem:[#allocation2] sm:$0xff]
      %v561 = vld [vmem:[#allocation2 + $0x8] sm:$0xff]
      %v562 = vld [vmem:[#allocation2 + $0x10] sm:$0xff]
      %v563 = vld [vmem:[#allocation2 + $0x18] sm:$0xff]
      %v564 = vld [vmem:[#allocation2 + $0x20] sm:$0xff]
      %v565 = vld [vmem:[#allocation2 + $0x28] sm:$0xff]
      %v566 = vld [vmem:[#allocation2 + $0x30] sm:$0xff]
      %v567 = vld [vmem:[#allocation2 + $0x38] sm:$0xff]
      %v568 = vld [vmem:[#allocation2 + $0x40] sm:$0xff]
      %v569 = vld [vmem:[#allocation2 + $0x48] sm:$0xff]
      %v570 = vld [vmem:[#allocation2 + $0x50] sm:$0xff]
      %v571 = vld [vmem:[#allocation2 + $0x58] sm:$0xff]
      %v572 = vld [vmem:[#allocation2 + $0x60] sm:$0xff]
      %v573 = vld [vmem:[#allocation2 + $0x68] sm:$0xff]
      %v574 = vld [vmem:[#allocation2 + $0x70] sm:$0xff]
      %v575 = vld [vmem:[#allocation2 + $0x78] sm:$0xff]
      %v576 = vld [vmem:[%s294] sm:$0xf]
      %v577 = vld [vmem:[%s294 + $0x4] sm:$0xf]
      %v578 = vld [vmem:[%s294 + $0x8] sm:$0xf]
      %v579 = vld [vmem:[%s294 + $0xc] sm:$0xf]
      %v580 = vld [vmem:[%s294 + $0x10] sm:$0xf]
      %v581 = vld [vmem:[%s294 + $0x14] sm:$0xf]
      %v582 = vld [vmem:[%s294 + $0x18] sm:$0xf]
      %v583 = vld [vmem:[%s294 + $0x1c] sm:$0xf]
      %v584 = vld [vmem:[%s294 + $0x20] sm:$0xf]
      %v585 = vld [vmem:[%s294 + $0x24] sm:$0xf]
      %v586 = vld [vmem:[%s294 + $0x28] sm:$0xf]
      %v587 = vld [vmem:[%s294 + $0x2c] sm:$0xf]
      %v588 = vld [vmem:[%s294 + $0x30] sm:$0xf]
      %v589 = vld [vmem:[%s294 + $0x34] sm:$0xf]
      %v590 = vld [vmem:[%s294 + $0x38] sm:$0xf]
      %v591 = vld [vmem:[%s294 + $0x3c] sm:$0xf]
      %v608 = vunpack.c.l.b16 %v576
      %v609 = vunpack.c.l.b16 %v577
      %v610 = vunpack.c.l.b16 %v578
      %v611 = vunpack.c.l.b16 %v579
      %v612 = vunpack.c.l.b16 %v580
      %v613 = vunpack.c.l.b16 %v581
      %v614 = vunpack.c.l.b16 %v582
      %v615 = vunpack.c.l.b16 %v583
      %v616 = vunpack.c.l.b16 %v584
      %v617 = vunpack.c.l.b16 %v585
      %v618 = vunpack.c.l.b16 %v586
      %v619 = vunpack.c.l.b16 %v587
      %v620 = vunpack.c.l.b16 %v588
      %v621 = vunpack.c.l.b16 %v589
      %v622 = vunpack.c.l.b16 %v590
      %v623 = vunpack.c.l.b16 %v591
      %v624 = vpack.c.b16 %v609, %v608
      %v625 = vpack.c.b16 %v611, %v610
      %v626 = vpack.c.b16 %v613, %v612
      %v627 = vpack.c.b16 %v615, %v614
      %v628 = vpack.c.b16 %v617, %v616
      %v629 = vpack.c.b16 %v619, %v618
      %v630 = vpack.c.b16 %v621, %v620
      %v631 = vpack.c.b16 %v623, %v622
      %640 = vmatpush.bf16.msra.mxu0 %v631
      %641 = vmatpush.bf16.msra.mxu0 %v630
      %642 = vmatpush.bf16.msra.mxu0 %v629
      %643 = vmatpush.bf16.msra.mxu0 %v628
      %644 = vmatpush.bf16.msra.mxu0 %v627
      %645 = vmatpush.bf16.msra.mxu0 %v626
      %646 = vmatpush.bf16.msra.mxu0 %v625
      %647 = vmatpush.bf16.msra.mxu0 %v624
      %648 = vmatmul.bf16.gmra.mxu0 %v552
      %v649 = vpop.f32.mrf.mxu0
      %v650 = vadd.f32 0.0, %v649
      %v651 = vpop.f32.mrf.mxu0
      %v652 = vadd.f32 0.0, %v651
      %653 = vmatmul.bf16.gmra.mxu0 %v553
      %v654 = vpop.f32.mrf.mxu0
      %v655 = vadd.f32 0.0, %v654
      %v656 = vpop.f32.mrf.mxu0
      %v657 = vadd.f32 0.0, %v656
      %658 = vmatmul.bf16.gmra.mxu0 %v554
      %v659 = vpop.f32.mrf.mxu0
      %v660 = vadd.f32 0.0, %v659
      %v661 = vpop.f32.mrf.mxu0
      %v662 = vadd.f32 0.0, %v661
      %663 = vmatmul.bf16.gmra.mxu0 %v555
      %v664 = vpop.f32.mrf.mxu0
      %v665 = vadd.f32 0.0, %v664
      %v666 = vpop.f32.mrf.mxu0
      %v667 = vadd.f32 0.0, %v666
      %668 = vmatmul.bf16.gmra.mxu0 %v556
      %v669 = vpop.f32.mrf.mxu0
      %v670 = vadd.f32 0.0, %v669
      %v671 = vpop.f32.mrf.mxu0
      %v672 = vadd.f32 0.0, %v671
      %673 = vmatmul.bf16.gmra.mxu0 %v557
      %v674 = vpop.f32.mrf.mxu0
      %v675 = vadd.f32 0.0, %v674
      %v676 = vpop.f32.mrf.mxu0
      %v677 = vadd.f32 0.0, %v676
      %678 = vmatmul.bf16.gmra.mxu0 %v558
      %v679 = vpop.f32.mrf.mxu0
      %v680 = vadd.f32 0.0, %v679
      %v681 = vpop.f32.mrf.mxu0
      %v682 = vadd.f32 0.0, %v681
      %683 = vmatmul.bf16.gmra.mxu0 %v559
      %v684 = vpop.f32.mrf.mxu0
      %v685 = vadd.f32 0.0, %v684
      %v686 = vpop.f32.mrf.mxu0
      %v687 = vadd.f32 0.0, %v686
      %688 = vdwg.mxu0
      %v689 = vadd.f32 %v560, %v650
      %v690 = vadd.f32 %v561, %v652
      %v691 = vadd.f32 %v562, %v655
      %v692 = vadd.f32 %v563, %v657
      %v693 = vadd.f32 %v564, %v660
      %v694 = vadd.f32 %v565, %v662
      %v695 = vadd.f32 %v566, %v665
      %v696 = vadd.f32 %v567, %v667
      %v697 = vadd.f32 %v568, %v670
      %v698 = vadd.f32 %v569, %v672
      %v699 = vadd.f32 %v570, %v675
      %v700 = vadd.f32 %v571, %v677
      %v701 = vadd.f32 %v572, %v680
      %v702 = vadd.f32 %v573, %v682
      %v703 = vadd.f32 %v574, %v685
      %v704 = vadd.f32 %v575, %v687
      %705 = vst [vmem:[#allocation2] sm:$0xff] %v689
      %706 = vst [vmem:[#allocation2 + $0x8] sm:$0xff] %v690
      %707 = vst [vmem:[#allocation2 + $0x10] sm:$0xff] %v691
      %708 = vst [vmem:[#allocation2 + $0x18] sm:$0xff] %v692
      %709 = vst [vmem:[#allocation2 + $0x20] sm:$0xff] %v693
      %710 = vst [vmem:[#allocation2 + $0x28] sm:$0xff] %v694
      %711 = vst [vmem:[#allocation2 + $0x30] sm:$0xff] %v695
      %712 = vst [vmem:[#allocation2 + $0x38] sm:$0xff] %v696
      %713 = vst [vmem:[#allocation2 + $0x40] sm:$0xff] %v697
      %714 = vst [vmem:[#allocation2 + $0x48] sm:$0xff] %v698
      %715 = vst [vmem:[#allocation2 + $0x50] sm:$0xff] %v699
      %716 = vst [vmem:[#allocation2 + $0x58] sm:$0xff] %v700
      %717 = vst [vmem:[#allocation2 + $0x60] sm:$0xff] %v701
      %718 = vst [vmem:[#allocation2 + $0x68] sm:$0xff] %v702
      %719 = vst [vmem:[#allocation2 + $0x70] sm:$0xff] %v703
      %720 = vst [vmem:[#allocation2 + $0x78] sm:$0xff] %v704
      // Predicated region
      $region41: #{graphmae_forward.6} parent=35 // pred_check
        %p721 = pneg %p308
      $region42: #{graphmae_forward.6} parent=35 // pred_check_branch
        %723 = sbr.rel (%p721) target = $region44
      $region43: #{graphmae_forward.6} parent=35 // pred_region
        %v724 = vld [vmem:[#allocation2] sm:$0xff]
        %v725 = vld [vmem:[#allocation2 + $0x8] sm:$0xff]
        %v726 = vld [vmem:[#allocation2 + $0x10] sm:$0xff]
        %v727 = vld [vmem:[#allocation2 + $0x18] sm:$0xff]
        %v728 = vld [vmem:[#allocation2 + $0x20] sm:$0xff]
        %v729 = vld [vmem:[#allocation2 + $0x28] sm:$0xff]
        %v730 = vld [vmem:[#allocation2 + $0x30] sm:$0xff]
        %v731 = vld [vmem:[#allocation2 + $0x38] sm:$0xff]
        %v732 = vld [vmem:[#allocation2 + $0x40] sm:$0xff]
        %v733 = vld [vmem:[#allocation2 + $0x48] sm:$0xff]
        %v734 = vld [vmem:[#allocation2 + $0x50] sm:$0xff]
        %v735 = vld [vmem:[#allocation2 + $0x58] sm:$0xff]
        %v736 = vld [vmem:[#allocation2 + $0x60] sm:$0xff]
        %v737 = vld [vmem:[#allocation2 + $0x68] sm:$0xff]
        %v738 = vld [vmem:[#allocation2 + $0x70] sm:$0xff]
        %v739 = vld [vmem:[#allocation2 + $0x78] sm:$0xff]
        %v740 = vld [vmem:[%s298] sm:$0x1]
        %v742 = vperm.slane %v740, 0
        %v744 = vadd.f32 %v724, %v742
        %v745 = vadd.f32 %v725, %v742
        %v746 = vadd.f32 %v726, %v742
        %v747 = vadd.f32 %v727, %v742
        %v748 = vadd.f32 %v728, %v742
        %v749 = vadd.f32 %v729, %v742
        %v750 = vadd.f32 %v730, %v742
        %v751 = vadd.f32 %v731, %v742
        %v752 = vadd.f32 %v732, %v742
        %v753 = vadd.f32 %v733, %v742
        %v754 = vadd.f32 %v734, %v742
        %v755 = vadd.f32 %v735, %v742
        %v756 = vadd.f32 %v736, %v742
        %v757 = vadd.f32 %v737, %v742
        %v758 = vadd.f32 %v738, %v742
        %v759 = vadd.f32 %v739, %v742
        %v760 = vpack.c.bf16 %v744, %v744
        %v761 = vpack.c.bf16 %v745, %v745
        %v762 = vpack.c.bf16 %v746, %v746
        %v763 = vpack.c.bf16 %v747, %v747
        %v764 = vpack.c.bf16 %v748, %v748
        %v765 = vpack.c.bf16 %v749, %v749
        %v766 = vpack.c.bf16 %v750, %v750
        %v767 = vpack.c.bf16 %v751, %v751
        %v768 = vpack.c.bf16 %v752, %v752
        %v769 = vpack.c.bf16 %v753, %v753
        %v770 = vpack.c.bf16 %v754, %v754
        %v771 = vpack.c.bf16 %v755, %v755
        %v772 = vpack.c.bf16 %v756, %v756
        %v773 = vpack.c.bf16 %v757, %v757
        %v774 = vpack.c.bf16 %v758, %v758
        %v775 = vpack.c.bf16 %v759, %v759
        %776 = vst [vmem:[%s306] sm:$0xf] %v760
        %777 = vst [vmem:[%s306 + $0x4] sm:$0xf] %v761
        %778 = vst [vmem:[%s306 + $0x8] sm:$0xf] %v762
        %779 = vst [vmem:[%s306 + $0xc] sm:$0xf] %v763
        %780 = vst [vmem:[%s306 + $0x10] sm:$0xf] %v764
        %781 = vst [vmem:[%s306 + $0x14] sm:$0xf] %v765
        %782 = vst [vmem:[%s306 + $0x18] sm:$0xf] %v766
        %783 = vst [vmem:[%s306 + $0x1c] sm:$0xf] %v767
        %784 = vst [vmem:[%s306 + $0x20] sm:$0xf] %v768
        %785 = vst [vmem:[%s306 + $0x24] sm:$0xf] %v769
        %786 = vst [vmem:[%s306 + $0x28] sm:$0xf] %v770
        %787 = vst [vmem:[%s306 + $0x2c] sm:$0xf] %v771
        %788 = vst [vmem:[%s306 + $0x30] sm:$0xf] %v772
        %789 = vst [vmem:[%s306 + $0x34] sm:$0xf] %v773
        %790 = vst [vmem:[%s306 + $0x38] sm:$0xf] %v774
        %791 = vst [vmem:[%s306 + $0x3c] sm:$0xf] %v775
      $region44: #{graphmae_forward.6} parent=35 // pred_fallthru
        _
      %s792 = smul.u32 16, %s20
      %p793 = scmp.lt.s32.totalorder %s792, 47
      %s794 = scalar_select %p793, %s792, 47
      %p795 = scmp.lt.s32.totalorder %s21, 0
      %s796 = scalar_select %p795, %s21, 0
      %s797 = sadd.s32 %s796, %s794
      %s798 = smul.addr %s797, 4
      %s799 = scalar_lea.vmem %s4, %s798
      // Predicated region
      $region45: #{graphmae_forward.6} parent=35 // pred_check
        %p800 = pneg %p162
      $region46: #{graphmae_forward.6} parent=35 // pred_check_branch
        %802 = sbr.rel (%p800) target = $region48
      $region47: #{graphmae_forward.6} parent=35 // pred_region
        %s803 = smul.u32 16, %s20
      $region48: #{graphmae_forward.6} parent=35 // pred_fallthru
        _
    $region36: #{graphmae_forward.6} parent=5 // pred_fallthru
      _
    %p804 = scmp.le.s32.totalorder 2, %s10
    // Predicated region
    $region49: #{graphmae_forward.6} parent=5 // pred_check
      %p805 = pneg %p804
    $region50: #{graphmae_forward.6} parent=5 // pred_check_branch
      %807 = sbr.rel (%p805) target = $region52
    $region51: #{graphmae_forward.6} parent=5 // pred_region
      %s808 = ssub.s32 %s10, 2
      // Predicated region
      $region53: #{graphmae_forward.6} parent=51 // pred_check
        %p809 = pneg %p168
      $region54: #{graphmae_forward.6} parent=51 // pred_check_branch
        %811 = sbr.rel (%p809) target = $region56
      $region55: #{graphmae_forward.6} parent=51 // pred_region
        %s812 = smul.u32 16, %s23
        %p813 = scmp.lt.s32.totalorder %s812, 47
        %s814 = scalar_select %p813, %s812, 47
        %p815 = scmp.lt.s32.totalorder %s24, 0
        %s816 = scalar_select %p815, %s24, 0
        %s817 = sadd.s32 %s816, %s814
        %s818 = smul.addr %s817, 4
        %s819 = scalar_lea.vmem %s4, %s818
      $region56: #{graphmae_forward.6} parent=51 // pred_fallthru
        _
    $region52: #{graphmae_forward.6} parent=5 // pred_fallthru
      _
  $region6: #{graphmae_forward.6} parent=0 // loop_footer
    %s14 = sadd.s32 1, %s10
  $region7: #{graphmae_forward.6} parent=0 // loop_footer_branch
    %9 = sbr.rel target = $region3
  $region8: #{graphmae_forward.6} parent=0 // loop_exit
    _

// kernel: graphmae_forward.7
$region0: #{graphmae_forward.7}
  #allocation0 [shape = 'u32[]', space=smem, size = 0x4, offset = 0x4, fixed_abs, tag = 'smem constant byte address 0x4 - core index']
  #allocation1 [shape = 'u32[72,128]{1,0:T(1,128)}', space=vmem, size = 0x9000, scoped, tag = 'internal scratch']
  #allocation2 [shape = 'f32[128,128]{1,0:T(8,128)}', space=vmem, size = 0x10000, scoped, tag = 'scratch operand']
  %s0 = inlined_call_operand.vmem [shape: bf16[384,384], index: 0, kind: input, shape index: {}]
  %s1 = inlined_call_operand.vmem [shape: bf16[384,128], index: 1, kind: input, shape index: {}]
  %s2 = inlined_call_operand.vmem [shape: f32[1,128], index: 2, kind: input, shape index: {}]
  %s3 = inlined_call_operand.vmem [shape: bf16[384,128], index: 3, kind: output, shape index: {}]
  %s4 = sld [smem:[#allocation0]]
  $region94: #{graphmae_forward.7} parent=0
    _
  %s6 = ssub.s32 1, %s4
  %s7 = scalar_select 0, %s6, %s4
  $region1: #{graphmae_forward.7} parent=0
    #allocation3 [shape = 'u8[65536]{0}', space=vmem, size = 0x10000, scoped, tag = 'input window, operand 0']
    loop: start=0, step=1, limit=11
    $region2: #{graphmae_forward.7} parent=1 // loop_pre_header
      _
    $region3: #{graphmae_forward.7} parent=1 // loop_header
      %s9 = sphi 0, %s13
      %p10 = scmp.ge.s32.totalorder %s9, 11
      %s16 = sphi 0, %s35
      %s17 = sphi 0, %s31
      %s18 = sphi 0, %s27
      %s19 = sphi 0, %s16
      %s20 = sphi 0, %s17
      %s21 = sphi 0, %s18
      %s22 = sphi 0, %s19
      %s23 = sphi 0, %s20
      %s24 = sphi 0, %s21
      %s40 = sphi 0, %s42
      %s43 = sphi 0, %s40
      %s44 = sphi 0, %s43
      %s60 = sphi 0, %s44
      %s68 = sphi 0, %s70
      %s71 = sphi 0, %s68
      %s72 = sphi 0, %s71
      %s88 = sphi 0, %s72
      %s94 = sphi 0, %s96
      %s97 = sphi 0, %s94
      %s98 = sphi 0, %s97
      %s114 = sphi 0, %s98
      %s122 = sphi 0, %s124
      %s125 = sphi 0, %s122
      %s126 = sphi 0, %s125
      %s142 = sphi 0, %s126
    $region4: #{graphmae_forward.7} parent=1 // loop_header_branch
      %12 = sbr.rel (%p10) target = $region8
    $region5: #{graphmae_forward.7} parent=1 // loop_body
      %s14 = ssub.s32 %s9, 1
      %s15 = ssub.s32 %s9, 2
      %s25 = sadd.s32 1, %s18
      %p26 = scmp.ge.s32.totalorder %s25, 3
      %s27 = scalar_select %p26, 0, %s25
      %s28 = sadd.s32 1, %s17
      %s29 = scalar_select %p26, %s28, %s17
      %p30 = scmp.ge.s32.totalorder %s29, 1
      %s31 = scalar_select %p30, 0, %s29
      %s32 = sadd.s32 1, %s16
      %s33 = scalar_select %p30, %s32, %s16
      %p34 = scmp.ge.s32.totalorder %s33, 3
      %s35 = scalar_select %p34, 0, %s33
      %s36 = ssub.s32 %s16, %s35
      %s37 = ssub.s32 %s18, %s27
      %s38 = sor.u32 %s36, %s37
      %p39 = scmp.eq.s32.totalorder %s38, 0
      %s41 = sadd.s32 %s40, 1
      %s42 = scalar_select %p39, %s40, %s41
      %p45 = pneg %p39
      %p46 = scmp.eq.s32.totalorder %s9, 8
      %p47 = por %p45, %p46
      %p48 = scmp.ne.s32.totalorder %s40, %s43
      %p49 = scmp.eq.s32.totalorder %s9, 0
      %p50 = por %p48, %p49
      %p51 = scmp.ne.s32.totalorder %s40, %s43
      %p52 = scmp.eq.s32.totalorder %s14, 8
      %p53 = por %p51, %p52
      %p54 = scmp.ne.s32.totalorder %s43, %s44
      %p55 = scmp.eq.s32.totalorder %s14, 0
      %p56 = por %p54, %p55
      %p57 = scmp.ne.s32.totalorder %s43, %s44
      %p58 = scmp.eq.s32.totalorder %s15, 8
      %p59 = por %p57, %p58
      %p61 = scmp.ne.s32.totalorder %s44, %s60
      %p62 = scmp.eq.s32.totalorder %s15, 0
      %p63 = por %p61, %p62
      %s64 = ssub.s32 %s18, %s27
      %s65 = ssub.s32 %s17, %s31
      %s66 = sor.u32 %s64, %s65
      %p67 = scmp.eq.s32.totalorder %s66, 0
      %s69 = sadd.s32 %s68, 1
      %s70 = scalar_select %p67, %s68, %s69
      %p73 = pneg %p67
      %p74 = scmp.eq.s32.totalorder %s9, 8
      %p75 = por %p73, %p74
      %p76 = scmp.ne.s32.totalorder %s68, %s71
      %p77 = scmp.eq.s32.totalorder %s9, 0
      %p78 = por %p76, %p77
      %p79 = scmp.ne.s32.totalorder %s68, %s71
      %p80 = scmp.eq.s32.totalorder %s14, 8
      %p81 = por %p79, %p80
      %p82 = scmp.ne.s32.totalorder %s71, %s72
      %p83 = scmp.eq.s32.totalorder %s14, 0
      %p84 = por %p82, %p83
      %p85 = scmp.ne.s32.totalorder %s71, %s72
      %p86 = scmp.eq.s32.totalorder %s15, 8
      %p87 = por %p85, %p86
      %p89 = scmp.ne.s32.totalorder %s72, %s88
      %p90 = scmp.eq.s32.totalorder %s15, 0
      %p91 = por %p89, %p90
      %s92 = ssub.s32 %s17, %s31
      %p93 = scmp.eq.s32.totalorder %s92, 0
      %s95 = sadd.s32 %s94, 1
      %s96 = scalar_select %p93, %s94, %s95
      %p99 = pneg %p93
      %p100 = scmp.eq.s32.totalorder %s9, 8
      %p101 = por %p99, %p100
      %p102 = scmp.ne.s32.totalorder %s94, %s97
      %p103 = scmp.eq.s32.totalorder %s9, 0
      %p104 = por %p102, %p103
      %p105 = scmp.ne.s32.totalorder %s94, %s97
      %p106 = scmp.eq.s32.totalorder %s14, 8
      %p107 = por %p105, %p106
      %p108 = scmp.ne.s32.totalorder %s97, %s98
      %p109 = scmp.eq.s32.totalorder %s14, 0
      %p110 = por %p108, %p109
      %p111 = scmp.ne.s32.totalorder %s97, %s98
      %p112 = scmp.eq.s32.totalorder %s15, 8
      %p113 = por %p111, %p112
      %p115 = scmp.ne.s32.totalorder %s98, %s114
      %p116 = scmp.eq.s32.totalorder %s15, 0
      %p117 = por %p115, %p116
      %s118 = ssub.s32 %s16, %s35
      %s119 = ssub.s32 %s17, %s31
      %s120 = sor.u32 %s118, %s119
      %p121 = scmp.eq.s32.totalorder %s120, 0
      %s123 = sadd.s32 %s122, 1
      %s124 = scalar_select %p121, %s122, %s123
      %p127 = pneg %p121
      %p128 = scmp.eq.s32.totalorder %s9, 8
      %p129 = por %p127, %p128
      %p130 = scmp.ne.s32.totalorder %s122, %s125
      %p131 = scmp.eq.s32.totalorder %s9, 0
      %p132 = por %p130, %p131
      %p133 = scmp.ne.s32.totalorder %s122, %s125
      %p134 = scmp.eq.s32.totalorder %s14, 8
      %p135 = por %p133, %p134
      %p136 = scmp.ne.s32.totalorder %s125, %s126
      %p137 = scmp.eq.s32.totalorder %s14, 0
      %p138 = por %p136, %p137
      %p139 = scmp.ne.s32.totalorder %s125, %s126
      %p140 = scmp.eq.s32.totalorder %s15, 8
      %p141 = por %p139, %p140
      %p143 = scmp.ne.s32.totalorder %s126, %s142
      %p144 = scmp.eq.s32.totalorder %s15, 0
      %p145 = por %p143, %p144
      %p146 = scmp.le.s32.totalorder 1, %s9
      %p147 = scmp.lt.s32.totalorder %s9, 10
      %p148 = pnand %p146, %p147
      %p149 = pneg %p148
      // Predicated region
      $region9: #{graphmae_forward.7} parent=5 // pred_check
        _
      $region10: #{graphmae_forward.7} parent=5 // pred_check_branch
        %151 = sbr.rel (%p148) target = $region12
      $region11: #{graphmae_forward.7} parent=5 // pred_region
        %s152 = ssub.s32 %s9, 1
        // Predicated region
        $region13: #{graphmae_forward.7} parent=11 // pred_check
          %p153 = pneg %p110
        $region14: #{graphmae_forward.7} parent=11 // pred_check_branch
          %155 = sbr.rel (%p153) target = $region16
        $region15: #{graphmae_forward.7} parent=11 // pred_region
          %p156 = scmp.lt.s32.totalorder %s20, 0
          %s157 = scalar_select %p156, %s20, 0
          %s158 = scalar_lea.vmem %s2, %s157
        $region16: #{graphmae_forward.7} parent=11 // pred_fallthru
          _
      $region12: #{graphmae_forward.7} parent=5 // pred_fallthru
        _
      %p159 = scmp.lt.s32.totalorder %s9, 9
      // Predicated region
      $region17: #{graphmae_forward.7} parent=5 // pred_check
        %p160 = pneg %p159
      $region18: #{graphmae_forward.7} parent=5 // pred_check_branch
        %162 = sbr.rel (%p160) target = $region20
      $region19: #{graphmae_forward.7} parent=5 // pred_region
        // Predicated region
        $region21: #{graphmae_forward.7} parent=19 // pred_check
          %p163 = pneg %p50
        $region22: #{graphmae_forward.7} parent=19 // pred_check_branch
          %165 = sbr.rel (%p163) target = $region24
        $region23: #{graphmae_forward.7} parent=19 // pred_region
          %s166 = sand.u32 %s40, 1
          %s167 = sand.u32 %s40, 1
          %s168 = smul.addr %s167, 64
          %s169 = scalar_lea.vmem [#allocation3], %s168
          %s170 = smul.u32 16, %s16
          %s171 = smul.addr %s170, 3
          %s172 = sadd.s32 %s18, %s171
          %s173 = smul.addr %s172, 4
          %s174 = scalar_lea.vmem %s0, %s173
          // Predicated region
          $region25: #{graphmae_forward.7} parent=23 // pred_check
            _
          $region26: #{graphmae_forward.7} parent=23 // pred_check_branch
            %176 = sbr.rel (0) target = $region28
          $region27: #{graphmae_forward.7} parent=23 // pred_region
            // Predicated region
            $region29: #{graphmae_forward.7} parent=27 // pred_check
              _
            $region30: #{graphmae_forward.7} parent=27 // pred_check_branch
              %178 = sbr.rel target = $region32
            $region31: #{graphmae_forward.7} parent=27 // pred_region
              // Predicated region
              $region44: #{graphmae_forward.7} parent=31 // pred_check
                _
              $region45: #{graphmae_forward.7} parent=31 // pred_check_branch
                %224 = sbr.rel (0) target = $region47
              $region46: #{graphmae_forward.7} parent=31 // pred_region
                loop: start=0, step=1, limit=1
                $region48: #{graphmae_forward.7} parent=46 // loop_pre_header
                  _
                $region49: #{graphmae_forward.7} parent=46 // loop_header
                  %s226 = sphi 0, %s230
                  %p227 = scmp.ge.s32.totalorder %s226, 1
                  %s231 = sphi %s174, %s174
                  %s232 = sphi %s169, %s169
                $region50: #{graphmae_forward.7} parent=46 // loop_header_branch
                  %229 = sbr.rel (%p227) target = $region54
                $region51: #{graphmae_forward.7} parent=46 // loop_body
                  _
                $region52: #{graphmae_forward.7} parent=46 // loop_footer
                  %s230 = sadd.s32 1, %s226
                $region53: #{graphmae_forward.7} parent=46 // loop_footer_branch
                  %225 = sbr.rel target = $region49
                $region54: #{graphmae_forward.7} parent=46 // loop_exit
                  _
                %s234 = ssub.s32 16, 1
                loop: start=0, step=1, limit=1
                $region55: #{graphmae_forward.7} parent=46 // loop_pre_header
                  _
                $region56: #{graphmae_forward.7} parent=46 // loop_header
                  %s236 = sphi 0, %s240
                  %p237 = scmp.ge.s32.totalorder %s236, 1
                  %s241 = sphi %s174, %s174
                  %s242 = sphi %s169, %s169
                $region57: #{graphmae_forward.7} parent=46 // loop_header_branch
                  %239 = sbr.rel (%p237) target = $region61
                $region58: #{graphmae_forward.7} parent=46 // loop_body
                  %v243 = vld [vmem:[%s241] sm:%s234]
                  %244 = vst [vmem:[%s242] sm:%s234] %v243
                  %v245 = vld [vmem:[%s241 + $0xc] sm:%s234]
                  %246 = vst [vmem:[%s242 + $0x4] sm:%s234] %v245
                  %v247 = vld [vmem:[%s241 + $0x18] sm:%s234]
                  %248 = vst [vmem:[%s242 + $0x8] sm:%s234] %v247
                  %v249 = vld [vmem:[%s241 + $0x24] sm:%s234]
                  %250 = vst [vmem:[%s242 + $0xc] sm:%s234] %v249
                  %v251 = vld [vmem:[%s241 + $0x30] sm:%s234]
                  %252 = vst [vmem:[%s242 + $0x10] sm:%s234] %v251
                  %v253 = vld [vmem:[%s241 + $0x3c] sm:%s234]
                  %254 = vst [vmem:[%s242 + $0x14] sm:%s234] %v253
                  %v255 = vld [vmem:[%s241 + $0x48] sm:%s234]
                  %256 = vst [vmem:[%s242 + $0x18] sm:%s234] %v255
                  %v257 = vld [vmem:[%s241 + $0x54] sm:%s234]
                  %258 = vst [vmem:[%s242 + $0x1c] sm:%s234] %v257
                  %v259 = vld [vmem:[%s241 + $0x60] sm:%s234]
                  %260 = vst [vmem:[%s242 + $0x20] sm:%s234] %v259
                  %v261 = vld [vmem:[%s241 + $0x6c] sm:%s234]
                  %262 = vst [vmem:[%s242 + $0x24] sm:%s234] %v261
                  %v263 = vld [vmem:[%s241 + $0x78] sm:%s234]
                  %264 = vst [vmem:[%s242 + $0x28] sm:%s234] %v263
                  %v265 = vld [vmem:[%s241 + $0x84] sm:%s234]
                  %266 = vst [vmem:[%s242 + $0x2c] sm:%s234] %v265
                  %v267 = vld [vmem:[%s241 + $0x90] sm:%s234]
                  %268 = vst [vmem:[%s242 + $0x30] sm:%s234] %v267
                  %v269 = vld [vmem:[%s241 + $0x9c] sm:%s234]
                  %270 = vst [vmem:[%s242 + $0x34] sm:%s234] %v269
                  %v271 = vld [vmem:[%s241 + $0xa8] sm:%s234]
                  %272 = vst [vmem:[%s242 + $0x38] sm:%s234] %v271
                  %v273 = vld [vmem:[%s241 + $0xb4] sm:%s234]
                  %274 = vst [vmem:[%s242 + $0x3c] sm:%s234] %v273
                $region59: #{graphmae_forward.7} parent=46 // loop_footer
                  %s240 = sadd.s32 1, %s236
                $region60: #{graphmae_forward.7} parent=46 // loop_footer_branch
                  %235 = sbr.rel target = $region56
                $region61: #{graphmae_forward.7} parent=46 // loop_exit
                  _
              $region47: #{graphmae_forward.7} parent=31 // pred_fallthru
                _
            $region32: #{graphmae_forward.7} parent=27 // pred_fallthru
              _
            // Predicated region
            $region33: #{graphmae_forward.7} parent=27 // pred_check
              _
            $region34: #{graphmae_forward.7} parent=27 // pred_check_branch
              %180 = sbr.rel (0) target = $region36
            $region35: #{graphmae_forward.7} parent=27 // pred_region
              %s182 = ssub.s32 16, 1
              loop: start=0, step=1, limit=1
              $region37: #{graphmae_forward.7} parent=35 // loop_pre_header
                _
              $region38: #{graphmae_forward.7} parent=35 // loop_header
                %s184 = sphi 0, %s188
                %p185 = scmp.ge.s32.totalorder %s184, 1
                %s189 = sphi %s174, %s174
                %s190 = sphi %s169, %s169
              $region39: #{graphmae_forward.7} parent=35 // loop_header_branch
                %187 = sbr.rel (%p185) target = $region43
              $region40: #{graphmae_forward.7} parent=35 // loop_body
                %v191 = vld [vmem:[%s189] sm:%s182]
                %192 = vst [vmem:[%s190] sm:%s182] %v191
                %v193 = vld [vmem:[%s189 + $0xc] sm:%s182]
                %194 = vst [vmem:[%s190 + $0x4] sm:%s182] %v193
                %v195 = vld [vmem:[%s189 + $0x18] sm:%s182]
                %196 = vst [vmem:[%s190 + $0x8] sm:%s182] %v195
                %v197 = vld [vmem:[%s189 + $0x24] sm:%s182]
                %198 = vst [vmem:[%s190 + $0xc] sm:%s182] %v197
                %v199 = vld [vmem:[%s189 + $0x30] sm:%s182]
                %200 = vst [vmem:[%s190 + $0x10] sm:%s182] %v199
                %v201 = vld [vmem:[%s189 + $0x3c] sm:%s182]
                %202 = vst [vmem:[%s190 + $0x14] sm:%s182] %v201
                %v203 = vld [vmem:[%s189 + $0x48] sm:%s182]
                %204 = vst [vmem:[%s190 + $0x18] sm:%s182] %v203
                %v205 = vld [vmem:[%s189 + $0x54] sm:%s182]
                %206 = vst [vmem:[%s190 + $0x1c] sm:%s182] %v205
                %v207 = vld [vmem:[%s189 + $0x60] sm:%s182]
                %208 = vst [vmem:[%s190 + $0x20] sm:%s182] %v207
                %v209 = vld [vmem:[%s189 + $0x6c] sm:%s182]
                %210 = vst [vmem:[%s190 + $0x24] sm:%s182] %v209
                %v211 = vld [vmem:[%s189 + $0x78] sm:%s182]
                %212 = vst [vmem:[%s190 + $0x28] sm:%s182] %v211
                %v213 = vld [vmem:[%s189 + $0x84] sm:%s182]
                %214 = vst [vmem:[%s190 + $0x2c] sm:%s182] %v213
                %v215 = vld [vmem:[%s189 + $0x90] sm:%s182]
                %216 = vst [vmem:[%s190 + $0x30] sm:%s182] %v215
                %v217 = vld [vmem:[%s189 + $0x9c] sm:%s182]
                %218 = vst [vmem:[%s190 + $0x34] sm:%s182] %v217
                %v219 = vld [vmem:[%s189 + $0xa8] sm:%s182]
                %220 = vst [vmem:[%s190 + $0x38] sm:%s182] %v219
                %v221 = vld [vmem:[%s189 + $0xb4] sm:%s182]
                %222 = vst [vmem:[%s190 + $0x3c] sm:%s182] %v221
              $region41: #{graphmae_forward.7} parent=35 // loop_footer
                %s188 = sadd.s32 1, %s184
              $region42: #{graphmae_forward.7} parent=35 // loop_footer_branch
                %183 = sbr.rel target = $region38
              $region43: #{graphmae_forward.7} parent=35 // loop_exit
                _
            $region36: #{graphmae_forward.7} parent=27 // pred_fallthru
              _
          $region28: #{graphmae_forward.7} parent=23 // pred_fallthru
            _
          %275 = vnop
        $region24: #{graphmae_forward.7} parent=19 // pred_fallthru
          _
        // Predicated region
        $region62: #{graphmae_forward.7} parent=19 // pred_check
          %p276 = pneg %p78
        $region63: #{graphmae_forward.7} parent=19 // pred_check_branch
          %278 = sbr.rel (%p276) target = $region65
        $region64: #{graphmae_forward.7} parent=19 // pred_region
          %s279 = smul.u32 16, %s18
          %p280 = scmp.lt.s32.totalorder %s279, 47
          %s281 = scalar_select %p280, %s279, 47
          %p282 = scmp.lt.s32.totalorder %s17, 0
          %s283 = scalar_select %p282, %s17, 0
          %s284 = sadd.s32 %s283, %s281
          %s285 = smul.addr %s284, 4
          %s286 = scalar_lea.vmem %s1, %s285
          %s287 = smul.u32 16, %s18
        $region65: #{graphmae_forward.7} parent=19 // pred_fallthru
          _
      $region20: #{graphmae_forward.7} parent=5 // pred_fallthru
        _
      %p288 = scmp.le.s32.totalorder 1, %s9
      %p289 = scmp.lt.s32.totalorder %s9, 10
      %p290 = pnand %p288, %p289
      %p291 = pneg %p290
      // Predicated region
      $region66: #{graphmae_forward.7} parent=5 // pred_check
        _
      $region67: #{graphmae_forward.7} parent=5 // pred_check_branch
        %293 = sbr.rel (%p290) target = $region69
      $region68: #{graphmae_forward.7} parent=5 // pred_region
        %s294 = ssub.s32 %s9, 1
        %s295 = sand.u32 %s43, 1
        %s296 = sand.u32 %s43, 1
        %s297 = smul.addr %s296, 64
        %s298 = scalar_lea.vmem [#allocation3], %s297
        // Predicated region
        $region70: #{graphmae_forward.7} parent=68 // pred_check
          %p299 = pneg %p56
        $region71: #{graphmae_forward.7} parent=68 // pred_check_branch
          %301 = sbr.rel (%p299) target = $region73
        $region72: #{graphmae_forward.7} parent=68 // pred_region
          _
        $region73: #{graphmae_forward.7} parent=68 // pred_fallthru
          _
        %s302 = sand.u32 %s43, 1
        %s303 = sand.u32 %s43, 1
        %s304 = smul.addr %s303, 64
        %s305 = scalar_lea.vmem [#allocation3], %s304
        %p306 = pneg %p56
        %p307 = pneg %p53
        %s308 = smul.u32 16, %s21
        %p309 = scmp.lt.s32.totalorder %s308, 47
        %s310 = scalar_select %p309, %s308, 47
        %p311 = scmp.lt.s32.totalorder %s20, 0
        %s312 = scalar_select %p311, %s20, 0
        %s313 = sadd.s32 %s312, %s310
        %s314 = smul.addr %s313, 4
        %s315 = scalar_lea.vmem %s1, %s314
        %p316 = pneg %p84
        %p317 = pneg %p81
        %p318 = scmp.lt.s32.totalorder %s20, 0
        %s319 = scalar_select %p318, %s20, 0
        %s320 = scalar_lea.vmem %s2, %s319
        %p321 = pneg %p110
        %p322 = pneg %p107
        %p323 = pneg %p138
        %p324 = pneg %p135
        %s325 = smul.u32 16, %s19
        %p326 = scmp.lt.s32.totalorder %s325, 47
        %s327 = scalar_select %p326, %s325, 47
        %p328 = scmp.lt.s32.totalorder %s20, 0
        %s329 = scalar_select %p328, %s20, 0
        %s330 = sadd.s32 %s329, %s327
        %s331 = smul.addr %s330, 4
        %s332 = scalar_lea.vmem %s3, %s331
        %s333 = smul.u32 16, %s19
        %s334 = smul.u32 16, %s21
        %p335 = scmp.lt.s32.totalorder %s334, 47
        %s336 = scalar_select %p335, %s334, 47
        %p337 = scmp.lt.s32.totalorder %s20, 0
        %s338 = scalar_select %p337, %s20, 0
        %s339 = sadd.s32 %s338, %s336
        %s340 = smul.addr %s339, 4
        %s341 = scalar_lea.vmem %s1, %s340
        %s342 = smul.u32 16, %s21
        %p343 = scmp.lt.s32.totalorder %s20, 0
        %s344 = scalar_select %p343, %s20, 0
        %s345 = scalar_lea.vmem %s2, %s344
        %s346 = smul.u32 16, %s19
        %p347 = scmp.lt.s32.totalorder %s346, 47
        %s348 = scalar_select %p347, %s346, 47
        %p349 = scmp.lt.s32.totalorder %s20, 0
        %s350 = scalar_select %p349, %s20, 0
        %s351 = sadd.s32 %s350, %s348
        %s352 = smul.addr %s351, 4
        %s353 = scalar_lea.vmem %s3, %s352
        %s354 = smul.u32 16, %s19
        %p355 = scmp.eq.s32.totalorder %s21, 0
        // Predicated region
        $region74: #{graphmae_forward.7} parent=68 // pred_check
          %p356 = pneg %p355
        $region75: #{graphmae_forward.7} parent=68 // pred_check_branch
          %358 = sbr.rel (%p356) target = $region77
        $region76: #{graphmae_forward.7} parent=68 // pred_region
          %359 = vst [vmem:[#allocation2] sm:$0xff] 0.0
          %360 = vst [vmem:[#allocation2 + $0x8] sm:$0xff] 0.0
          %361 = vst [vmem:[#allocation2 + $0x10] sm:$0xff] 0.0
          %362 = vst [vmem:[#allocation2 + $0x18] sm:$0xff] 0.0
          %363 = vst [vmem:[#allocation2 + $0x20] sm:$0xff] 0.0
          %364 = vst [vmem:[#allocation2 + $0x28] sm:$0xff] 0.0
          %365 = vst [vmem:[#allocation2 + $0x30] sm:$0xff] 0.0
          %366 = vst [vmem:[#allocation2 + $0x38] sm:$0xff] 0.0
          %367 = vst [vmem:[#allocation2 + $0x40] sm:$0xff] 0.0
          %368 = vst [vmem:[#allocation2 + $0x48] sm:$0xff] 0.0
          %369 = vst [vmem:[#allocation2 + $0x50] sm:$0xff] 0.0
          %370 = vst [vmem:[#allocation2 + $0x58] sm:$0xff] 0.0
          %371 = vst [vmem:[#allocation2 + $0x60] sm:$0xff] 0.0
          %372 = vst [vmem:[#allocation2 + $0x68] sm:$0xff] 0.0
          %373 = vst [vmem:[#allocation2 + $0x70] sm:$0xff] 0.0
          %374 = vst [vmem:[#allocation2 + $0x78] sm:$0xff] 0.0
        $region77: #{graphmae_forward.7} parent=68 // pred_fallthru
          _
        %v375 = vld [vmem:[%s298] sm:$0xf]
        %v376 = vld [vmem:[%s298 + $0x4] sm:$0xf]
        %v377 = vld [vmem:[%s298 + $0x8] sm:$0xf]
        %v378 = vld [vmem:[%s298 + $0xc] sm:$0xf]
        %v379 = vld [vmem:[%s298 + $0x10] sm:$0xf]
        %v380 = vld [vmem:[%s298 + $0x14] sm:$0xf]
        %v381 = vld [vmem:[%s298 + $0x18] sm:$0xf]
        %v382 = vld [vmem:[%s298 + $0x1c] sm:$0xf]
        %v383 = vld [vmem:[%s298 + $0x20] sm:$0xf]
        %v384 = vld [vmem:[%s298 + $0x24] sm:$0xf]
        %v385 = vld [vmem:[%s298 + $0x28] sm:$0xf]
        %v386 = vld [vmem:[%s298 + $0x2c] sm:$0xf]
        %v387 = vld [vmem:[%s298 + $0x30] sm:$0xf]
        %v388 = vld [vmem:[%s298 + $0x34] sm:$0xf]
        %v389 = vld [vmem:[%s298 + $0x38] sm:$0xf]
        %v390 = vld [vmem:[%s298 + $0x3c] sm:$0xf]
        %v391 = vld [vmem:[#allocation2] sm:$0xff]
        %v392 = vld [vmem:[#allocation2 + $0x8] sm:$0xff]
        %v393 = vld [vmem:[#allocation2 + $0x10] sm:$0xff]
        %v394 = vld [vmem:[#allocation2 + $0x18] sm:$0xff]
        %v395 = vld [vmem:[#allocation2 + $0x20] sm:$0xff]
        %v396 = vld [vmem:[#allocation2 + $0x28] sm:$0xff]
        %v397 = vld [vmem:[#allocation2 + $0x30] sm:$0xff]
        %v398 = vld [vmem:[#allocation2 + $0x38] sm:$0xff]
        %v399 = vld [vmem:[#allocation2 + $0x40] sm:$0xff]
        %v400 = vld [vmem:[#allocation2 + $0x48] sm:$0xff]
        %v401 = vld [vmem:[#allocation2 + $0x50] sm:$0xff]
        %v402 = vld [vmem:[#allocation2 + $0x58] sm:$0xff]
        %v403 = vld [vmem:[#allocation2 + $0x60] sm:$0xff]
        %v404 = vld [vmem:[#allocation2 + $0x68] sm:$0xff]
        %v405 = vld [vmem:[#allocation2 + $0x70] sm:$0xff]
        %v406 = vld [vmem:[#allocation2 + $0x78] sm:$0xff]
        %v407 = vld [vmem:[%s341] sm:$0xf]
        %v408 = vld [vmem:[%s341 + $0x4] sm:$0xf]
        %v409 = vld [vmem:[%s341 + $0x8] sm:$0xf]
        %v410 = vld [vmem:[%s341 + $0xc] sm:$0xf]
        %v411 = vld [vmem:[%s341 + $0x10] sm:$0xf]
        %v412 = vld [vmem:[%s341 + $0x14] sm:$0xf]
        %v413 = vld [vmem:[%s341 + $0x18] sm:$0xf]
        %v414 = vld [vmem:[%s341 + $0x1c] sm:$0xf]
        %v415 = vld [vmem:[%s341 + $0x20] sm:$0xf]
        %v416 = vld [vmem:[%s341 + $0x24] sm:$0xf]
        %v417 = vld [vmem:[%s341 + $0x28] sm:$0xf]
        %v418 = vld [vmem:[%s341 + $0x2c] sm:$0xf]
        %v419 = vld [vmem:[%s341 + $0x30] sm:$0xf]
        %v420 = vld [vmem:[%s341 + $0x34] sm:$0xf]
        %v421 = vld [vmem:[%s341 + $0x38] sm:$0xf]
        %v422 = vld [vmem:[%s341 + $0x3c] sm:$0xf]
        %v439 = vunpack.c.l.b16 %v375
        %v440 = vunpack.c.l.b16 %v376
        %v441 = vunpack.c.l.b16 %v377
        %v442 = vunpack.c.l.b16 %v378
        %v443 = vunpack.c.l.b16 %v379
        %v444 = vunpack.c.l.b16 %v380
        %v445 = vunpack.c.l.b16 %v381
        %v446 = vunpack.c.l.b16 %v382
        %v447 = vunpack.c.l.b16 %v383
        %v448 = vunpack.c.l.b16 %v384
        %v449 = vunpack.c.l.b16 %v385
        %v450 = vunpack.c.l.b16 %v386
        %v451 = vunpack.c.l.b16 %v387
        %v452 = vunpack.c.l.b16 %v388
        %v453 = vunpack.c.l.b16 %v389
        %v454 = vunpack.c.l.b16 %v390
        %v455 = vpack.c.b16 %v440, %v439
        %v456 = vpack.c.b16 %v442, %v441
        %v457 = vpack.c.b16 %v444, %v443
        %v458 = vpack.c.b16 %v446, %v445
        %v459 = vpack.c.b16 %v448, %v447
        %v460 = vpack.c.b16 %v450, %v449
        %v461 = vpack.c.b16 %v452, %v451
        %v462 = vpack.c.b16 %v454, %v453
        %v487 = vunpack.c.l.b16 %v407
        %v488 = vunpack.c.l.b16 %v408
        %v489 = vunpack.c.l.b16 %v409
        %v490 = vunpack.c.l.b16 %v410
        %v491 = vunpack.c.l.b16 %v411
        %v492 = vunpack.c.l.b16 %v412
        %v493 = vunpack.c.l.b16 %v413
        %v494 = vunpack.c.l.b16 %v414
        %v495 = vunpack.c.l.b16 %v415
        %v496 = vunpack.c.l.b16 %v416
        %v497 = vunpack.c.l.b16 %v417
        %v498 = vunpack.c.l.b16 %v418
        %v499 = vunpack.c.l.b16 %v419
        %v500 = vunpack.c.l.b16 %v420
        %v501 = vunpack.c.l.b16 %v421
        %v502 = vunpack.c.l.b16 %v422
        %v503 = vpack.c.b16 %v488, %v487
        %v504 = vpack.c.b16 %v490, %v489
        %v505 = vpack.c.b16 %v492, %v491
        %v506 = vpack.c.b16 %v494, %v493
        %v507 = vpack.c.b16 %v496, %v495
        %v508 = vpack.c.b16 %v498, %v497
        %v509 = vpack.c.b16 %v500, %v499
        %v510 = vpack.c.b16 %v502, %v501
        %519 = vmatpush.bf16.msra.mxu0 %v510
        %520 = vmatpush.bf16.msra.mxu0 %v509
        %521 = vmatpush.bf16.msra.mxu0 %v508
        %522 = vmatpush.bf16.msra.mxu0 %v507
        %523 = vmatpush.bf16.msra.mxu0 %v506
        %524 = vmatpush.bf16.msra.mxu0 %v505
        %525 = vmatpush.bf16.msra.mxu0 %v504
        %526 = vmatpush.bf16.msra.mxu0 %v503
        %527 = vmatmul.bf16.gmra.mxu0 %v455
        %v528 = vpop.f32.mrf.mxu0
        %v529 = vadd.f32 0.0, %v528
        %v530 = vpop.f32.mrf.mxu0
        %v531 = vadd.f32 0.0, %v530
        %532 = vmatmul.bf16.gmra.mxu0 %v456
        %v533 = vpop.f32.mrf.mxu0
        %v534 = vadd.f32 0.0, %v533
        %v535 = vpop.f32.mrf.mxu0
        %v536 = vadd.f32 0.0, %v535
        %537 = vmatmul.bf16.gmra.mxu0 %v457
        %v538 = vpop.f32.mrf.mxu0
        %v539 = vadd.f32 0.0, %v538
        %v540 = vpop.f32.mrf.mxu0
        %v541 = vadd.f32 0.0, %v540
        %542 = vmatmul.bf16.gmra.mxu0 %v458
        %v543 = vpop.f32.mrf.mxu0
        %v544 = vadd.f32 0.0, %v543
        %v545 = vpop.f32.mrf.mxu0
        %v546 = vadd.f32 0.0, %v545
        %547 = vmatmul.bf16.gmra.mxu0 %v459
        %v548 = vpop.f32.mrf.mxu0
        %v549 = vadd.f32 0.0, %v548
        %v550 = vpop.f32.mrf.mxu0
        %v551 = vadd.f32 0.0, %v550
        %552 = vmatmul.bf16.gmra.mxu0 %v460
        %v553 = vpop.f32.mrf.mxu0
        %v554 = vadd.f32 0.0, %v553
        %v555 = vpop.f32.mrf.mxu0
        %v556 = vadd.f32 0.0, %v555
        %557 = vmatmul.bf16.gmra.mxu0 %v461
        %v558 = vpop.f32.mrf.mxu0
        %v559 = vadd.f32 0.0, %v558
        %v560 = vpop.f32.mrf.mxu0
        %v561 = vadd.f32 0.0, %v560
        %562 = vmatmul.bf16.gmra.mxu0 %v462
        %v563 = vpop.f32.mrf.mxu0
        %v564 = vadd.f32 0.0, %v563
        %v565 = vpop.f32.mrf.mxu0
        %v566 = vadd.f32 0.0, %v565
        %567 = vdwg.mxu0
        %v568 = vadd.f32 %v391, %v529
        %v569 = vadd.f32 %v392, %v531
        %v570 = vadd.f32 %v393, %v534
        %v571 = vadd.f32 %v394, %v536
        %v572 = vadd.f32 %v395, %v539
        %v573 = vadd.f32 %v396, %v541
        %v574 = vadd.f32 %v397, %v544
        %v575 = vadd.f32 %v398, %v546
        %v576 = vadd.f32 %v399, %v549
        %v577 = vadd.f32 %v400, %v551
        %v578 = vadd.f32 %v401, %v554
        %v579 = vadd.f32 %v402, %v556
        %v580 = vadd.f32 %v403, %v559
        %v581 = vadd.f32 %v404, %v561
        %v582 = vadd.f32 %v405, %v564
        %v583 = vadd.f32 %v406, %v566
        %584 = vst [vmem:[#allocation2] sm:$0xff] %v568
        %585 = vst [vmem:[#allocation2 + $0x8] sm:$0xff] %v569
        %586 = vst [vmem:[#allocation2 + $0x10] sm:$0xff] %v570
        %587 = vst [vmem:[#allocation2 + $0x18] sm:$0xff] %v571
        %588 = vst [vmem:[#allocation2 + $0x20] sm:$0xff] %v572
        %589 = vst [vmem:[#allocation2 + $0x28] sm:$0xff] %v573
        %590 = vst [vmem:[#allocation2 + $0x30] sm:$0xff] %v574
        %591 = vst [vmem:[#allocation2 + $0x38] sm:$0xff] %v575
        %592 = vst [vmem:[#allocation2 + $0x40] sm:$0xff] %v576
        %593 = vst [vmem:[#allocation2 + $0x48] sm:$0xff] %v577
        %594 = vst [vmem:[#allocation2 + $0x50] sm:$0xff] %v578
        %595 = vst [vmem:[#allocation2 + $0x58] sm:$0xff] %v579
        %596 = vst [vmem:[#allocation2 + $0x60] sm:$0xff] %v580
        %597 = vst [vmem:[#allocation2 + $0x68] sm:$0xff] %v581
        %598 = vst [vmem:[#allocation2 + $0x70] sm:$0xff] %v582
        %599 = vst [vmem:[#allocation2 + $0x78] sm:$0xff] %v583
        %p600 = scmp.eq.s32.totalorder %s21, 2
        // Predicated region
        $region78: #{graphmae_forward.7} parent=68 // pred_check
          %p601 = pneg %p600
        $region79: #{graphmae_forward.7} parent=68 // pred_check_branch
          %603 = sbr.rel (%p601) target = $region81
        $region80: #{graphmae_forward.7} parent=68 // pred_region
          %v604 = vld [vmem:[#allocation2] sm:$0xff]
          %v605 = vld [vmem:[#allocation2 + $0x8] sm:$0xff]
          %v606 = vld [vmem:[#allocation2 + $0x10] sm:$0xff]
          %v607 = vld [vmem:[#allocation2 + $0x18] sm:$0xff]
          %v608 = vld [vmem:[#allocation2 + $0x20] sm:$0xff]
          %v609 = vld [vmem:[#allocation2 + $0x28] sm:$0xff]
          %v610 = vld [vmem:[#allocation2 + $0x30] sm:$0xff]
          %v611 = vld [vmem:[#allocation2 + $0x38] sm:$0xff]
          %v612 = vld [vmem:[#allocation2 + $0x40] sm:$0xff]
          %v613 = vld [vmem:[#allocation2 + $0x48] sm:$0xff]
          %v614 = vld [vmem:[#allocation2 + $0x50] sm:$0xff]
          %v615 = vld [vmem:[#allocation2 + $0x58] sm:$0xff]
          %v616 = vld [vmem:[#allocation2 + $0x60] sm:$0xff]
          %v617 = vld [vmem:[#allocation2 + $0x68] sm:$0xff]
          %v618 = vld [vmem:[#allocation2 + $0x70] sm:$0xff]
          %v619 = vld [vmem:[#allocation2 + $0x78] sm:$0xff]
          %v620 = vld [vmem:[%s345] sm:$0x1]
          %v622 = vperm.slane %v620, 0
          %v624 = vadd.f32 %v604, %v622
          %v625 = vadd.f32 %v605, %v622
          %v626 = vadd.f32 %v606, %v622
          %v627 = vadd.f32 %v607, %v622
          %v628 = vadd.f32 %v608, %v622
          %v629 = vadd.f32 %v609, %v622
          %v630 = vadd.f32 %v610, %v622
          %v631 = vadd.f32 %v611, %v622
          %v632 = vadd.f32 %v612, %v622
          %v633 = vadd.f32 %v613, %v622
          %v634 = vadd.f32 %v614, %v622
          %v635 = vadd.f32 %v615, %v622
          %v636 = vadd.f32 %v616, %v622
          %v637 = vadd.f32 %v617, %v622
          %v638 = vadd.f32 %v618, %v622
          %v639 = vadd.f32 %v619, %v622
          %v640 = vmax.f32 %v624, 0.0
          %v641 = vmax.f32 %v625, 0.0
          %v642 = vmax.f32 %v626, 0.0
          %v643 = vmax.f32 %v627, 0.0
          %v644 = vmax.f32 %v628, 0.0
          %v645 = vmax.f32 %v629, 0.0
          %v646 = vmax.f32 %v630, 0.0
          %v647 = vmax.f32 %v631, 0.0
          %v648 = vmax.f32 %v632, 0.0
          %v649 = vmax.f32 %v633, 0.0
          %v650 = vmax.f32 %v634, 0.0
          %v651 = vmax.f32 %v635, 0.0
          %v652 = vmax.f32 %v636, 0.0
          %v653 = vmax.f32 %v637, 0.0
          %v654 = vmax.f32 %v638, 0.0
          %v655 = vmax.f32 %v639, 0.0
          %v656 = vpack.c.bf16 %v640, %v640
          %v657 = vpack.c.bf16 %v641, %v641
          %v658 = vpack.c.bf16 %v642, %v642
          %v659 = vpack.c.bf16 %v643, %v643
          %v660 = vpack.c.bf16 %v644, %v644
          %v661 = vpack.c.bf16 %v645, %v645
          %v662 = vpack.c.bf16 %v646, %v646
          %v663 = vpack.c.bf16 %v647, %v647
          %v664 = vpack.c.bf16 %v648, %v648
          %v665 = vpack.c.bf16 %v649, %v649
          %v666 = vpack.c.bf16 %v650, %v650
          %v667 = vpack.c.bf16 %v651, %v651
          %v668 = vpack.c.bf16 %v652, %v652
          %v669 = vpack.c.bf16 %v653, %v653
          %v670 = vpack.c.bf16 %v654, %v654
          %v671 = vpack.c.bf16 %v655, %v655
          %672 = vst [vmem:[%s353] sm:$0xf] %v656
          %673 = vst [vmem:[%s353 + $0x4] sm:$0xf] %v657
          %674 = vst [vmem:[%s353 + $0x8] sm:$0xf] %v658
          %675 = vst [vmem:[%s353 + $0xc] sm:$0xf] %v659
          %676 = vst [vmem:[%s353 + $0x10] sm:$0xf] %v660
          %677 = vst [vmem:[%s353 + $0x14] sm:$0xf] %v661
          %678 = vst [vmem:[%s353 + $0x18] sm:$0xf] %v662
          %679 = vst [vmem:[%s353 + $0x1c] sm:$0xf] %v663
          %680 = vst [vmem:[%s353 + $0x20] sm:$0xf] %v664
          %681 = vst [vmem:[%s353 + $0x24] sm:$0xf] %v665
          %682 = vst [vmem:[%s353 + $0x28] sm:$0xf] %v666
          %683 = vst [vmem:[%s353 + $0x2c] sm:$0xf] %v667
          %684 = vst [vmem:[%s353 + $0x30] sm:$0xf] %v668
          %685 = vst [vmem:[%s353 + $0x34] sm:$0xf] %v669
          %686 = vst [vmem:[%s353 + $0x38] sm:$0xf] %v670
          %687 = vst [vmem:[%s353 + $0x3c] sm:$0xf] %v671
        $region81: #{graphmae_forward.7} parent=68 // pred_fallthru
          _
        %s688 = smul.u32 16, %s19
        %p689 = scmp.lt.s32.totalorder %s688, 47
        %s690 = scalar_select %p689, %s688, 47
        %p691 = scmp.lt.s32.totalorder %s20, 0
        %s692 = scalar_select %p691, %s20, 0
        %s693 = sadd.s32 %s692, %s690
        %s694 = smul.addr %s693, 4
        %s695 = scalar_lea.vmem %s3, %s694
        // Predicated region
        $region82: #{graphmae_forward.7} parent=68 // pred_check
          %p696 = pneg %p135
        $region83: #{graphmae_forward.7} parent=68 // pred_check_branch
          %698 = sbr.rel (%p696) target = $region85
        $region84: #{graphmae_forward.7} parent=68 // pred_region
          %s699 = smul.u32 16, %s19
        $region85: #{graphmae_forward.7} parent=68 // pred_fallthru
          _
      $region69: #{graphmae_forward.7} parent=5 // pred_fallthru
        _
      %p700 = scmp.le.s32.totalorder 2, %s9
      // Predicated region
      $region86: #{graphmae_forward.7} parent=5 // pred_check
        %p701 = pneg %p700
      $region87: #{graphmae_forward.7} parent=5 // pred_check_branch
        %703 = sbr.rel (%p701) target = $region89
      $region88: #{graphmae_forward.7} parent=5 // pred_region
        %s704 = ssub.s32 %s9, 2
        // Predicated region
        $region90: #{graphmae_forward.7} parent=88 // pred_check
          %p705 = pneg %p141
        $region91: #{graphmae_forward.7} parent=88 // pred_check_branch
          %707 = sbr.rel (%p705) target = $region93
        $region92: #{graphmae_forward.7} parent=88 // pred_region
          %s708 = smul.u32 16, %s22
          %p709 = scmp.lt.s32.totalorder %s708, 47
          %s710 = scalar_select %p709, %s708, 47
          %p711 = scmp.lt.s32.totalorder %s23, 0
          %s712 = scalar_select %p711, %s23, 0
          %s713 = sadd.s32 %s712, %s710
          %s714 = smul.addr %s713, 4
          %s715 = scalar_lea.vmem %s3, %s714
        $region93: #{graphmae_forward.7} parent=88 // pred_fallthru
          _
      $region89: #{graphmae_forward.7} parent=5 // pred_fallthru
        _
    $region6: #{graphmae_forward.7} parent=1 // loop_footer
      %s13 = sadd.s32 1, %s9
    $region7: #{graphmae_forward.7} parent=1 // loop_footer_branch
      %8 = sbr.rel target = $region3
    $region8: #{graphmae_forward.7} parent=1 // loop_exit
      _

// kernel: graphmae_forward.9
$region0: #{graphmae_forward.9}
  #allocation0 [shape = 'u32[]', space=smem, size = 0x4, offset = 0x4, fixed_abs, tag = 'smem constant byte address 0x4 - core index']
  #allocation1 [shape = 'u32[72,128]{1,0:T(1,128)}', space=vmem, size = 0x9000, scoped, tag = 'internal scratch']
  #allocation2 [shape = 'f32[128,128]{1,0:T(8,128)}', space=vmem, size = 0x10000, scoped, tag = 'scratch operand']
  %s0 = inlined_call_operand.vmem [shape: bf16[384,384], index: 0, kind: input, shape index: {}]
  %s1 = inlined_call_operand.vmem [shape: bf16[384,128], index: 1, kind: input, shape index: {}]
  %s2 = inlined_call_operand.vmem [shape: f32[1,128], index: 2, kind: input, shape index: {}]
  %s3 = inlined_call_operand.vmem [shape: f32[384,128], index: 3, kind: output, shape index: {}]
  %s4 = sld [smem:[#allocation0]]
  $region94: #{graphmae_forward.9} parent=0
    _
  %s6 = ssub.s32 1, %s4
  %s7 = scalar_select 0, %s6, %s4
  $region1: #{graphmae_forward.9} parent=0
    #allocation3 [shape = 'u8[65536]{0}', space=vmem, size = 0x10000, scoped, tag = 'input window, operand 0']
    loop: start=0, step=1, limit=11
    $region2: #{graphmae_forward.9} parent=1 // loop_pre_header
      _
    $region3: #{graphmae_forward.9} parent=1 // loop_header
      %s9 = sphi 0, %s13
      %p10 = scmp.ge.s32.totalorder %s9, 11
      %s16 = sphi 0, %s35
      %s17 = sphi 0, %s31
      %s18 = sphi 0, %s27
      %s19 = sphi 0, %s16
      %s20 = sphi 0, %s17
      %s21 = sphi 0, %s18
      %s22 = sphi 0, %s19
      %s23 = sphi 0, %s20
      %s24 = sphi 0, %s21
      %s40 = sphi 0, %s42
      %s43 = sphi 0, %s40
      %s44 = sphi 0, %s43
      %s60 = sphi 0, %s44
      %s68 = sphi 0, %s70
      %s71 = sphi 0, %s68
      %s72 = sphi 0, %s71
      %s88 = sphi 0, %s72
      %s94 = sphi 0, %s96
      %s97 = sphi 0, %s94
      %s98 = sphi 0, %s97
      %s114 = sphi 0, %s98
      %s122 = sphi 0, %s124
      %s125 = sphi 0, %s122
      %s126 = sphi 0, %s125
      %s142 = sphi 0, %s126
    $region4: #{graphmae_forward.9} parent=1 // loop_header_branch
      %12 = sbr.rel (%p10) target = $region8
    $region5: #{graphmae_forward.9} parent=1 // loop_body
      %s14 = ssub.s32 %s9, 1
      %s15 = ssub.s32 %s9, 2
      %s25 = sadd.s32 1, %s18
      %p26 = scmp.ge.s32.totalorder %s25, 3
      %s27 = scalar_select %p26, 0, %s25
      %s28 = sadd.s32 1, %s17
      %s29 = scalar_select %p26, %s28, %s17
      %p30 = scmp.ge.s32.totalorder %s29, 1
      %s31 = scalar_select %p30, 0, %s29
      %s32 = sadd.s32 1, %s16
      %s33 = scalar_select %p30, %s32, %s16
      %p34 = scmp.ge.s32.totalorder %s33, 3
      %s35 = scalar_select %p34, 0, %s33
      %s36 = ssub.s32 %s16, %s35
      %s37 = ssub.s32 %s18, %s27
      %s38 = sor.u32 %s36, %s37
      %p39 = scmp.eq.s32.totalorder %s38, 0
      %s41 = sadd.s32 %s40, 1
      %s42 = scalar_select %p39, %s40, %s41
      %p45 = pneg %p39
      %p46 = scmp.eq.s32.totalorder %s9, 8
      %p47 = por %p45, %p46
      %p48 = scmp.ne.s32.totalorder %s40, %s43
      %p49 = scmp.eq.s32.totalorder %s9, 0
      %p50 = por %p48, %p49
      %p51 = scmp.ne.s32.totalorder %s40, %s43
      %p52 = scmp.eq.s32.totalorder %s14, 8
      %p53 = por %p51, %p52
      %p54 = scmp.ne.s32.totalorder %s43, %s44
      %p55 = scmp.eq.s32.totalorder %s14, 0
      %p56 = por %p54, %p55
      %p57 = scmp.ne.s32.totalorder %s43, %s44
      %p58 = scmp.eq.s32.totalorder %s15, 8
      %p59 = por %p57, %p58
      %p61 = scmp.ne.s32.totalorder %s44, %s60
      %p62 = scmp.eq.s32.totalorder %s15, 0
      %p63 = por %p61, %p62
      %s64 = ssub.s32 %s18, %s27
      %s65 = ssub.s32 %s17, %s31
      %s66 = sor.u32 %s64, %s65
      %p67 = scmp.eq.s32.totalorder %s66, 0
      %s69 = sadd.s32 %s68, 1
      %s70 = scalar_select %p67, %s68, %s69
      %p73 = pneg %p67
      %p74 = scmp.eq.s32.totalorder %s9, 8
      %p75 = por %p73, %p74
      %p76 = scmp.ne.s32.totalorder %s68, %s71
      %p77 = scmp.eq.s32.totalorder %s9, 0
      %p78 = por %p76, %p77
      %p79 = scmp.ne.s32.totalorder %s68, %s71
      %p80 = scmp.eq.s32.totalorder %s14, 8
      %p81 = por %p79, %p80
      %p82 = scmp.ne.s32.totalorder %s71, %s72
      %p83 = scmp.eq.s32.totalorder %s14, 0
      %p84 = por %p82, %p83
      %p85 = scmp.ne.s32.totalorder %s71, %s72
      %p86 = scmp.eq.s32.totalorder %s15, 8
      %p87 = por %p85, %p86
      %p89 = scmp.ne.s32.totalorder %s72, %s88
      %p90 = scmp.eq.s32.totalorder %s15, 0
      %p91 = por %p89, %p90
      %s92 = ssub.s32 %s17, %s31
      %p93 = scmp.eq.s32.totalorder %s92, 0
      %s95 = sadd.s32 %s94, 1
      %s96 = scalar_select %p93, %s94, %s95
      %p99 = pneg %p93
      %p100 = scmp.eq.s32.totalorder %s9, 8
      %p101 = por %p99, %p100
      %p102 = scmp.ne.s32.totalorder %s94, %s97
      %p103 = scmp.eq.s32.totalorder %s9, 0
      %p104 = por %p102, %p103
      %p105 = scmp.ne.s32.totalorder %s94, %s97
      %p106 = scmp.eq.s32.totalorder %s14, 8
      %p107 = por %p105, %p106
      %p108 = scmp.ne.s32.totalorder %s97, %s98
      %p109 = scmp.eq.s32.totalorder %s14, 0
      %p110 = por %p108, %p109
      %p111 = scmp.ne.s32.totalorder %s97, %s98
      %p112 = scmp.eq.s32.totalorder %s15, 8
      %p113 = por %p111, %p112
      %p115 = scmp.ne.s32.totalorder %s98, %s114
      %p116 = scmp.eq.s32.totalorder %s15, 0
      %p117 = por %p115, %p116
      %s118 = ssub.s32 %s16, %s35
      %s119 = ssub.s32 %s17, %s31
      %s120 = sor.u32 %s118, %s119
      %p121 = scmp.eq.s32.totalorder %s120, 0
      %s123 = sadd.s32 %s122, 1
      %s124 = scalar_select %p121, %s122, %s123
      %p127 = pneg %p121
      %p128 = scmp.eq.s32.totalorder %s9, 8
      %p129 = por %p127, %p128
      %p130 = scmp.ne.s32.totalorder %s122, %s125
      %p131 = scmp.eq.s32.totalorder %s9, 0
      %p132 = por %p130, %p131
      %p133 = scmp.ne.s32.totalorder %s122, %s125
      %p134 = scmp.eq.s32.totalorder %s14, 8
      %p135 = por %p133, %p134
      %p136 = scmp.ne.s32.totalorder %s125, %s126
      %p137 = scmp.eq.s32.totalorder %s14, 0
      %p138 = por %p136, %p137
      %p139 = scmp.ne.s32.totalorder %s125, %s126
      %p140 = scmp.eq.s32.totalorder %s15, 8
      %p141 = por %p139, %p140
      %p143 = scmp.ne.s32.totalorder %s126, %s142
      %p144 = scmp.eq.s32.totalorder %s15, 0
      %p145 = por %p143, %p144
      %p146 = scmp.le.s32.totalorder 1, %s9
      %p147 = scmp.lt.s32.totalorder %s9, 10
      %p148 = pnand %p146, %p147
      %p149 = pneg %p148
      // Predicated region
      $region9: #{graphmae_forward.9} parent=5 // pred_check
        _
      $region10: #{graphmae_forward.9} parent=5 // pred_check_branch
        %151 = sbr.rel (%p148) target = $region12
      $region11: #{graphmae_forward.9} parent=5 // pred_region
        %s152 = ssub.s32 %s9, 1
        // Predicated region
        $region13: #{graphmae_forward.9} parent=11 // pred_check
          %p153 = pneg %p110
        $region14: #{graphmae_forward.9} parent=11 // pred_check_branch
          %155 = sbr.rel (%p153) target = $region16
        $region15: #{graphmae_forward.9} parent=11 // pred_region
          %p156 = scmp.lt.s32.totalorder %s20, 0
          %s157 = scalar_select %p156, %s20, 0
          %s158 = scalar_lea.vmem %s2, %s157
        $region16: #{graphmae_forward.9} parent=11 // pred_fallthru
          _
      $region12: #{graphmae_forward.9} parent=5 // pred_fallthru
        _
      %p159 = scmp.lt.s32.totalorder %s9, 9
      // Predicated region
      $region17: #{graphmae_forward.9} parent=5 // pred_check
        %p160 = pneg %p159
      $region18: #{graphmae_forward.9} parent=5 // pred_check_branch
        %162 = sbr.rel (%p160) target = $region20
      $region19: #{graphmae_forward.9} parent=5 // pred_region
        // Predicated region
        $region21: #{graphmae_forward.9} parent=19 // pred_check
          %p163 = pneg %p50
        $region22: #{graphmae_forward.9} parent=19 // pred_check_branch
          %165 = sbr.rel (%p163) target = $region24
        $region23: #{graphmae_forward.9} parent=19 // pred_region
          %s166 = sand.u32 %s40, 1
          %s167 = sand.u32 %s40, 1
          %s168 = smul.addr %s167, 64
          %s169 = scalar_lea.vmem [#allocation3], %s168
          %s170 = smul.u32 16, %s16
          %s171 = smul.addr %s170, 3
          %s172 = sadd.s32 %s18, %s171
          %s173 = smul.addr %s172, 4
          %s174 = scalar_lea.vmem %s0, %s173
          // Predicated region
          $region25: #{graphmae_forward.9} parent=23 // pred_check
            _
          $region26: #{graphmae_forward.9} parent=23 // pred_check_branch
            %176 = sbr.rel (0) target = $region28
          $region27: #{graphmae_forward.9} parent=23 // pred_region
            // Predicated region
            $region29: #{graphmae_forward.9} parent=27 // pred_check
              _
            $region30: #{graphmae_forward.9} parent=27 // pred_check_branch
              %178 = sbr.rel target = $region32
            $region31: #{graphmae_forward.9} parent=27 // pred_region
              // Predicated region
              $region44: #{graphmae_forward.9} parent=31 // pred_check
                _
              $region45: #{graphmae_forward.9} parent=31 // pred_check_branch
                %224 = sbr.rel (0) target = $region47
              $region46: #{graphmae_forward.9} parent=31 // pred_region
                loop: start=0, step=1, limit=1
                $region48: #{graphmae_forward.9} parent=46 // loop_pre_header
                  _
                $region49: #{graphmae_forward.9} parent=46 // loop_header
                  %s226 = sphi 0, %s230
                  %p227 = scmp.ge.s32.totalorder %s226, 1
                  %s231 = sphi %s174, %s174
                  %s232 = sphi %s169, %s169
                $region50: #{graphmae_forward.9} parent=46 // loop_header_branch
                  %229 = sbr.rel (%p227) target = $region54
                $region51: #{graphmae_forward.9} parent=46 // loop_body
                  _
                $region52: #{graphmae_forward.9} parent=46 // loop_footer
                  %s230 = sadd.s32 1, %s226
                $region53: #{graphmae_forward.9} parent=46 // loop_footer_branch
                  %225 = sbr.rel target = $region49
                $region54: #{graphmae_forward.9} parent=46 // loop_exit
                  _
                %s234 = ssub.s32 16, 1
                loop: start=0, step=1, limit=1
                $region55: #{graphmae_forward.9} parent=46 // loop_pre_header
                  _
                $region56: #{graphmae_forward.9} parent=46 // loop_header
                  %s236 = sphi 0, %s240
                  %p237 = scmp.ge.s32.totalorder %s236, 1
                  %s241 = sphi %s174, %s174
                  %s242 = sphi %s169, %s169
                $region57: #{graphmae_forward.9} parent=46 // loop_header_branch
                  %239 = sbr.rel (%p237) target = $region61
                $region58: #{graphmae_forward.9} parent=46 // loop_body
                  %v243 = vld [vmem:[%s241] sm:%s234]
                  %244 = vst [vmem:[%s242] sm:%s234] %v243
                  %v245 = vld [vmem:[%s241 + $0xc] sm:%s234]
                  %246 = vst [vmem:[%s242 + $0x4] sm:%s234] %v245
                  %v247 = vld [vmem:[%s241 + $0x18] sm:%s234]
                  %248 = vst [vmem:[%s242 + $0x8] sm:%s234] %v247
                  %v249 = vld [vmem:[%s241 + $0x24] sm:%s234]
                  %250 = vst [vmem:[%s242 + $0xc] sm:%s234] %v249
                  %v251 = vld [vmem:[%s241 + $0x30] sm:%s234]
                  %252 = vst [vmem:[%s242 + $0x10] sm:%s234] %v251
                  %v253 = vld [vmem:[%s241 + $0x3c] sm:%s234]
                  %254 = vst [vmem:[%s242 + $0x14] sm:%s234] %v253
                  %v255 = vld [vmem:[%s241 + $0x48] sm:%s234]
                  %256 = vst [vmem:[%s242 + $0x18] sm:%s234] %v255
                  %v257 = vld [vmem:[%s241 + $0x54] sm:%s234]
                  %258 = vst [vmem:[%s242 + $0x1c] sm:%s234] %v257
                  %v259 = vld [vmem:[%s241 + $0x60] sm:%s234]
                  %260 = vst [vmem:[%s242 + $0x20] sm:%s234] %v259
                  %v261 = vld [vmem:[%s241 + $0x6c] sm:%s234]
                  %262 = vst [vmem:[%s242 + $0x24] sm:%s234] %v261
                  %v263 = vld [vmem:[%s241 + $0x78] sm:%s234]
                  %264 = vst [vmem:[%s242 + $0x28] sm:%s234] %v263
                  %v265 = vld [vmem:[%s241 + $0x84] sm:%s234]
                  %266 = vst [vmem:[%s242 + $0x2c] sm:%s234] %v265
                  %v267 = vld [vmem:[%s241 + $0x90] sm:%s234]
                  %268 = vst [vmem:[%s242 + $0x30] sm:%s234] %v267
                  %v269 = vld [vmem:[%s241 + $0x9c] sm:%s234]
                  %270 = vst [vmem:[%s242 + $0x34] sm:%s234] %v269
                  %v271 = vld [vmem:[%s241 + $0xa8] sm:%s234]
                  %272 = vst [vmem:[%s242 + $0x38] sm:%s234] %v271
                  %v273 = vld [vmem:[%s241 + $0xb4] sm:%s234]
                  %274 = vst [vmem:[%s242 + $0x3c] sm:%s234] %v273
                $region59: #{graphmae_forward.9} parent=46 // loop_footer
                  %s240 = sadd.s32 1, %s236
                $region60: #{graphmae_forward.9} parent=46 // loop_footer_branch
                  %235 = sbr.rel target = $region56
                $region61: #{graphmae_forward.9} parent=46 // loop_exit
                  _
              $region47: #{graphmae_forward.9} parent=31 // pred_fallthru
                _
            $region32: #{graphmae_forward.9} parent=27 // pred_fallthru
              _
            // Predicated region
            $region33: #{graphmae_forward.9} parent=27 // pred_check
              _
            $region34: #{graphmae_forward.9} parent=27 // pred_check_branch
              %180 = sbr.rel (0) target = $region36
            $region35: #{graphmae_forward.9} parent=27 // pred_region
              %s182 = ssub.s32 16, 1
              loop: start=0, step=1, limit=1
              $region37: #{graphmae_forward.9} parent=35 // loop_pre_header
                _
              $region38: #{graphmae_forward.9} parent=35 // loop_header
                %s184 = sphi 0, %s188
                %p185 = scmp.ge.s32.totalorder %s184, 1
                %s189 = sphi %s174, %s174
                %s190 = sphi %s169, %s169
              $region39: #{graphmae_forward.9} parent=35 // loop_header_branch
                %187 = sbr.rel (%p185) target = $region43
              $region40: #{graphmae_forward.9} parent=35 // loop_body
                %v191 = vld [vmem:[%s189] sm:%s182]
                %192 = vst [vmem:[%s190] sm:%s182] %v191
                %v193 = vld [vmem:[%s189 + $0xc] sm:%s182]
                %194 = vst [vmem:[%s190 + $0x4] sm:%s182] %v193
                %v195 = vld [vmem:[%s189 + $0x18] sm:%s182]
                %196 = vst [vmem:[%s190 + $0x8] sm:%s182] %v195
                %v197 = vld [vmem:[%s189 + $0x24] sm:%s182]
                %198 = vst [vmem:[%s190 + $0xc] sm:%s182] %v197
                %v199 = vld [vmem:[%s189 + $0x30] sm:%s182]
                %200 = vst [vmem:[%s190 + $0x10] sm:%s182] %v199
                %v201 = vld [vmem:[%s189 + $0x3c] sm:%s182]
                %202 = vst [vmem:[%s190 + $0x14] sm:%s182] %v201
                %v203 = vld [vmem:[%s189 + $0x48] sm:%s182]
                %204 = vst [vmem:[%s190 + $0x18] sm:%s182] %v203
                %v205 = vld [vmem:[%s189 + $0x54] sm:%s182]
                %206 = vst [vmem:[%s190 + $0x1c] sm:%s182] %v205
                %v207 = vld [vmem:[%s189 + $0x60] sm:%s182]
                %208 = vst [vmem:[%s190 + $0x20] sm:%s182] %v207
                %v209 = vld [vmem:[%s189 + $0x6c] sm:%s182]
                %210 = vst [vmem:[%s190 + $0x24] sm:%s182] %v209
                %v211 = vld [vmem:[%s189 + $0x78] sm:%s182]
                %212 = vst [vmem:[%s190 + $0x28] sm:%s182] %v211
                %v213 = vld [vmem:[%s189 + $0x84] sm:%s182]
                %214 = vst [vmem:[%s190 + $0x2c] sm:%s182] %v213
                %v215 = vld [vmem:[%s189 + $0x90] sm:%s182]
                %216 = vst [vmem:[%s190 + $0x30] sm:%s182] %v215
                %v217 = vld [vmem:[%s189 + $0x9c] sm:%s182]
                %218 = vst [vmem:[%s190 + $0x34] sm:%s182] %v217
                %v219 = vld [vmem:[%s189 + $0xa8] sm:%s182]
                %220 = vst [vmem:[%s190 + $0x38] sm:%s182] %v219
                %v221 = vld [vmem:[%s189 + $0xb4] sm:%s182]
                %222 = vst [vmem:[%s190 + $0x3c] sm:%s182] %v221
              $region41: #{graphmae_forward.9} parent=35 // loop_footer
                %s188 = sadd.s32 1, %s184
              $region42: #{graphmae_forward.9} parent=35 // loop_footer_branch
                %183 = sbr.rel target = $region38
              $region43: #{graphmae_forward.9} parent=35 // loop_exit
                _
            $region36: #{graphmae_forward.9} parent=27 // pred_fallthru
              _
          $region28: #{graphmae_forward.9} parent=23 // pred_fallthru
            _
          %275 = vnop
        $region24: #{graphmae_forward.9} parent=19 // pred_fallthru
          _
        // Predicated region
        $region62: #{graphmae_forward.9} parent=19 // pred_check
          %p276 = pneg %p78
        $region63: #{graphmae_forward.9} parent=19 // pred_check_branch
          %278 = sbr.rel (%p276) target = $region65
        $region64: #{graphmae_forward.9} parent=19 // pred_region
          %s279 = smul.u32 16, %s18
          %p280 = scmp.lt.s32.totalorder %s279, 47
          %s281 = scalar_select %p280, %s279, 47
          %p282 = scmp.lt.s32.totalorder %s17, 0
          %s283 = scalar_select %p282, %s17, 0
          %s284 = sadd.s32 %s283, %s281
          %s285 = smul.addr %s284, 4
          %s286 = scalar_lea.vmem %s1, %s285
          %s287 = smul.u32 16, %s18
        $region65: #{graphmae_forward.9} parent=19 // pred_fallthru
          _
      $region20: #{graphmae_forward.9} parent=5 // pred_fallthru
        _
      %p288 = scmp.le.s32.totalorder 1, %s9
      %p289 = scmp.lt.s32.totalorder %s9, 10
      %p290 = pnand %p288, %p289
      %p291 = pneg %p290
      // Predicated region
      $region66: #{graphmae_forward.9} parent=5 // pred_check
        _
      $region67: #{graphmae_forward.9} parent=5 // pred_check_branch
        %293 = sbr.rel (%p290) target = $region69
      $region68: #{graphmae_forward.9} parent=5 // pred_region
        %s294 = ssub.s32 %s9, 1
        %s295 = sand.u32 %s43, 1
        %s296 = sand.u32 %s43, 1
        %s297 = smul.addr %s296, 64
        %s298 = scalar_lea.vmem [#allocation3], %s297
        // Predicated region
        $region70: #{graphmae_forward.9} parent=68 // pred_check
          %p299 = pneg %p56
        $region71: #{graphmae_forward.9} parent=68 // pred_check_branch
          %301 = sbr.rel (%p299) target = $region73
        $region72: #{graphmae_forward.9} parent=68 // pred_region
          _
        $region73: #{graphmae_forward.9} parent=68 // pred_fallthru
          _
        %s302 = sand.u32 %s43, 1
        %s303 = sand.u32 %s43, 1
        %s304 = smul.addr %s303, 64
        %s305 = scalar_lea.vmem [#allocation3], %s304
        %p306 = pneg %p56
        %p307 = pneg %p53
        %s308 = smul.u32 16, %s21
        %p309 = scmp.lt.s32.totalorder %s308, 47
        %s310 = scalar_select %p309, %s308, 47
        %p311 = scmp.lt.s32.totalorder %s20, 0
        %s312 = scalar_select %p311, %s20, 0
        %s313 = sadd.s32 %s312, %s310
        %s314 = smul.addr %s313, 4
        %s315 = scalar_lea.vmem %s1, %s314
        %p316 = pneg %p84
        %p317 = pneg %p81
        %p318 = scmp.lt.s32.totalorder %s20, 0
        %s319 = scalar_select %p318, %s20, 0
        %s320 = scalar_lea.vmem %s2, %s319
        %p321 = pneg %p110
        %p322 = pneg %p107
        %p323 = pneg %p138
        %p324 = pneg %p135
        %s325 = smul.u32 16, %s19
        %p326 = scmp.lt.s32.totalorder %s325, 47
        %s327 = scalar_select %p326, %s325, 47
        %p328 = scmp.lt.s32.totalorder %s20, 0
        %s329 = scalar_select %p328, %s20, 0
        %s330 = sadd.s32 %s329, %s327
        %s331 = smul.addr %s330, 8
        %s332 = scalar_lea.vmem %s3, %s331
        %s333 = smul.u32 16, %s19
        %s334 = smul.u32 16, %s21
        %p335 = scmp.lt.s32.totalorder %s334, 47
        %s336 = scalar_select %p335, %s334, 47
        %p337 = scmp.lt.s32.totalorder %s20, 0
        %s338 = scalar_select %p337, %s20, 0
        %s339 = sadd.s32 %s338, %s336
        %s340 = smul.addr %s339, 4
        %s341 = scalar_lea.vmem %s1, %s340
        %s342 = smul.u32 16, %s21
        %p343 = scmp.lt.s32.totalorder %s20, 0
        %s344 = scalar_select %p343, %s20, 0
        %s345 = scalar_lea.vmem %s2, %s344
        %s346 = smul.u32 16, %s19
        %p347 = scmp.lt.s32.totalorder %s346, 47
        %s348 = scalar_select %p347, %s346, 47
        %p349 = scmp.lt.s32.totalorder %s20, 0
        %s350 = scalar_select %p349, %s20, 0
        %s351 = sadd.s32 %s350, %s348
        %s352 = smul.addr %s351, 8
        %s353 = scalar_lea.vmem %s3, %s352
        %s354 = smul.u32 16, %s19
        %p355 = scmp.eq.s32.totalorder %s21, 0
        // Predicated region
        $region74: #{graphmae_forward.9} parent=68 // pred_check
          %p356 = pneg %p355
        $region75: #{graphmae_forward.9} parent=68 // pred_check_branch
          %358 = sbr.rel (%p356) target = $region77
        $region76: #{graphmae_forward.9} parent=68 // pred_region
          %359 = vst [vmem:[#allocation2] sm:$0xff] 0.0
          %360 = vst [vmem:[#allocation2 + $0x8] sm:$0xff] 0.0
          %361 = vst [vmem:[#allocation2 + $0x10] sm:$0xff] 0.0
          %362 = vst [vmem:[#allocation2 + $0x18] sm:$0xff] 0.0
          %363 = vst [vmem:[#allocation2 + $0x20] sm:$0xff] 0.0
          %364 = vst [vmem:[#allocation2 + $0x28] sm:$0xff] 0.0
          %365 = vst [vmem:[#allocation2 + $0x30] sm:$0xff] 0.0
          %366 = vst [vmem:[#allocation2 + $0x38] sm:$0xff] 0.0
          %367 = vst [vmem:[#allocation2 + $0x40] sm:$0xff] 0.0
          %368 = vst [vmem:[#allocation2 + $0x48] sm:$0xff] 0.0
          %369 = vst [vmem:[#allocation2 + $0x50] sm:$0xff] 0.0
          %370 = vst [vmem:[#allocation2 + $0x58] sm:$0xff] 0.0
          %371 = vst [vmem:[#allocation2 + $0x60] sm:$0xff] 0.0
          %372 = vst [vmem:[#allocation2 + $0x68] sm:$0xff] 0.0
          %373 = vst [vmem:[#allocation2 + $0x70] sm:$0xff] 0.0
          %374 = vst [vmem:[#allocation2 + $0x78] sm:$0xff] 0.0
        $region77: #{graphmae_forward.9} parent=68 // pred_fallthru
          _
        %v375 = vld [vmem:[%s298] sm:$0xf]
        %v376 = vld [vmem:[%s298 + $0x4] sm:$0xf]
        %v377 = vld [vmem:[%s298 + $0x8] sm:$0xf]
        %v378 = vld [vmem:[%s298 + $0xc] sm:$0xf]
        %v379 = vld [vmem:[%s298 + $0x10] sm:$0xf]
        %v380 = vld [vmem:[%s298 + $0x14] sm:$0xf]
        %v381 = vld [vmem:[%s298 + $0x18] sm:$0xf]
        %v382 = vld [vmem:[%s298 + $0x1c] sm:$0xf]
        %v383 = vld [vmem:[%s298 + $0x20] sm:$0xf]
        %v384 = vld [vmem:[%s298 + $0x24] sm:$0xf]
        %v385 = vld [vmem:[%s298 + $0x28] sm:$0xf]
        %v386 = vld [vmem:[%s298 + $0x2c] sm:$0xf]
        %v387 = vld [vmem:[%s298 + $0x30] sm:$0xf]
        %v388 = vld [vmem:[%s298 + $0x34] sm:$0xf]
        %v389 = vld [vmem:[%s298 + $0x38] sm:$0xf]
        %v390 = vld [vmem:[%s298 + $0x3c] sm:$0xf]
        %v391 = vld [vmem:[#allocation2] sm:$0xff]
        %v392 = vld [vmem:[#allocation2 + $0x8] sm:$0xff]
        %v393 = vld [vmem:[#allocation2 + $0x10] sm:$0xff]
        %v394 = vld [vmem:[#allocation2 + $0x18] sm:$0xff]
        %v395 = vld [vmem:[#allocation2 + $0x20] sm:$0xff]
        %v396 = vld [vmem:[#allocation2 + $0x28] sm:$0xff]
        %v397 = vld [vmem:[#allocation2 + $0x30] sm:$0xff]
        %v398 = vld [vmem:[#allocation2 + $0x38] sm:$0xff]
        %v399 = vld [vmem:[#allocation2 + $0x40] sm:$0xff]
        %v400 = vld [vmem:[#allocation2 + $0x48] sm:$0xff]
        %v401 = vld [vmem:[#allocation2 + $0x50] sm:$0xff]
        %v402 = vld [vmem:[#allocation2 + $0x58] sm:$0xff]
        %v403 = vld [vmem:[#allocation2 + $0x60] sm:$0xff]
        %v404 = vld [vmem:[#allocation2 + $0x68] sm:$0xff]
        %v405 = vld [vmem:[#allocation2 + $0x70] sm:$0xff]
        %v406 = vld [vmem:[#allocation2 + $0x78] sm:$0xff]
        %v407 = vld [vmem:[%s341] sm:$0xf]
        %v408 = vld [vmem:[%s341 + $0x4] sm:$0xf]
        %v409 = vld [vmem:[%s341 + $0x8] sm:$0xf]
        %v410 = vld [vmem:[%s341 + $0xc] sm:$0xf]
        %v411 = vld [vmem:[%s341 + $0x10] sm:$0xf]
        %v412 = vld [vmem:[%s341 + $0x14] sm:$0xf]
        %v413 = vld [vmem:[%s341 + $0x18] sm:$0xf]
        %v414 = vld [vmem:[%s341 + $0x1c] sm:$0xf]
        %v415 = vld [vmem:[%s341 + $0x20] sm:$0xf]
        %v416 = vld [vmem:[%s341 + $0x24] sm:$0xf]
        %v417 = vld [vmem:[%s341 + $0x28] sm:$0xf]
        %v418 = vld [vmem:[%s341 + $0x2c] sm:$0xf]
        %v419 = vld [vmem:[%s341 + $0x30] sm:$0xf]
        %v420 = vld [vmem:[%s341 + $0x34] sm:$0xf]
        %v421 = vld [vmem:[%s341 + $0x38] sm:$0xf]
        %v422 = vld [vmem:[%s341 + $0x3c] sm:$0xf]
        %v439 = vunpack.c.l.b16 %v375
        %v440 = vunpack.c.l.b16 %v376
        %v441 = vunpack.c.l.b16 %v377
        %v442 = vunpack.c.l.b16 %v378
        %v443 = vunpack.c.l.b16 %v379
        %v444 = vunpack.c.l.b16 %v380
        %v445 = vunpack.c.l.b16 %v381
        %v446 = vunpack.c.l.b16 %v382
        %v447 = vunpack.c.l.b16 %v383
        %v448 = vunpack.c.l.b16 %v384
        %v449 = vunpack.c.l.b16 %v385
        %v450 = vunpack.c.l.b16 %v386
        %v451 = vunpack.c.l.b16 %v387
        %v452 = vunpack.c.l.b16 %v388
        %v453 = vunpack.c.l.b16 %v389
        %v454 = vunpack.c.l.b16 %v390
        %v455 = vpack.c.b16 %v440, %v439
        %v456 = vpack.c.b16 %v442, %v441
        %v457 = vpack.c.b16 %v444, %v443
        %v458 = vpack.c.b16 %v446, %v445
        %v459 = vpack.c.b16 %v448, %v447
        %v460 = vpack.c.b16 %v450, %v449
        %v461 = vpack.c.b16 %v452, %v451
        %v462 = vpack.c.b16 %v454, %v453
        %v487 = vunpack.c.l.b16 %v407
        %v488 = vunpack.c.l.b16 %v408
        %v489 = vunpack.c.l.b16 %v409
        %v490 = vunpack.c.l.b16 %v410
        %v491 = vunpack.c.l.b16 %v411
        %v492 = vunpack.c.l.b16 %v412
        %v493 = vunpack.c.l.b16 %v413
        %v494 = vunpack.c.l.b16 %v414
        %v495 = vunpack.c.l.b16 %v415
        %v496 = vunpack.c.l.b16 %v416
        %v497 = vunpack.c.l.b16 %v417
        %v498 = vunpack.c.l.b16 %v418
        %v499 = vunpack.c.l.b16 %v419
        %v500 = vunpack.c.l.b16 %v420
        %v501 = vunpack.c.l.b16 %v421
        %v502 = vunpack.c.l.b16 %v422
        %v503 = vpack.c.b16 %v488, %v487
        %v504 = vpack.c.b16 %v490, %v489
        %v505 = vpack.c.b16 %v492, %v491
        %v506 = vpack.c.b16 %v494, %v493
        %v507 = vpack.c.b16 %v496, %v495
        %v508 = vpack.c.b16 %v498, %v497
        %v509 = vpack.c.b16 %v500, %v499
        %v510 = vpack.c.b16 %v502, %v501
        %519 = vmatpush.bf16.msra.mxu0 %v510
        %520 = vmatpush.bf16.msra.mxu0 %v509
        %521 = vmatpush.bf16.msra.mxu0 %v508
        %522 = vmatpush.bf16.msra.mxu0 %v507
        %523 = vmatpush.bf16.msra.mxu0 %v506
        %524 = vmatpush.bf16.msra.mxu0 %v505
        %525 = vmatpush.bf16.msra.mxu0 %v504
        %526 = vmatpush.bf16.msra.mxu0 %v503
        %527 = vmatmul.bf16.gmra.mxu0 %v455
        %v528 = vpop.f32.mrf.mxu0
        %v529 = vadd.f32 0.0, %v528
        %v530 = vpop.f32.mrf.mxu0
        %v531 = vadd.f32 0.0, %v530
        %532 = vmatmul.bf16.gmra.mxu0 %v456
        %v533 = vpop.f32.mrf.mxu0
        %v534 = vadd.f32 0.0, %v533
        %v535 = vpop.f32.mrf.mxu0
        %v536 = vadd.f32 0.0, %v535
        %537 = vmatmul.bf16.gmra.mxu0 %v457
        %v538 = vpop.f32.mrf.mxu0
        %v539 = vadd.f32 0.0, %v538
        %v540 = vpop.f32.mrf.mxu0
        %v541 = vadd.f32 0.0, %v540
        %542 = vmatmul.bf16.gmra.mxu0 %v458
        %v543 = vpop.f32.mrf.mxu0
        %v544 = vadd.f32 0.0, %v543
        %v545 = vpop.f32.mrf.mxu0
        %v546 = vadd.f32 0.0, %v545
        %547 = vmatmul.bf16.gmra.mxu0 %v459
        %v548 = vpop.f32.mrf.mxu0
        %v549 = vadd.f32 0.0, %v548
        %v550 = vpop.f32.mrf.mxu0
        %v551 = vadd.f32 0.0, %v550
        %552 = vmatmul.bf16.gmra.mxu0 %v460
        %v553 = vpop.f32.mrf.mxu0
        %v554 = vadd.f32 0.0, %v553
        %v555 = vpop.f32.mrf.mxu0
        %v556 = vadd.f32 0.0, %v555
        %557 = vmatmul.bf16.gmra.mxu0 %v461
        %v558 = vpop.f32.mrf.mxu0
        %v559 = vadd.f32 0.0, %v558
        %v560 = vpop.f32.mrf.mxu0
        %v561 = vadd.f32 0.0, %v560
        %562 = vmatmul.bf16.gmra.mxu0 %v462
        %v563 = vpop.f32.mrf.mxu0
        %v564 = vadd.f32 0.0, %v563
        %v565 = vpop.f32.mrf.mxu0
        %v566 = vadd.f32 0.0, %v565
        %567 = vdwg.mxu0
        %v568 = vadd.f32 %v391, %v529
        %v569 = vadd.f32 %v392, %v531
        %v570 = vadd.f32 %v393, %v534
        %v571 = vadd.f32 %v394, %v536
        %v572 = vadd.f32 %v395, %v539
        %v573 = vadd.f32 %v396, %v541
        %v574 = vadd.f32 %v397, %v544
        %v575 = vadd.f32 %v398, %v546
        %v576 = vadd.f32 %v399, %v549
        %v577 = vadd.f32 %v400, %v551
        %v578 = vadd.f32 %v401, %v554
        %v579 = vadd.f32 %v402, %v556
        %v580 = vadd.f32 %v403, %v559
        %v581 = vadd.f32 %v404, %v561
        %v582 = vadd.f32 %v405, %v564
        %v583 = vadd.f32 %v406, %v566
        %584 = vst [vmem:[#allocation2] sm:$0xff] %v568
        %585 = vst [vmem:[#allocation2 + $0x8] sm:$0xff] %v569
        %586 = vst [vmem:[#allocation2 + $0x10] sm:$0xff] %v570
        %587 = vst [vmem:[#allocation2 + $0x18] sm:$0xff] %v571
        %588 = vst [vmem:[#allocation2 + $0x20] sm:$0xff] %v572
        %589 = vst [vmem:[#allocation2 + $0x28] sm:$0xff] %v573
        %590 = vst [vmem:[#allocation2 + $0x30] sm:$0xff] %v574
        %591 = vst [vmem:[#allocation2 + $0x38] sm:$0xff] %v575
        %592 = vst [vmem:[#allocation2 + $0x40] sm:$0xff] %v576
        %593 = vst [vmem:[#allocation2 + $0x48] sm:$0xff] %v577
        %594 = vst [vmem:[#allocation2 + $0x50] sm:$0xff] %v578
        %595 = vst [vmem:[#allocation2 + $0x58] sm:$0xff] %v579
        %596 = vst [vmem:[#allocation2 + $0x60] sm:$0xff] %v580
        %597 = vst [vmem:[#allocation2 + $0x68] sm:$0xff] %v581
        %598 = vst [vmem:[#allocation2 + $0x70] sm:$0xff] %v582
        %599 = vst [vmem:[#allocation2 + $0x78] sm:$0xff] %v583
        %p600 = scmp.eq.s32.totalorder %s21, 2
        // Predicated region
        $region78: #{graphmae_forward.9} parent=68 // pred_check
          %p601 = pneg %p600
        $region79: #{graphmae_forward.9} parent=68 // pred_check_branch
          %603 = sbr.rel (%p601) target = $region81
        $region80: #{graphmae_forward.9} parent=68 // pred_region
          %v604 = vld [vmem:[#allocation2] sm:$0xff]
          %v605 = vld [vmem:[#allocation2 + $0x8] sm:$0xff]
          %v606 = vld [vmem:[#allocation2 + $0x10] sm:$0xff]
          %v607 = vld [vmem:[#allocation2 + $0x18] sm:$0xff]
          %v608 = vld [vmem:[#allocation2 + $0x20] sm:$0xff]
          %v609 = vld [vmem:[#allocation2 + $0x28] sm:$0xff]
          %v610 = vld [vmem:[#allocation2 + $0x30] sm:$0xff]
          %v611 = vld [vmem:[#allocation2 + $0x38] sm:$0xff]
          %v612 = vld [vmem:[#allocation2 + $0x40] sm:$0xff]
          %v613 = vld [vmem:[#allocation2 + $0x48] sm:$0xff]
          %v614 = vld [vmem:[#allocation2 + $0x50] sm:$0xff]
          %v615 = vld [vmem:[#allocation2 + $0x58] sm:$0xff]
          %v616 = vld [vmem:[#allocation2 + $0x60] sm:$0xff]
          %v617 = vld [vmem:[#allocation2 + $0x68] sm:$0xff]
          %v618 = vld [vmem:[#allocation2 + $0x70] sm:$0xff]
          %v619 = vld [vmem:[#allocation2 + $0x78] sm:$0xff]
          %v620 = vld [vmem:[%s345] sm:$0x1]
          %v622 = vperm.slane %v620, 0
          %v624 = vadd.f32 %v604, %v622
          %v625 = vadd.f32 %v605, %v622
          %v626 = vadd.f32 %v606, %v622
          %v627 = vadd.f32 %v607, %v622
          %v628 = vadd.f32 %v608, %v622
          %v629 = vadd.f32 %v609, %v622
          %v630 = vadd.f32 %v610, %v622
          %v631 = vadd.f32 %v611, %v622
          %v632 = vadd.f32 %v612, %v622
          %v633 = vadd.f32 %v613, %v622
          %v634 = vadd.f32 %v614, %v622
          %v635 = vadd.f32 %v615, %v622
          %v636 = vadd.f32 %v616, %v622
          %v637 = vadd.f32 %v617, %v622
          %v638 = vadd.f32 %v618, %v622
          %v639 = vadd.f32 %v619, %v622
          %640 = vst [vmem:[%s353] sm:$0xff] %v624
          %641 = vst [vmem:[%s353 + $0x8] sm:$0xff] %v625
          %642 = vst [vmem:[%s353 + $0x10] sm:$0xff] %v626
          %643 = vst [vmem:[%s353 + $0x18] sm:$0xff] %v627
          %644 = vst [vmem:[%s353 + $0x20] sm:$0xff] %v628
          %645 = vst [vmem:[%s353 + $0x28] sm:$0xff] %v629
          %646 = vst [vmem:[%s353 + $0x30] sm:$0xff] %v630
          %647 = vst [vmem:[%s353 + $0x38] sm:$0xff] %v631
          %648 = vst [vmem:[%s353 + $0x40] sm:$0xff] %v632
          %649 = vst [vmem:[%s353 + $0x48] sm:$0xff] %v633
          %650 = vst [vmem:[%s353 + $0x50] sm:$0xff] %v634
          %651 = vst [vmem:[%s353 + $0x58] sm:$0xff] %v635
          %652 = vst [vmem:[%s353 + $0x60] sm:$0xff] %v636
          %653 = vst [vmem:[%s353 + $0x68] sm:$0xff] %v637
          %654 = vst [vmem:[%s353 + $0x70] sm:$0xff] %v638
          %655 = vst [vmem:[%s353 + $0x78] sm:$0xff] %v639
        $region81: #{graphmae_forward.9} parent=68 // pred_fallthru
          _
        %s656 = smul.u32 16, %s19
        %p657 = scmp.lt.s32.totalorder %s656, 47
        %s658 = scalar_select %p657, %s656, 47
        %p659 = scmp.lt.s32.totalorder %s20, 0
        %s660 = scalar_select %p659, %s20, 0
        %s661 = sadd.s32 %s660, %s658
        %s662 = smul.addr %s661, 8
        %s663 = scalar_lea.vmem %s3, %s662
        // Predicated region
        $region82: #{graphmae_forward.9} parent=68 // pred_check
          %p664 = pneg %p135
        $region83: #{graphmae_forward.9} parent=68 // pred_check_branch
          %666 = sbr.rel (%p664) target = $region85
        $region84: #{graphmae_forward.9} parent=68 // pred_region
          %s667 = smul.u32 16, %s19
        $region85: #{graphmae_forward.9} parent=68 // pred_fallthru
          _
      $region69: #{graphmae_forward.9} parent=5 // pred_fallthru
        _
      %p668 = scmp.le.s32.totalorder 2, %s9
      // Predicated region
      $region86: #{graphmae_forward.9} parent=5 // pred_check
        %p669 = pneg %p668
      $region87: #{graphmae_forward.9} parent=5 // pred_check_branch
        %671 = sbr.rel (%p669) target = $region89
      $region88: #{graphmae_forward.9} parent=5 // pred_region
        %s672 = ssub.s32 %s9, 2
        // Predicated region
        $region90: #{graphmae_forward.9} parent=88 // pred_check
          %p673 = pneg %p141
        $region91: #{graphmae_forward.9} parent=88 // pred_check_branch
          %675 = sbr.rel (%p673) target = $region93
        $region92: #{graphmae_forward.9} parent=88 // pred_region
          %s676 = smul.u32 16, %s22
          %p677 = scmp.lt.s32.totalorder %s676, 47
          %s678 = scalar_select %p677, %s676, 47
          %p679 = scmp.lt.s32.totalorder %s23, 0
          %s680 = scalar_select %p679, %s23, 0
          %s681 = sadd.s32 %s680, %s678
          %s682 = smul.addr %s681, 8
          %s683 = scalar_lea.vmem %s3, %s682
        $region93: #{graphmae_forward.9} parent=88 // pred_fallthru
          _
      $region89: #{graphmae_forward.9} parent=5 // pred_fallthru
        _
    $region6: #{graphmae_forward.9} parent=1 // loop_footer
      %s13 = sadd.s32 1, %s9
    $region7: #{graphmae_forward.9} parent=1 // loop_footer_branch
      %8 = sbr.rel target = $region3
    $region8: #{graphmae_forward.9} parent=1 // loop_exit
      _

// kernel: graphmae_forward.8
$region0: #{graphmae_forward.8}
  #allocation0 [shape = 'u32[]', space=smem, size = 0x4, offset = 0x4, fixed_abs, tag = 'smem constant byte address 0x4 - core index']
  #allocation1 [shape = 'u32[72,128]{1,0:T(1,128)}', space=vmem, size = 0x9000, scoped, tag = 'internal scratch']
  #allocation2 [shape = 'f32[128,128]{1,0:T(8,128)}', space=vmem, size = 0x10000, scoped, tag = 'scratch operand']
  %s0 = inlined_call_operand.vmem [shape: bf16[384,128], index: 0, kind: input, shape index: {}]
  %s1 = inlined_call_operand.vmem [shape: bf16[128,128], index: 1, kind: input, shape index: {}]
  %s2 = inlined_call_operand.vmem [shape: f32[1,128], index: 2, kind: input, shape index: {}]
  %s3 = inlined_call_operand.vmem [shape: bf16[384,128], index: 3, kind: output, shape index: {}]
  %s4 = sld [smem:[#allocation0]]
  $region53: #{graphmae_forward.8} parent=0
    _
  %s6 = ssub.s32 1, %s4
  %s7 = scalar_select 0, %s6, %s4
  loop: start=0, step=1, limit=5
  $region2: #{graphmae_forward.8} parent=0 // loop_pre_header
    _
  $region3: #{graphmae_forward.8} parent=0 // loop_header
    %s9 = sphi 0, %s13
    %p10 = scmp.ge.s32.totalorder %s9, 5
    %s16 = sphi 0, %s35
    %s17 = sphi 0, %s31
    %s18 = sphi 0, %s27
    %s19 = sphi 0, %s16
    %s20 = sphi 0, %s17
    %s21 = sphi 0, %s18
    %s22 = sphi 0, %s19
    %s23 = sphi 0, %s20
    %s24 = sphi 0, %s21
    %s40 = sphi 0, %s42
    %s43 = sphi 0, %s40
    %s44 = sphi 0, %s43
    %s60 = sphi 0, %s44
    %s68 = sphi 0, %s70
    %s71 = sphi 0, %s68
    %s72 = sphi 0, %s71
    %s88 = sphi 0, %s72
    %s94 = sphi 0, %s96
    %s97 = sphi 0, %s94
    %s98 = sphi 0, %s97
    %s114 = sphi 0, %s98
    %s122 = sphi 0, %s124
    %s125 = sphi 0, %s122
    %s126 = sphi 0, %s125
    %s142 = sphi 0, %s126
  $region4: #{graphmae_forward.8} parent=0 // loop_header_branch
    %12 = sbr.rel (%p10) target = $region8
  $region5: #{graphmae_forward.8} parent=0 // loop_body
    %s14 = ssub.s32 %s9, 1
    %s15 = ssub.s32 %s9, 2
    %s25 = sadd.s32 1, %s18
    %p26 = scmp.ge.s32.totalorder %s25, 1
    %s27 = scalar_select %p26, 0, %s25
    %s28 = sadd.s32 1, %s17
    %s29 = scalar_select %p26, %s28, %s17
    %p30 = scmp.ge.s32.totalorder %s29, 1
    %s31 = scalar_select %p30, 0, %s29
    %s32 = sadd.s32 1, %s16
    %s33 = scalar_select %p30, %s32, %s16
    %p34 = scmp.ge.s32.totalorder %s33, 3
    %s35 = scalar_select %p34, 0, %s33
    %s36 = ssub.s32 %s16, %s35
    %s37 = ssub.s32 %s18, %s27
    %s38 = sor.u32 %s36, %s37
    %p39 = scmp.eq.s32.totalorder %s38, 0
    %s41 = sadd.s32 %s40, 1
    %s42 = scalar_select %p39, %s40, %s41
    %p45 = pneg %p39
    %p46 = scmp.eq.s32.totalorder %s9, 2
    %p47 = por %p45, %p46
    %p48 = scmp.ne.s32.totalorder %s40, %s43
    %p49 = scmp.eq.s32.totalorder %s9, 0
    %p50 = por %p48, %p49
    %p51 = scmp.ne.s32.totalorder %s40, %s43
    %p52 = scmp.eq.s32.totalorder %s14, 2
    %p53 = por %p51, %p52
    %p54 = scmp.ne.s32.totalorder %s43, %s44
    %p55 = scmp.eq.s32.totalorder %s14, 0
    %p56 = por %p54, %p55
    %p57 = scmp.ne.s32.totalorder %s43, %s44
    %p58 = scmp.eq.s32.totalorder %s15, 2
    %p59 = por %p57, %p58
    %p61 = scmp.ne.s32.totalorder %s44, %s60
    %p62 = scmp.eq.s32.totalorder %s15, 0
    %p63 = por %p61, %p62
    %s64 = ssub.s32 %s18, %s27
    %s65 = ssub.s32 %s17, %s31
    %s66 = sor.u32 %s64, %s65
    %p67 = scmp.eq.s32.totalorder %s66, 0
    %s69 = sadd.s32 %s68, 1
    %s70 = scalar_select %p67, %s68, %s69
    %p73 = pneg %p67
    %p74 = scmp.eq.s32.totalorder %s9, 2
    %p75 = por %p73, %p74
    %p76 = scmp.ne.s32.totalorder %s68, %s71
    %p77 = scmp.eq.s32.totalorder %s9, 0
    %p78 = por %p76, %p77
    %p79 = scmp.ne.s32.totalorder %s68, %s71
    %p80 = scmp.eq.s32.totalorder %s14, 2
    %p81 = por %p79, %p80
    %p82 = scmp.ne.s32.totalorder %s71, %s72
    %p83 = scmp.eq.s32.totalorder %s14, 0
    %p84 = por %p82, %p83
    %p85 = scmp.ne.s32.totalorder %s71, %s72
    %p86 = scmp.eq.s32.totalorder %s15, 2
    %p87 = por %p85, %p86
    %p89 = scmp.ne.s32.totalorder %s72, %s88
    %p90 = scmp.eq.s32.totalorder %s15, 0
    %p91 = por %p89, %p90
    %s92 = ssub.s32 %s17, %s31
    %p93 = scmp.eq.s32.totalorder %s92, 0
    %s95 = sadd.s32 %s94, 1
    %s96 = scalar_select %p93, %s94, %s95
    %p99 = pneg %p93
    %p100 = scmp.eq.s32.totalorder %s9, 2
    %p101 = por %p99, %p100
    %p102 = scmp.ne.s32.totalorder %s94, %s97
    %p103 = scmp.eq.s32.totalorder %s9, 0
    %p104 = por %p102, %p103
    %p105 = scmp.ne.s32.totalorder %s94, %s97
    %p106 = scmp.eq.s32.totalorder %s14, 2
    %p107 = por %p105, %p106
    %p108 = scmp.ne.s32.totalorder %s97, %s98
    %p109 = scmp.eq.s32.totalorder %s14, 0
    %p110 = por %p108, %p109
    %p111 = scmp.ne.s32.totalorder %s97, %s98
    %p112 = scmp.eq.s32.totalorder %s15, 2
    %p113 = por %p111, %p112
    %p115 = scmp.ne.s32.totalorder %s98, %s114
    %p116 = scmp.eq.s32.totalorder %s15, 0
    %p117 = por %p115, %p116
    %s118 = ssub.s32 %s16, %s35
    %s119 = ssub.s32 %s17, %s31
    %s120 = sor.u32 %s118, %s119
    %p121 = scmp.eq.s32.totalorder %s120, 0
    %s123 = sadd.s32 %s122, 1
    %s124 = scalar_select %p121, %s122, %s123
    %p127 = pneg %p121
    %p128 = scmp.eq.s32.totalorder %s9, 2
    %p129 = por %p127, %p128
    %p130 = scmp.ne.s32.totalorder %s122, %s125
    %p131 = scmp.eq.s32.totalorder %s9, 0
    %p132 = por %p130, %p131
    %p133 = scmp.ne.s32.totalorder %s122, %s125
    %p134 = scmp.eq.s32.totalorder %s14, 2
    %p135 = por %p133, %p134
    %p136 = scmp.ne.s32.totalorder %s125, %s126
    %p137 = scmp.eq.s32.totalorder %s14, 0
    %p138 = por %p136, %p137
    %p139 = scmp.ne.s32.totalorder %s125, %s126
    %p140 = scmp.eq.s32.totalorder %s15, 2
    %p141 = por %p139, %p140
    %p143 = scmp.ne.s32.totalorder %s126, %s142
    %p144 = scmp.eq.s32.totalorder %s15, 0
    %p145 = por %p143, %p144
    %p146 = scmp.le.s32.totalorder 1, %s9
    %p147 = scmp.lt.s32.totalorder %s9, 4
    %p148 = pnand %p146, %p147
    %p149 = pneg %p148
    // Predicated region
    $region9: #{graphmae_forward.8} parent=5 // pred_check
      _
    $region10: #{graphmae_forward.8} parent=5 // pred_check_branch
      %151 = sbr.rel (%p148) target = $region12
    $region11: #{graphmae_forward.8} parent=5 // pred_region
      %s152 = ssub.s32 %s9, 1
      // Predicated region
      $region13: #{graphmae_forward.8} parent=11 // pred_check
        %p153 = pneg %p84
      $region14: #{graphmae_forward.8} parent=11 // pred_check_branch
        %155 = sbr.rel (%p153) target = $region16
      $region15: #{graphmae_forward.8} parent=11 // pred_region
        %s156 = smul.u32 16, %s21
        %p157 = scmp.lt.s32.totalorder %s156, 15
        %s158 = scalar_select %p157, %s156, 15
        %p159 = scmp.lt.s32.totalorder %s20, 0
        %s160 = scalar_select %p159, %s20, 0
        %s161 = sadd.s32 %s160, %s158
        %s162 = smul.addr %s161, 4
        %s163 = scalar_lea.vmem %s1, %s162
        %s164 = smul.u32 16, %s21
      $region16: #{graphmae_forward.8} parent=11 // pred_fallthru
        _
      // Predicated region
      $region17: #{graphmae_forward.8} parent=11 // pred_check
        %p165 = pneg %p110
      $region18: #{graphmae_forward.8} parent=11 // pred_check_branch
        %167 = sbr.rel (%p165) target = $region20
      $region19: #{graphmae_forward.8} parent=11 // pred_region
        %p168 = scmp.lt.s32.totalorder %s20, 0
        %s169 = scalar_select %p168, %s20, 0
        %s170 = scalar_lea.vmem %s2, %s169
      $region20: #{graphmae_forward.8} parent=11 // pred_fallthru
        _
    $region12: #{graphmae_forward.8} parent=5 // pred_fallthru
      _
    %p171 = scmp.lt.s32.totalorder %s9, 3
    // Predicated region
    $region21: #{graphmae_forward.8} parent=5 // pred_check
      %p172 = pneg %p171
    $region22: #{graphmae_forward.8} parent=5 // pred_check_branch
      %174 = sbr.rel (%p172) target = $region24
    $region23: #{graphmae_forward.8} parent=5 // pred_region
      // Predicated region
      $region25: #{graphmae_forward.8} parent=23 // pred_check
        %p175 = pneg %p50
      $region26: #{graphmae_forward.8} parent=23 // pred_check_branch
        %177 = sbr.rel (%p175) target = $region28
      $region27: #{graphmae_forward.8} parent=23 // pred_region
        %s178 = smul.u32 16, %s16
        %p179 = scmp.lt.s32.totalorder %s178, 47
        %s180 = scalar_select %p179, %s178, 47
        %p181 = scmp.lt.s32.totalorder %s18, 0
        %s182 = scalar_select %p181, %s18, 0
        %s183 = sadd.s32 %s182, %s180
        %s184 = smul.addr %s183, 4
        %s185 = scalar_lea.vmem %s0, %s184
        %s186 = smul.u32 16, %s16
      $region28: #{graphmae_forward.8} parent=23 // pred_fallthru
        _
    $region24: #{graphmae_forward.8} parent=5 // pred_fallthru
      _
    %p187 = scmp.le.s32.totalorder 1, %s9
    %p188 = scmp.lt.s32.totalorder %s9, 4
    %p189 = pnand %p187, %p188
    %p190 = pneg %p189
    // Predicated region
    $region29: #{graphmae_forward.8} parent=5 // pred_check
      _
    $region30: #{graphmae_forward.8} parent=5 // pred_check_branch
      %192 = sbr.rel (%p189) target = $region32
    $region31: #{graphmae_forward.8} parent=5 // pred_region
      %s193 = ssub.s32 %s9, 1
      %s194 = smul.u32 16, %s19
      %p195 = scmp.lt.s32.totalorder %s194, 47
      %s196 = scalar_select %p195, %s194, 47
      %p197 = scmp.lt.s32.totalorder %s21, 0
      %s198 = scalar_select %p197, %s21, 0
      %s199 = sadd.s32 %s198, %s196
      %s200 = smul.addr %s199, 4
      %s201 = scalar_lea.vmem %s0, %s200
      %p202 = pneg %p56
      %p203 = pneg %p53
      %s204 = smul.u32 16, %s21
      %p205 = scmp.lt.s32.totalorder %s204, 15
      %s206 = scalar_select %p205, %s204, 15
      %p207 = scmp.lt.s32.totalorder %s20, 0
      %s208 = scalar_select %p207, %s20, 0
      %s209 = sadd.s32 %s208, %s206
      %s210 = smul.addr %s209, 4
      %s211 = scalar_lea.vmem %s1, %s210
      %p212 = pneg %p84
      %p213 = pneg %p81
      %p214 = scmp.lt.s32.totalorder %s20, 0
      %s215 = scalar_select %p214, %s20, 0
      %s216 = scalar_lea.vmem %s2, %s215
      %p217 = pneg %p110
      %p218 = pneg %p107
      %p219 = pneg %p138
      %p220 = pneg %p135
      %s221 = smul.u32 16, %s19
      %p222 = scmp.lt.s32.totalorder %s221, 47
      %s223 = scalar_select %p222, %s221, 47
      %p224 = scmp.lt.s32.totalorder %s20, 0
      %s225 = scalar_select %p224, %s20, 0
      %s226 = sadd.s32 %s225, %s223
      %s227 = smul.addr %s226, 4
      %s228 = scalar_lea.vmem %s3, %s227
      %s229 = smul.u32 16, %s19
      %p230 = scmp.lt.s32.totalorder %s229, 47
      %s231 = scalar_select %p230, %s229, 47
      %p232 = scmp.lt.s32.totalorder %s21, 0
      %s233 = scalar_select %p232, %s21, 0
      %s234 = sadd.s32 %s233, %s231
      %s235 = smul.addr %s234, 4
      %s236 = scalar_lea.vmem %s0, %s235
      %s237 = smul.u32 16, %s19
      %s238 = smul.u32 16, %s21
      %p239 = scmp.lt.s32.totalorder %s238, 15
      %s240 = scalar_select %p239, %s238, 15
      %p241 = scmp.lt.s32.totalorder %s20, 0
      %s242 = scalar_select %p241, %s20, 0
      %s243 = sadd.s32 %s242, %s240
      %s244 = smul.addr %s243, 4
      %s245 = scalar_lea.vmem %s1, %s244
      %s246 = smul.u32 16, %s21
      %p247 = scmp.lt.s32.totalorder %s20, 0
      %s248 = scalar_select %p247, %s20, 0
      %s249 = scalar_lea.vmem %s2, %s248
      %s250 = smul.u32 16, %s19
      %p251 = scmp.lt.s32.totalorder %s250, 47
      %s252 = scalar_select %p251, %s250, 47
      %p253 = scmp.lt.s32.totalorder %s20, 0
      %s254 = scalar_select %p253, %s20, 0
      %s255 = sadd.s32 %s254, %s252
      %s256 = smul.addr %s255, 4
      %s257 = scalar_lea.vmem %s3, %s256
      %s258 = smul.u32 16, %s19
      %p259 = scmp.eq.s32.totalorder %s21, 0
      // Predicated region
      $region33: #{graphmae_forward.8} parent=31 // pred_check
        %p260 = pneg %p259
      $region34: #{graphmae_forward.8} parent=31 // pred_check_branch
        %262 = sbr.rel (%p260) target = $region36
      $region35: #{graphmae_forward.8} parent=31 // pred_region
        %263 = vst [vmem:[#allocation2] sm:$0xff] 0.0
        %264 = vst [vmem:[#allocation2 + $0x8] sm:$0xff] 0.0
        %265 = vst [vmem:[#allocation2 + $0x10] sm:$0xff] 0.0
        %266 = vst [vmem:[#allocation2 + $0x18] sm:$0xff] 0.0
        %267 = vst [vmem:[#allocation2 + $0x20] sm:$0xff] 0.0
        %268 = vst [vmem:[#allocation2 + $0x28] sm:$0xff] 0.0
        %269 = vst [vmem:[#allocation2 + $0x30] sm:$0xff] 0.0
        %270 = vst [vmem:[#allocation2 + $0x38] sm:$0xff] 0.0
        %271 = vst [vmem:[#allocation2 + $0x40] sm:$0xff] 0.0
        %272 = vst [vmem:[#allocation2 + $0x48] sm:$0xff] 0.0
        %273 = vst [vmem:[#allocation2 + $0x50] sm:$0xff] 0.0
        %274 = vst [vmem:[#allocation2 + $0x58] sm:$0xff] 0.0
        %275 = vst [vmem:[#allocation2 + $0x60] sm:$0xff] 0.0
        %276 = vst [vmem:[#allocation2 + $0x68] sm:$0xff] 0.0
        %277 = vst [vmem:[#allocation2 + $0x70] sm:$0xff] 0.0
        %278 = vst [vmem:[#allocation2 + $0x78] sm:$0xff] 0.0
      $region36: #{graphmae_forward.8} parent=31 // pred_fallthru
        _
      %v279 = vld [vmem:[%s236] sm:$0xf]
      %v280 = vld [vmem:[%s236 + $0x4] sm:$0xf]
      %v281 = vld [vmem:[%s236 + $0x8] sm:$0xf]
      %v282 = vld [vmem:[%s236 + $0xc] sm:$0xf]
      %v283 = vld [vmem:[%s236 + $0x10] sm:$0xf]
      %v284 = vld [vmem:[%s236 + $0x14] sm:$0xf]
      %v285 = vld [vmem:[%s236 + $0x18] sm:$0xf]
      %v286 = vld [vmem:[%s236 + $0x1c] sm:$0xf]
      %v287 = vld [vmem:[%s236 + $0x20] sm:$0xf]
      %v288 = vld [vmem:[%s236 + $0x24] sm:$0xf]
      %v289 = vld [vmem:[%s236 + $0x28] sm:$0xf]
      %v290 = vld [vmem:[%s236 + $0x2c] sm:$0xf]
      %v291 = vld [vmem:[%s236 + $0x30] sm:$0xf]
      %v292 = vld [vmem:[%s236 + $0x34] sm:$0xf]
      %v293 = vld [vmem:[%s236 + $0x38] sm:$0xf]
      %v294 = vld [vmem:[%s236 + $0x3c] sm:$0xf]
      %v295 = vld [vmem:[#allocation2] sm:$0xff]
      %v296 = vld [vmem:[#allocation2 + $0x8] sm:$0xff]
      %v297 = vld [vmem:[#allocation2 + $0x10] sm:$0xff]
      %v298 = vld [vmem:[#allocation2 + $0x18] sm:$0xff]
      %v299 = vld [vmem:[#allocation2 + $0x20] sm:$0xff]
      %v300 = vld [vmem:[#allocation2 + $0x28] sm:$0xff]
      %v301 = vld [vmem:[#allocation2 + $0x30] sm:$0xff]
      %v302 = vld [vmem:[#allocation2 + $0x38] sm:$0xff]
      %v303 = vld [vmem:[#allocation2 + $0x40] sm:$0xff]
      %v304 = vld [vmem:[#allocation2 + $0x48] sm:$0xff]
      %v305 = vld [vmem:[#allocation2 + $0x50] sm:$0xff]
      %v306 = vld [vmem:[#allocation2 + $0x58] sm:$0xff]
      %v307 = vld [vmem:[#allocation2 + $0x60] sm:$0xff]
      %v308 = vld [vmem:[#allocation2 + $0x68] sm:$0xff]
      %v309 = vld [vmem:[#allocation2 + $0x70] sm:$0xff]
      %v310 = vld [vmem:[#allocation2 + $0x78] sm:$0xff]
      %v311 = vld [vmem:[%s245] sm:$0xf]
      %v312 = vld [vmem:[%s245 + $0x4] sm:$0xf]
      %v313 = vld [vmem:[%s245 + $0x8] sm:$0xf]
      %v314 = vld [vmem:[%s245 + $0xc] sm:$0xf]
      %v315 = vld [vmem:[%s245 + $0x10] sm:$0xf]
      %v316 = vld [vmem:[%s245 + $0x14] sm:$0xf]
      %v317 = vld [vmem:[%s245 + $0x18] sm:$0xf]
      %v318 = vld [vmem:[%s245 + $0x1c] sm:$0xf]
      %v319 = vld [vmem:[%s245 + $0x20] sm:$0xf]
      %v320 = vld [vmem:[%s245 + $0x24] sm:$0xf]
      %v321 = vld [vmem:[%s245 + $0x28] sm:$0xf]
      %v322 = vld [vmem:[%s245 + $0x2c] sm:$0xf]
      %v323 = vld [vmem:[%s245 + $0x30] sm:$0xf]
      %v324 = vld [vmem:[%s245 + $0x34] sm:$0xf]
      %v325 = vld [vmem:[%s245 + $0x38] sm:$0xf]
      %v326 = vld [vmem:[%s245 + $0x3c] sm:$0xf]
      %v343 = vunpack.c.l.b16 %v279
      %v344 = vunpack.c.l.b16 %v280
      %v345 = vunpack.c.l.b16 %v281
      %v346 = vunpack.c.l.b16 %v282
      %v347 = vunpack.c.l.b16 %v283
      %v348 = vunpack.c.l.b16 %v284
      %v349 = vunpack.c.l.b16 %v285
      %v350 = vunpack.c.l.b16 %v286
      %v351 = vunpack.c.l.b16 %v287
      %v352 = vunpack.c.l.b16 %v288
      %v353 = vunpack.c.l.b16 %v289
      %v354 = vunpack.c.l.b16 %v290
      %v355 = vunpack.c.l.b16 %v291
      %v356 = vunpack.c.l.b16 %v292
      %v357 = vunpack.c.l.b16 %v293
      %v358 = vunpack.c.l.b16 %v294
      %v359 = vpack.c.b16 %v344, %v343
      %v360 = vpack.c.b16 %v346, %v345
      %v361 = vpack.c.b16 %v348, %v347
      %v362 = vpack.c.b16 %v350, %v349
      %v363 = vpack.c.b16 %v352, %v351
      %v364 = vpack.c.b16 %v354, %v353
      %v365 = vpack.c.b16 %v356, %v355
      %v366 = vpack.c.b16 %v358, %v357
      %v391 = vunpack.c.l.b16 %v311
      %v392 = vunpack.c.l.b16 %v312
      %v393 = vunpack.c.l.b16 %v313
      %v394 = vunpack.c.l.b16 %v314
      %v395 = vunpack.c.l.b16 %v315
      %v396 = vunpack.c.l.b16 %v316
      %v397 = vunpack.c.l.b16 %v317
      %v398 = vunpack.c.l.b16 %v318
      %v399 = vunpack.c.l.b16 %v319
      %v400 = vunpack.c.l.b16 %v320
      %v401 = vunpack.c.l.b16 %v321
      %v402 = vunpack.c.l.b16 %v322
      %v403 = vunpack.c.l.b16 %v323
      %v404 = vunpack.c.l.b16 %v324
      %v405 = vunpack.c.l.b16 %v325
      %v406 = vunpack.c.l.b16 %v326
      %v407 = vpack.c.b16 %v392, %v391
      %v408 = vpack.c.b16 %v394, %v393
      %v409 = vpack.c.b16 %v396, %v395
      %v410 = vpack.c.b16 %v398, %v397
      %v411 = vpack.c.b16 %v400, %v399
      %v412 = vpack.c.b16 %v402, %v401
      %v413 = vpack.c.b16 %v404, %v403
      %v414 = vpack.c.b16 %v406, %v405
      %423 = vmatpush.bf16.msra.mxu0 %v414
      %424 = vmatpush.bf16.msra.mxu0 %v413
      %425 = vmatpush.bf16.msra.mxu0 %v412
      %426 = vmatpush.bf16.msra.mxu0 %v411
      %427 = vmatpush.bf16.msra.mxu0 %v410
      %428 = vmatpush.bf16.msra.mxu0 %v409
      %429 = vmatpush.bf16.msra.mxu0 %v408
      %430 = vmatpush.bf16.msra.mxu0 %v407
      %431 = vmatmul.bf16.gmra.mxu0 %v359
      %v432 = vpop.f32.mrf.mxu0
      %v433 = vadd.f32 0.0, %v432
      %v434 = vpop.f32.mrf.mxu0
      %v435 = vadd.f32 0.0, %v434
      %436 = vmatmul.bf16.gmra.mxu0 %v360
      %v437 = vpop.f32.mrf.mxu0
      %v438 = vadd.f32 0.0, %v437
      %v439 = vpop.f32.mrf.mxu0
      %v440 = vadd.f32 0.0, %v439
      %441 = vmatmul.bf16.gmra.mxu0 %v361
      %v442 = vpop.f32.mrf.mxu0
      %v443 = vadd.f32 0.0, %v442
      %v444 = vpop.f32.mrf.mxu0
      %v445 = vadd.f32 0.0, %v444
      %446 = vmatmul.bf16.gmra.mxu0 %v362
      %v447 = vpop.f32.mrf.mxu0
      %v448 = vadd.f32 0.0, %v447
      %v449 = vpop.f32.mrf.mxu0
      %v450 = vadd.f32 0.0, %v449
      %451 = vmatmul.bf16.gmra.mxu0 %v363
      %v452 = vpop.f32.mrf.mxu0
      %v453 = vadd.f32 0.0, %v452
      %v454 = vpop.f32.mrf.mxu0
      %v455 = vadd.f32 0.0, %v454
      %456 = vmatmul.bf16.gmra.mxu0 %v364
      %v457 = vpop.f32.mrf.mxu0
      %v458 = vadd.f32 0.0, %v457
      %v459 = vpop.f32.mrf.mxu0
      %v460 = vadd.f32 0.0, %v459
      %461 = vmatmul.bf16.gmra.mxu0 %v365
      %v462 = vpop.f32.mrf.mxu0
      %v463 = vadd.f32 0.0, %v462
      %v464 = vpop.f32.mrf.mxu0
      %v465 = vadd.f32 0.0, %v464
      %466 = vmatmul.bf16.gmra.mxu0 %v366
      %v467 = vpop.f32.mrf.mxu0
      %v468 = vadd.f32 0.0, %v467
      %v469 = vpop.f32.mrf.mxu0
      %v470 = vadd.f32 0.0, %v469
      %471 = vdwg.mxu0
      %v472 = vadd.f32 %v295, %v433
      %v473 = vadd.f32 %v296, %v435
      %v474 = vadd.f32 %v297, %v438
      %v475 = vadd.f32 %v298, %v440
      %v476 = vadd.f32 %v299, %v443
      %v477 = vadd.f32 %v300, %v445
      %v478 = vadd.f32 %v301, %v448
      %v479 = vadd.f32 %v302, %v450
      %v480 = vadd.f32 %v303, %v453
      %v481 = vadd.f32 %v304, %v455
      %v482 = vadd.f32 %v305, %v458
      %v483 = vadd.f32 %v306, %v460
      %v484 = vadd.f32 %v307, %v463
      %v485 = vadd.f32 %v308, %v465
      %v486 = vadd.f32 %v309, %v468
      %v487 = vadd.f32 %v310, %v470
      %488 = vst [vmem:[#allocation2] sm:$0xff] %v472
      %489 = vst [vmem:[#allocation2 + $0x8] sm:$0xff] %v473
      %490 = vst [vmem:[#allocation2 + $0x10] sm:$0xff] %v474
      %491 = vst [vmem:[#allocation2 + $0x18] sm:$0xff] %v475
      %492 = vst [vmem:[#allocation2 + $0x20] sm:$0xff] %v476
      %493 = vst [vmem:[#allocation2 + $0x28] sm:$0xff] %v477
      %494 = vst [vmem:[#allocation2 + $0x30] sm:$0xff] %v478
      %495 = vst [vmem:[#allocation2 + $0x38] sm:$0xff] %v479
      %496 = vst [vmem:[#allocation2 + $0x40] sm:$0xff] %v480
      %497 = vst [vmem:[#allocation2 + $0x48] sm:$0xff] %v481
      %498 = vst [vmem:[#allocation2 + $0x50] sm:$0xff] %v482
      %499 = vst [vmem:[#allocation2 + $0x58] sm:$0xff] %v483
      %500 = vst [vmem:[#allocation2 + $0x60] sm:$0xff] %v484
      %501 = vst [vmem:[#allocation2 + $0x68] sm:$0xff] %v485
      %502 = vst [vmem:[#allocation2 + $0x70] sm:$0xff] %v486
      %503 = vst [vmem:[#allocation2 + $0x78] sm:$0xff] %v487
      // Predicated region
      $region37: #{graphmae_forward.8} parent=31 // pred_check
        %p504 = pneg %p259
      $region38: #{graphmae_forward.8} parent=31 // pred_check_branch
        %506 = sbr.rel (%p504) target = $region40
      $region39: #{graphmae_forward.8} parent=31 // pred_region
        %v507 = vld [vmem:[#allocation2] sm:$0xff]
        %v508 = vld [vmem:[#allocation2 + $0x8] sm:$0xff]
        %v509 = vld [vmem:[#allocation2 + $0x10] sm:$0xff]
        %v510 = vld [vmem:[#allocation2 + $0x18] sm:$0xff]
        %v511 = vld [vmem:[#allocation2 + $0x20] sm:$0xff]
        %v512 = vld [vmem:[#allocation2 + $0x28] sm:$0xff]
        %v513 = vld [vmem:[#allocation2 + $0x30] sm:$0xff]
        %v514 = vld [vmem:[#allocation2 + $0x38] sm:$0xff]
        %v515 = vld [vmem:[#allocation2 + $0x40] sm:$0xff]
        %v516 = vld [vmem:[#allocation2 + $0x48] sm:$0xff]
        %v517 = vld [vmem:[#allocation2 + $0x50] sm:$0xff]
        %v518 = vld [vmem:[#allocation2 + $0x58] sm:$0xff]
        %v519 = vld [vmem:[#allocation2 + $0x60] sm:$0xff]
        %v520 = vld [vmem:[#allocation2 + $0x68] sm:$0xff]
        %v521 = vld [vmem:[#allocation2 + $0x70] sm:$0xff]
        %v522 = vld [vmem:[#allocation2 + $0x78] sm:$0xff]
        %v523 = vld [vmem:[%s249] sm:$0x1]
        %v525 = vperm.slane %v523, 0
        %v527 = vadd.f32 %v507, %v525
        %v528 = vadd.f32 %v508, %v525
        %v529 = vadd.f32 %v509, %v525
        %v530 = vadd.f32 %v510, %v525
        %v531 = vadd.f32 %v511, %v525
        %v532 = vadd.f32 %v512, %v525
        %v533 = vadd.f32 %v513, %v525
        %v534 = vadd.f32 %v514, %v525
        %v535 = vadd.f32 %v515, %v525
        %v536 = vadd.f32 %v516, %v525
        %v537 = vadd.f32 %v517, %v525
        %v538 = vadd.f32 %v518, %v525
        %v539 = vadd.f32 %v519, %v525
        %v540 = vadd.f32 %v520, %v525
        %v541 = vadd.f32 %v521, %v525
        %v542 = vadd.f32 %v522, %v525
        %v543 = vpack.c.bf16 %v527, %v527
        %v544 = vpack.c.bf16 %v528, %v528
        %v545 = vpack.c.bf16 %v529, %v529
        %v546 = vpack.c.bf16 %v530, %v530
        %v547 = vpack.c.bf16 %v531, %v531
        %v548 = vpack.c.bf16 %v532, %v532
        %v549 = vpack.c.bf16 %v533, %v533
        %v550 = vpack.c.bf16 %v534, %v534
        %v551 = vpack.c.bf16 %v535, %v535
        %v552 = vpack.c.bf16 %v536, %v536
        %v553 = vpack.c.bf16 %v537, %v537
        %v554 = vpack.c.bf16 %v538, %v538
        %v555 = vpack.c.bf16 %v539, %v539
        %v556 = vpack.c.bf16 %v540, %v540
        %v557 = vpack.c.bf16 %v541, %v541
        %v558 = vpack.c.bf16 %v542, %v542
        %559 = vst [vmem:[%s257] sm:$0xf] %v543
        %560 = vst [vmem:[%s257 + $0x4] sm:$0xf] %v544
        %561 = vst [vmem:[%s257 + $0x8] sm:$0xf] %v545
        %562 = vst [vmem:[%s257 + $0xc] sm:$0xf] %v546
        %563 = vst [vmem:[%s257 + $0x10] sm:$0xf] %v547
        %564 = vst [vmem:[%s257 + $0x14] sm:$0xf] %v548
        %565 = vst [vmem:[%s257 + $0x18] sm:$0xf] %v549
        %566 = vst [vmem:[%s257 + $0x1c] sm:$0xf] %v550
        %567 = vst [vmem:[%s257 + $0x20] sm:$0xf] %v551
        %568 = vst [vmem:[%s257 + $0x24] sm:$0xf] %v552
        %569 = vst [vmem:[%s257 + $0x28] sm:$0xf] %v553
        %570 = vst [vmem:[%s257 + $0x2c] sm:$0xf] %v554
        %571 = vst [vmem:[%s257 + $0x30] sm:$0xf] %v555
        %572 = vst [vmem:[%s257 + $0x34] sm:$0xf] %v556
        %573 = vst [vmem:[%s257 + $0x38] sm:$0xf] %v557
        %574 = vst [vmem:[%s257 + $0x3c] sm:$0xf] %v558
      $region40: #{graphmae_forward.8} parent=31 // pred_fallthru
        _
      %s575 = smul.u32 16, %s19
      %p576 = scmp.lt.s32.totalorder %s575, 47
      %s577 = scalar_select %p576, %s575, 47
      %p578 = scmp.lt.s32.totalorder %s20, 0
      %s579 = scalar_select %p578, %s20, 0
      %s580 = sadd.s32 %s579, %s577
      %s581 = smul.addr %s580, 4
      %s582 = scalar_lea.vmem %s3, %s581
      // Predicated region
      $region41: #{graphmae_forward.8} parent=31 // pred_check
        %p583 = pneg %p135
      $region42: #{graphmae_forward.8} parent=31 // pred_check_branch
        %585 = sbr.rel (%p583) target = $region44
      $region43: #{graphmae_forward.8} parent=31 // pred_region
        %s586 = smul.u32 16, %s19
      $region44: #{graphmae_forward.8} parent=31 // pred_fallthru
        _
    $region32: #{graphmae_forward.8} parent=5 // pred_fallthru
      _
    %p587 = scmp.le.s32.totalorder 2, %s9
    // Predicated region
    $region45: #{graphmae_forward.8} parent=5 // pred_check
      %p588 = pneg %p587
    $region46: #{graphmae_forward.8} parent=5 // pred_check_branch
      %590 = sbr.rel (%p588) target = $region48
    $region47: #{graphmae_forward.8} parent=5 // pred_region
      %s591 = ssub.s32 %s9, 2
      // Predicated region
      $region49: #{graphmae_forward.8} parent=47 // pred_check
        %p592 = pneg %p141
      $region50: #{graphmae_forward.8} parent=47 // pred_check_branch
        %594 = sbr.rel (%p592) target = $region52
      $region51: #{graphmae_forward.8} parent=47 // pred_region
        %s595 = smul.u32 16, %s22
        %p596 = scmp.lt.s32.totalorder %s595, 47
        %s597 = scalar_select %p596, %s595, 47
        %p598 = scmp.lt.s32.totalorder %s23, 0
        %s599 = scalar_select %p598, %s23, 0
        %s600 = sadd.s32 %s599, %s597
        %s601 = smul.addr %s600, 4
        %s602 = scalar_lea.vmem %s3, %s601
      $region52: #{graphmae_forward.8} parent=47 // pred_fallthru
        _
    $region48: #{graphmae_forward.8} parent=5 // pred_fallthru
      _
  $region6: #{graphmae_forward.8} parent=0 // loop_footer
    %s13 = sadd.s32 1, %s9
  $region7: #{graphmae_forward.8} parent=0 // loop_footer_branch
    %8 = sbr.rel target = $region3
  $region8: #{graphmae_forward.8} parent=0 // loop_exit
    _

// kernel: graphmae_forward.10
$region0: #{graphmae_forward.10}
  #allocation0 [shape = 'u32[]', space=smem, size = 0x4, offset = 0x4, fixed_abs, tag = 'smem constant byte address 0x4 - core index']
  #allocation1 [shape = 'u32[72,128]{1,0:T(1,128)}', space=vmem, size = 0x9000, scoped, tag = 'internal scratch']
  #allocation2 [shape = 'f32[128,128]{1,0:T(8,128)}', space=vmem, size = 0x10000, scoped, tag = 'scratch operand']
  %s0 = inlined_call_operand.vmem [shape: bf16[384,128], index: 0, kind: input, shape index: {}]
  %s1 = inlined_call_operand.vmem [shape: bf16[128,128], index: 1, kind: input, shape index: {}]
  %s2 = inlined_call_operand.vmem [shape: f32[1,128], index: 2, kind: input, shape index: {}]
  %s3 = inlined_call_operand.vmem [shape: bf16[384,128], index: 3, kind: output, shape index: {}]
  %s4 = sld [smem:[#allocation0]]
  $region53: #{graphmae_forward.10} parent=0
    _
  %s6 = ssub.s32 1, %s4
  %s7 = scalar_select 0, %s6, %s4
  loop: start=0, step=1, limit=5
  $region2: #{graphmae_forward.10} parent=0 // loop_pre_header
    _
  $region3: #{graphmae_forward.10} parent=0 // loop_header
    %s9 = sphi 0, %s13
    %p10 = scmp.ge.s32.totalorder %s9, 5
    %s16 = sphi 0, %s35
    %s17 = sphi 0, %s31
    %s18 = sphi 0, %s27
    %s19 = sphi 0, %s16
    %s20 = sphi 0, %s17
    %s21 = sphi 0, %s18
    %s22 = sphi 0, %s19
    %s23 = sphi 0, %s20
    %s24 = sphi 0, %s21
    %s40 = sphi 0, %s42
    %s43 = sphi 0, %s40
    %s44 = sphi 0, %s43
    %s60 = sphi 0, %s44
    %s68 = sphi 0, %s70
    %s71 = sphi 0, %s68
    %s72 = sphi 0, %s71
    %s88 = sphi 0, %s72
    %s94 = sphi 0, %s96
    %s97 = sphi 0, %s94
    %s98 = sphi 0, %s97
    %s114 = sphi 0, %s98
    %s122 = sphi 0, %s124
    %s125 = sphi 0, %s122
    %s126 = sphi 0, %s125
    %s142 = sphi 0, %s126
  $region4: #{graphmae_forward.10} parent=0 // loop_header_branch
    %12 = sbr.rel (%p10) target = $region8
  $region5: #{graphmae_forward.10} parent=0 // loop_body
    %s14 = ssub.s32 %s9, 1
    %s15 = ssub.s32 %s9, 2
    %s25 = sadd.s32 1, %s18
    %p26 = scmp.ge.s32.totalorder %s25, 1
    %s27 = scalar_select %p26, 0, %s25
    %s28 = sadd.s32 1, %s17
    %s29 = scalar_select %p26, %s28, %s17
    %p30 = scmp.ge.s32.totalorder %s29, 1
    %s31 = scalar_select %p30, 0, %s29
    %s32 = sadd.s32 1, %s16
    %s33 = scalar_select %p30, %s32, %s16
    %p34 = scmp.ge.s32.totalorder %s33, 3
    %s35 = scalar_select %p34, 0, %s33
    %s36 = ssub.s32 %s16, %s35
    %s37 = ssub.s32 %s18, %s27
    %s38 = sor.u32 %s36, %s37
    %p39 = scmp.eq.s32.totalorder %s38, 0
    %s41 = sadd.s32 %s40, 1
    %s42 = scalar_select %p39, %s40, %s41
    %p45 = pneg %p39
    %p46 = scmp.eq.s32.totalorder %s9, 2
    %p47 = por %p45, %p46
    %p48 = scmp.ne.s32.totalorder %s40, %s43
    %p49 = scmp.eq.s32.totalorder %s9, 0
    %p50 = por %p48, %p49
    %p51 = scmp.ne.s32.totalorder %s40, %s43
    %p52 = scmp.eq.s32.totalorder %s14, 2
    %p53 = por %p51, %p52
    %p54 = scmp.ne.s32.totalorder %s43, %s44
    %p55 = scmp.eq.s32.totalorder %s14, 0
    %p56 = por %p54, %p55
    %p57 = scmp.ne.s32.totalorder %s43, %s44
    %p58 = scmp.eq.s32.totalorder %s15, 2
    %p59 = por %p57, %p58
    %p61 = scmp.ne.s32.totalorder %s44, %s60
    %p62 = scmp.eq.s32.totalorder %s15, 0
    %p63 = por %p61, %p62
    %s64 = ssub.s32 %s18, %s27
    %s65 = ssub.s32 %s17, %s31
    %s66 = sor.u32 %s64, %s65
    %p67 = scmp.eq.s32.totalorder %s66, 0
    %s69 = sadd.s32 %s68, 1
    %s70 = scalar_select %p67, %s68, %s69
    %p73 = pneg %p67
    %p74 = scmp.eq.s32.totalorder %s9, 2
    %p75 = por %p73, %p74
    %p76 = scmp.ne.s32.totalorder %s68, %s71
    %p77 = scmp.eq.s32.totalorder %s9, 0
    %p78 = por %p76, %p77
    %p79 = scmp.ne.s32.totalorder %s68, %s71
    %p80 = scmp.eq.s32.totalorder %s14, 2
    %p81 = por %p79, %p80
    %p82 = scmp.ne.s32.totalorder %s71, %s72
    %p83 = scmp.eq.s32.totalorder %s14, 0
    %p84 = por %p82, %p83
    %p85 = scmp.ne.s32.totalorder %s71, %s72
    %p86 = scmp.eq.s32.totalorder %s15, 2
    %p87 = por %p85, %p86
    %p89 = scmp.ne.s32.totalorder %s72, %s88
    %p90 = scmp.eq.s32.totalorder %s15, 0
    %p91 = por %p89, %p90
    %s92 = ssub.s32 %s17, %s31
    %p93 = scmp.eq.s32.totalorder %s92, 0
    %s95 = sadd.s32 %s94, 1
    %s96 = scalar_select %p93, %s94, %s95
    %p99 = pneg %p93
    %p100 = scmp.eq.s32.totalorder %s9, 2
    %p101 = por %p99, %p100
    %p102 = scmp.ne.s32.totalorder %s94, %s97
    %p103 = scmp.eq.s32.totalorder %s9, 0
    %p104 = por %p102, %p103
    %p105 = scmp.ne.s32.totalorder %s94, %s97
    %p106 = scmp.eq.s32.totalorder %s14, 2
    %p107 = por %p105, %p106
    %p108 = scmp.ne.s32.totalorder %s97, %s98
    %p109 = scmp.eq.s32.totalorder %s14, 0
    %p110 = por %p108, %p109
    %p111 = scmp.ne.s32.totalorder %s97, %s98
    %p112 = scmp.eq.s32.totalorder %s15, 2
    %p113 = por %p111, %p112
    %p115 = scmp.ne.s32.totalorder %s98, %s114
    %p116 = scmp.eq.s32.totalorder %s15, 0
    %p117 = por %p115, %p116
    %s118 = ssub.s32 %s16, %s35
    %s119 = ssub.s32 %s17, %s31
    %s120 = sor.u32 %s118, %s119
    %p121 = scmp.eq.s32.totalorder %s120, 0
    %s123 = sadd.s32 %s122, 1
    %s124 = scalar_select %p121, %s122, %s123
    %p127 = pneg %p121
    %p128 = scmp.eq.s32.totalorder %s9, 2
    %p129 = por %p127, %p128
    %p130 = scmp.ne.s32.totalorder %s122, %s125
    %p131 = scmp.eq.s32.totalorder %s9, 0
    %p132 = por %p130, %p131
    %p133 = scmp.ne.s32.totalorder %s122, %s125
    %p134 = scmp.eq.s32.totalorder %s14, 2
    %p135 = por %p133, %p134
    %p136 = scmp.ne.s32.totalorder %s125, %s126
    %p137 = scmp.eq.s32.totalorder %s14, 0
    %p138 = por %p136, %p137
    %p139 = scmp.ne.s32.totalorder %s125, %s126
    %p140 = scmp.eq.s32.totalorder %s15, 2
    %p141 = por %p139, %p140
    %p143 = scmp.ne.s32.totalorder %s126, %s142
    %p144 = scmp.eq.s32.totalorder %s15, 0
    %p145 = por %p143, %p144
    %p146 = scmp.le.s32.totalorder 1, %s9
    %p147 = scmp.lt.s32.totalorder %s9, 4
    %p148 = pnand %p146, %p147
    %p149 = pneg %p148
    // Predicated region
    $region9: #{graphmae_forward.10} parent=5 // pred_check
      _
    $region10: #{graphmae_forward.10} parent=5 // pred_check_branch
      %151 = sbr.rel (%p148) target = $region12
    $region11: #{graphmae_forward.10} parent=5 // pred_region
      %s152 = ssub.s32 %s9, 1
      // Predicated region
      $region13: #{graphmae_forward.10} parent=11 // pred_check
        %p153 = pneg %p84
      $region14: #{graphmae_forward.10} parent=11 // pred_check_branch
        %155 = sbr.rel (%p153) target = $region16
      $region15: #{graphmae_forward.10} parent=11 // pred_region
        %s156 = smul.u32 16, %s21
        %p157 = scmp.lt.s32.totalorder %s156, 15
        %s158 = scalar_select %p157, %s156, 15
        %p159 = scmp.lt.s32.totalorder %s20, 0
        %s160 = scalar_select %p159, %s20, 0
        %s161 = sadd.s32 %s160, %s158
        %s162 = smul.addr %s161, 4
        %s163 = scalar_lea.vmem %s1, %s162
        %s164 = smul.u32 16, %s21
      $region16: #{graphmae_forward.10} parent=11 // pred_fallthru
        _
      // Predicated region
      $region17: #{graphmae_forward.10} parent=11 // pred_check
        %p165 = pneg %p110
      $region18: #{graphmae_forward.10} parent=11 // pred_check_branch
        %167 = sbr.rel (%p165) target = $region20
      $region19: #{graphmae_forward.10} parent=11 // pred_region
        %p168 = scmp.lt.s32.totalorder %s20, 0
        %s169 = scalar_select %p168, %s20, 0
        %s170 = scalar_lea.vmem %s2, %s169
      $region20: #{graphmae_forward.10} parent=11 // pred_fallthru
        _
    $region12: #{graphmae_forward.10} parent=5 // pred_fallthru
      _
    %p171 = scmp.lt.s32.totalorder %s9, 3
    // Predicated region
    $region21: #{graphmae_forward.10} parent=5 // pred_check
      %p172 = pneg %p171
    $region22: #{graphmae_forward.10} parent=5 // pred_check_branch
      %174 = sbr.rel (%p172) target = $region24
    $region23: #{graphmae_forward.10} parent=5 // pred_region
      // Predicated region
      $region25: #{graphmae_forward.10} parent=23 // pred_check
        %p175 = pneg %p50
      $region26: #{graphmae_forward.10} parent=23 // pred_check_branch
        %177 = sbr.rel (%p175) target = $region28
      $region27: #{graphmae_forward.10} parent=23 // pred_region
        %s178 = smul.u32 16, %s16
        %p179 = scmp.lt.s32.totalorder %s178, 47
        %s180 = scalar_select %p179, %s178, 47
        %p181 = scmp.lt.s32.totalorder %s18, 0
        %s182 = scalar_select %p181, %s18, 0
        %s183 = sadd.s32 %s182, %s180
        %s184 = smul.addr %s183, 4
        %s185 = scalar_lea.vmem %s0, %s184
        %s186 = smul.u32 16, %s16
      $region28: #{graphmae_forward.10} parent=23 // pred_fallthru
        _
    $region24: #{graphmae_forward.10} parent=5 // pred_fallthru
      _
    %p187 = scmp.le.s32.totalorder 1, %s9
    %p188 = scmp.lt.s32.totalorder %s9, 4
    %p189 = pnand %p187, %p188
    %p190 = pneg %p189
    // Predicated region
    $region29: #{graphmae_forward.10} parent=5 // pred_check
      _
    $region30: #{graphmae_forward.10} parent=5 // pred_check_branch
      %192 = sbr.rel (%p189) target = $region32
    $region31: #{graphmae_forward.10} parent=5 // pred_region
      %s193 = ssub.s32 %s9, 1
      %s194 = smul.u32 16, %s19
      %p195 = scmp.lt.s32.totalorder %s194, 47
      %s196 = scalar_select %p195, %s194, 47
      %p197 = scmp.lt.s32.totalorder %s21, 0
      %s198 = scalar_select %p197, %s21, 0
      %s199 = sadd.s32 %s198, %s196
      %s200 = smul.addr %s199, 4
      %s201 = scalar_lea.vmem %s0, %s200
      %p202 = pneg %p56
      %p203 = pneg %p53
      %s204 = smul.u32 16, %s21
      %p205 = scmp.lt.s32.totalorder %s204, 15
      %s206 = scalar_select %p205, %s204, 15
      %p207 = scmp.lt.s32.totalorder %s20, 0
      %s208 = scalar_select %p207, %s20, 0
      %s209 = sadd.s32 %s208, %s206
      %s210 = smul.addr %s209, 4
      %s211 = scalar_lea.vmem %s1, %s210
      %p212 = pneg %p84
      %p213 = pneg %p81
      %p214 = scmp.lt.s32.totalorder %s20, 0
      %s215 = scalar_select %p214, %s20, 0
      %s216 = scalar_lea.vmem %s2, %s215
      %p217 = pneg %p110
      %p218 = pneg %p107
      %p219 = pneg %p138
      %p220 = pneg %p135
      %s221 = smul.u32 16, %s19
      %p222 = scmp.lt.s32.totalorder %s221, 47
      %s223 = scalar_select %p222, %s221, 47
      %p224 = scmp.lt.s32.totalorder %s20, 0
      %s225 = scalar_select %p224, %s20, 0
      %s226 = sadd.s32 %s225, %s223
      %s227 = smul.addr %s226, 4
      %s228 = scalar_lea.vmem %s3, %s227
      %s229 = smul.u32 16, %s19
      %p230 = scmp.lt.s32.totalorder %s229, 47
      %s231 = scalar_select %p230, %s229, 47
      %p232 = scmp.lt.s32.totalorder %s21, 0
      %s233 = scalar_select %p232, %s21, 0
      %s234 = sadd.s32 %s233, %s231
      %s235 = smul.addr %s234, 4
      %s236 = scalar_lea.vmem %s0, %s235
      %s237 = smul.u32 16, %s19
      %s238 = smul.u32 16, %s21
      %p239 = scmp.lt.s32.totalorder %s238, 15
      %s240 = scalar_select %p239, %s238, 15
      %p241 = scmp.lt.s32.totalorder %s20, 0
      %s242 = scalar_select %p241, %s20, 0
      %s243 = sadd.s32 %s242, %s240
      %s244 = smul.addr %s243, 4
      %s245 = scalar_lea.vmem %s1, %s244
      %s246 = smul.u32 16, %s21
      %p247 = scmp.lt.s32.totalorder %s20, 0
      %s248 = scalar_select %p247, %s20, 0
      %s249 = scalar_lea.vmem %s2, %s248
      %s250 = smul.u32 16, %s19
      %p251 = scmp.lt.s32.totalorder %s250, 47
      %s252 = scalar_select %p251, %s250, 47
      %p253 = scmp.lt.s32.totalorder %s20, 0
      %s254 = scalar_select %p253, %s20, 0
      %s255 = sadd.s32 %s254, %s252
      %s256 = smul.addr %s255, 4
      %s257 = scalar_lea.vmem %s3, %s256
      %s258 = smul.u32 16, %s19
      %p259 = scmp.eq.s32.totalorder %s21, 0
      // Predicated region
      $region33: #{graphmae_forward.10} parent=31 // pred_check
        %p260 = pneg %p259
      $region34: #{graphmae_forward.10} parent=31 // pred_check_branch
        %262 = sbr.rel (%p260) target = $region36
      $region35: #{graphmae_forward.10} parent=31 // pred_region
        %263 = vst [vmem:[#allocation2] sm:$0xff] 0.0
        %264 = vst [vmem:[#allocation2 + $0x8] sm:$0xff] 0.0
        %265 = vst [vmem:[#allocation2 + $0x10] sm:$0xff] 0.0
        %266 = vst [vmem:[#allocation2 + $0x18] sm:$0xff] 0.0
        %267 = vst [vmem:[#allocation2 + $0x20] sm:$0xff] 0.0
        %268 = vst [vmem:[#allocation2 + $0x28] sm:$0xff] 0.0
        %269 = vst [vmem:[#allocation2 + $0x30] sm:$0xff] 0.0
        %270 = vst [vmem:[#allocation2 + $0x38] sm:$0xff] 0.0
        %271 = vst [vmem:[#allocation2 + $0x40] sm:$0xff] 0.0
        %272 = vst [vmem:[#allocation2 + $0x48] sm:$0xff] 0.0
        %273 = vst [vmem:[#allocation2 + $0x50] sm:$0xff] 0.0
        %274 = vst [vmem:[#allocation2 + $0x58] sm:$0xff] 0.0
        %275 = vst [vmem:[#allocation2 + $0x60] sm:$0xff] 0.0
        %276 = vst [vmem:[#allocation2 + $0x68] sm:$0xff] 0.0
        %277 = vst [vmem:[#allocation2 + $0x70] sm:$0xff] 0.0
        %278 = vst [vmem:[#allocation2 + $0x78] sm:$0xff] 0.0
      $region36: #{graphmae_forward.10} parent=31 // pred_fallthru
        _
      %v279 = vld [vmem:[%s236] sm:$0xf]
      %v280 = vld [vmem:[%s236 + $0x4] sm:$0xf]
      %v281 = vld [vmem:[%s236 + $0x8] sm:$0xf]
      %v282 = vld [vmem:[%s236 + $0xc] sm:$0xf]
      %v283 = vld [vmem:[%s236 + $0x10] sm:$0xf]
      %v284 = vld [vmem:[%s236 + $0x14] sm:$0xf]
      %v285 = vld [vmem:[%s236 + $0x18] sm:$0xf]
      %v286 = vld [vmem:[%s236 + $0x1c] sm:$0xf]
      %v287 = vld [vmem:[%s236 + $0x20] sm:$0xf]
      %v288 = vld [vmem:[%s236 + $0x24] sm:$0xf]
      %v289 = vld [vmem:[%s236 + $0x28] sm:$0xf]
      %v290 = vld [vmem:[%s236 + $0x2c] sm:$0xf]
      %v291 = vld [vmem:[%s236 + $0x30] sm:$0xf]
      %v292 = vld [vmem:[%s236 + $0x34] sm:$0xf]
      %v293 = vld [vmem:[%s236 + $0x38] sm:$0xf]
      %v294 = vld [vmem:[%s236 + $0x3c] sm:$0xf]
      %v295 = vld [vmem:[#allocation2] sm:$0xff]
      %v296 = vld [vmem:[#allocation2 + $0x8] sm:$0xff]
      %v297 = vld [vmem:[#allocation2 + $0x10] sm:$0xff]
      %v298 = vld [vmem:[#allocation2 + $0x18] sm:$0xff]
      %v299 = vld [vmem:[#allocation2 + $0x20] sm:$0xff]
      %v300 = vld [vmem:[#allocation2 + $0x28] sm:$0xff]
      %v301 = vld [vmem:[#allocation2 + $0x30] sm:$0xff]
      %v302 = vld [vmem:[#allocation2 + $0x38] sm:$0xff]
      %v303 = vld [vmem:[#allocation2 + $0x40] sm:$0xff]
      %v304 = vld [vmem:[#allocation2 + $0x48] sm:$0xff]
      %v305 = vld [vmem:[#allocation2 + $0x50] sm:$0xff]
      %v306 = vld [vmem:[#allocation2 + $0x58] sm:$0xff]
      %v307 = vld [vmem:[#allocation2 + $0x60] sm:$0xff]
      %v308 = vld [vmem:[#allocation2 + $0x68] sm:$0xff]
      %v309 = vld [vmem:[#allocation2 + $0x70] sm:$0xff]
      %v310 = vld [vmem:[#allocation2 + $0x78] sm:$0xff]
      %v311 = vld [vmem:[%s245] sm:$0xf]
      %v312 = vld [vmem:[%s245 + $0x4] sm:$0xf]
      %v313 = vld [vmem:[%s245 + $0x8] sm:$0xf]
      %v314 = vld [vmem:[%s245 + $0xc] sm:$0xf]
      %v315 = vld [vmem:[%s245 + $0x10] sm:$0xf]
      %v316 = vld [vmem:[%s245 + $0x14] sm:$0xf]
      %v317 = vld [vmem:[%s245 + $0x18] sm:$0xf]
      %v318 = vld [vmem:[%s245 + $0x1c] sm:$0xf]
      %v319 = vld [vmem:[%s245 + $0x20] sm:$0xf]
      %v320 = vld [vmem:[%s245 + $0x24] sm:$0xf]
      %v321 = vld [vmem:[%s245 + $0x28] sm:$0xf]
      %v322 = vld [vmem:[%s245 + $0x2c] sm:$0xf]
      %v323 = vld [vmem:[%s245 + $0x30] sm:$0xf]
      %v324 = vld [vmem:[%s245 + $0x34] sm:$0xf]
      %v325 = vld [vmem:[%s245 + $0x38] sm:$0xf]
      %v326 = vld [vmem:[%s245 + $0x3c] sm:$0xf]
      %v343 = vunpack.c.l.b16 %v279
      %v344 = vunpack.c.l.b16 %v280
      %v345 = vunpack.c.l.b16 %v281
      %v346 = vunpack.c.l.b16 %v282
      %v347 = vunpack.c.l.b16 %v283
      %v348 = vunpack.c.l.b16 %v284
      %v349 = vunpack.c.l.b16 %v285
      %v350 = vunpack.c.l.b16 %v286
      %v351 = vunpack.c.l.b16 %v287
      %v352 = vunpack.c.l.b16 %v288
      %v353 = vunpack.c.l.b16 %v289
      %v354 = vunpack.c.l.b16 %v290
      %v355 = vunpack.c.l.b16 %v291
      %v356 = vunpack.c.l.b16 %v292
      %v357 = vunpack.c.l.b16 %v293
      %v358 = vunpack.c.l.b16 %v294
      %v359 = vpack.c.b16 %v344, %v343
      %v360 = vpack.c.b16 %v346, %v345
      %v361 = vpack.c.b16 %v348, %v347
      %v362 = vpack.c.b16 %v350, %v349
      %v363 = vpack.c.b16 %v352, %v351
      %v364 = vpack.c.b16 %v354, %v353
      %v365 = vpack.c.b16 %v356, %v355
      %v366 = vpack.c.b16 %v358, %v357
      %v391 = vunpack.c.l.b16 %v311
      %v392 = vunpack.c.l.b16 %v312
      %v393 = vunpack.c.l.b16 %v313
      %v394 = vunpack.c.l.b16 %v314
      %v395 = vunpack.c.l.b16 %v315
      %v396 = vunpack.c.l.b16 %v316
      %v397 = vunpack.c.l.b16 %v317
      %v398 = vunpack.c.l.b16 %v318
      %v399 = vunpack.c.l.b16 %v319
      %v400 = vunpack.c.l.b16 %v320
      %v401 = vunpack.c.l.b16 %v321
      %v402 = vunpack.c.l.b16 %v322
      %v403 = vunpack.c.l.b16 %v323
      %v404 = vunpack.c.l.b16 %v324
      %v405 = vunpack.c.l.b16 %v325
      %v406 = vunpack.c.l.b16 %v326
      %v407 = vpack.c.b16 %v392, %v391
      %v408 = vpack.c.b16 %v394, %v393
      %v409 = vpack.c.b16 %v396, %v395
      %v410 = vpack.c.b16 %v398, %v397
      %v411 = vpack.c.b16 %v400, %v399
      %v412 = vpack.c.b16 %v402, %v401
      %v413 = vpack.c.b16 %v404, %v403
      %v414 = vpack.c.b16 %v406, %v405
      %423 = vmatpush.bf16.msra.mxu0 %v414
      %424 = vmatpush.bf16.msra.mxu0 %v413
      %425 = vmatpush.bf16.msra.mxu0 %v412
      %426 = vmatpush.bf16.msra.mxu0 %v411
      %427 = vmatpush.bf16.msra.mxu0 %v410
      %428 = vmatpush.bf16.msra.mxu0 %v409
      %429 = vmatpush.bf16.msra.mxu0 %v408
      %430 = vmatpush.bf16.msra.mxu0 %v407
      %431 = vmatmul.bf16.gmra.mxu0 %v359
      %v432 = vpop.f32.mrf.mxu0
      %v433 = vadd.f32 0.0, %v432
      %v434 = vpop.f32.mrf.mxu0
      %v435 = vadd.f32 0.0, %v434
      %436 = vmatmul.bf16.gmra.mxu0 %v360
      %v437 = vpop.f32.mrf.mxu0
      %v438 = vadd.f32 0.0, %v437
      %v439 = vpop.f32.mrf.mxu0
      %v440 = vadd.f32 0.0, %v439
      %441 = vmatmul.bf16.gmra.mxu0 %v361
      %v442 = vpop.f32.mrf.mxu0
      %v443 = vadd.f32 0.0, %v442
      %v444 = vpop.f32.mrf.mxu0
      %v445 = vadd.f32 0.0, %v444
      %446 = vmatmul.bf16.gmra.mxu0 %v362
      %v447 = vpop.f32.mrf.mxu0
      %v448 = vadd.f32 0.0, %v447
      %v449 = vpop.f32.mrf.mxu0
      %v450 = vadd.f32 0.0, %v449
      %451 = vmatmul.bf16.gmra.mxu0 %v363
      %v452 = vpop.f32.mrf.mxu0
      %v453 = vadd.f32 0.0, %v452
      %v454 = vpop.f32.mrf.mxu0
      %v455 = vadd.f32 0.0, %v454
      %456 = vmatmul.bf16.gmra.mxu0 %v364
      %v457 = vpop.f32.mrf.mxu0
      %v458 = vadd.f32 0.0, %v457
      %v459 = vpop.f32.mrf.mxu0
      %v460 = vadd.f32 0.0, %v459
      %461 = vmatmul.bf16.gmra.mxu0 %v365
      %v462 = vpop.f32.mrf.mxu0
      %v463 = vadd.f32 0.0, %v462
      %v464 = vpop.f32.mrf.mxu0
      %v465 = vadd.f32 0.0, %v464
      %466 = vmatmul.bf16.gmra.mxu0 %v366
      %v467 = vpop.f32.mrf.mxu0
      %v468 = vadd.f32 0.0, %v467
      %v469 = vpop.f32.mrf.mxu0
      %v470 = vadd.f32 0.0, %v469
      %471 = vdwg.mxu0
      %v472 = vadd.f32 %v295, %v433
      %v473 = vadd.f32 %v296, %v435
      %v474 = vadd.f32 %v297, %v438
      %v475 = vadd.f32 %v298, %v440
      %v476 = vadd.f32 %v299, %v443
      %v477 = vadd.f32 %v300, %v445
      %v478 = vadd.f32 %v301, %v448
      %v479 = vadd.f32 %v302, %v450
      %v480 = vadd.f32 %v303, %v453
      %v481 = vadd.f32 %v304, %v455
      %v482 = vadd.f32 %v305, %v458
      %v483 = vadd.f32 %v306, %v460
      %v484 = vadd.f32 %v307, %v463
      %v485 = vadd.f32 %v308, %v465
      %v486 = vadd.f32 %v309, %v468
      %v487 = vadd.f32 %v310, %v470
      %488 = vst [vmem:[#allocation2] sm:$0xff] %v472
      %489 = vst [vmem:[#allocation2 + $0x8] sm:$0xff] %v473
      %490 = vst [vmem:[#allocation2 + $0x10] sm:$0xff] %v474
      %491 = vst [vmem:[#allocation2 + $0x18] sm:$0xff] %v475
      %492 = vst [vmem:[#allocation2 + $0x20] sm:$0xff] %v476
      %493 = vst [vmem:[#allocation2 + $0x28] sm:$0xff] %v477
      %494 = vst [vmem:[#allocation2 + $0x30] sm:$0xff] %v478
      %495 = vst [vmem:[#allocation2 + $0x38] sm:$0xff] %v479
      %496 = vst [vmem:[#allocation2 + $0x40] sm:$0xff] %v480
      %497 = vst [vmem:[#allocation2 + $0x48] sm:$0xff] %v481
      %498 = vst [vmem:[#allocation2 + $0x50] sm:$0xff] %v482
      %499 = vst [vmem:[#allocation2 + $0x58] sm:$0xff] %v483
      %500 = vst [vmem:[#allocation2 + $0x60] sm:$0xff] %v484
      %501 = vst [vmem:[#allocation2 + $0x68] sm:$0xff] %v485
      %502 = vst [vmem:[#allocation2 + $0x70] sm:$0xff] %v486
      %503 = vst [vmem:[#allocation2 + $0x78] sm:$0xff] %v487
      // Predicated region
      $region37: #{graphmae_forward.10} parent=31 // pred_check
        %p504 = pneg %p259
      $region38: #{graphmae_forward.10} parent=31 // pred_check_branch
        %506 = sbr.rel (%p504) target = $region40
      $region39: #{graphmae_forward.10} parent=31 // pred_region
        %v507 = vld [vmem:[#allocation2] sm:$0xff]
        %v508 = vld [vmem:[#allocation2 + $0x8] sm:$0xff]
        %v509 = vld [vmem:[#allocation2 + $0x10] sm:$0xff]
        %v510 = vld [vmem:[#allocation2 + $0x18] sm:$0xff]
        %v511 = vld [vmem:[#allocation2 + $0x20] sm:$0xff]
        %v512 = vld [vmem:[#allocation2 + $0x28] sm:$0xff]
        %v513 = vld [vmem:[#allocation2 + $0x30] sm:$0xff]
        %v514 = vld [vmem:[#allocation2 + $0x38] sm:$0xff]
        %v515 = vld [vmem:[#allocation2 + $0x40] sm:$0xff]
        %v516 = vld [vmem:[#allocation2 + $0x48] sm:$0xff]
        %v517 = vld [vmem:[#allocation2 + $0x50] sm:$0xff]
        %v518 = vld [vmem:[#allocation2 + $0x58] sm:$0xff]
        %v519 = vld [vmem:[#allocation2 + $0x60] sm:$0xff]
        %v520 = vld [vmem:[#allocation2 + $0x68] sm:$0xff]
        %v521 = vld [vmem:[#allocation2 + $0x70] sm:$0xff]
        %v522 = vld [vmem:[#allocation2 + $0x78] sm:$0xff]
        %v523 = vld [vmem:[%s249] sm:$0x1]
        %v525 = vperm.slane %v523, 0
        %v527 = vadd.f32 %v507, %v525
        %v528 = vadd.f32 %v508, %v525
        %v529 = vadd.f32 %v509, %v525
        %v530 = vadd.f32 %v510, %v525
        %v531 = vadd.f32 %v511, %v525
        %v532 = vadd.f32 %v512, %v525
        %v533 = vadd.f32 %v513, %v525
        %v534 = vadd.f32 %v514, %v525
        %v535 = vadd.f32 %v515, %v525
        %v536 = vadd.f32 %v516, %v525
        %v537 = vadd.f32 %v517, %v525
        %v538 = vadd.f32 %v518, %v525
        %v539 = vadd.f32 %v519, %v525
        %v540 = vadd.f32 %v520, %v525
        %v541 = vadd.f32 %v521, %v525
        %v542 = vadd.f32 %v522, %v525
        %v543 = vmax.f32 %v527, 0.0
        %v544 = vmax.f32 %v528, 0.0
        %v545 = vmax.f32 %v529, 0.0
        %v546 = vmax.f32 %v530, 0.0
        %v547 = vmax.f32 %v531, 0.0
        %v548 = vmax.f32 %v532, 0.0
        %v549 = vmax.f32 %v533, 0.0
        %v550 = vmax.f32 %v534, 0.0
        %v551 = vmax.f32 %v535, 0.0
        %v552 = vmax.f32 %v536, 0.0
        %v553 = vmax.f32 %v537, 0.0
        %v554 = vmax.f32 %v538, 0.0
        %v555 = vmax.f32 %v539, 0.0
        %v556 = vmax.f32 %v540, 0.0
        %v557 = vmax.f32 %v541, 0.0
        %v558 = vmax.f32 %v542, 0.0
        %v559 = vpack.c.bf16 %v543, %v543
        %v560 = vpack.c.bf16 %v544, %v544
        %v561 = vpack.c.bf16 %v545, %v545
        %v562 = vpack.c.bf16 %v546, %v546
        %v563 = vpack.c.bf16 %v547, %v547
        %v564 = vpack.c.bf16 %v548, %v548
        %v565 = vpack.c.bf16 %v549, %v549
        %v566 = vpack.c.bf16 %v550, %v550
        %v567 = vpack.c.bf16 %v551, %v551
        %v568 = vpack.c.bf16 %v552, %v552
        %v569 = vpack.c.bf16 %v553, %v553
        %v570 = vpack.c.bf16 %v554, %v554
        %v571 = vpack.c.bf16 %v555, %v555
        %v572 = vpack.c.bf16 %v556, %v556
        %v573 = vpack.c.bf16 %v557, %v557
        %v574 = vpack.c.bf16 %v558, %v558
        %575 = vst [vmem:[%s257] sm:$0xf] %v559
        %576 = vst [vmem:[%s257 + $0x4] sm:$0xf] %v560
        %577 = vst [vmem:[%s257 + $0x8] sm:$0xf] %v561
        %578 = vst [vmem:[%s257 + $0xc] sm:$0xf] %v562
        %579 = vst [vmem:[%s257 + $0x10] sm:$0xf] %v563
        %580 = vst [vmem:[%s257 + $0x14] sm:$0xf] %v564
        %581 = vst [vmem:[%s257 + $0x18] sm:$0xf] %v565
        %582 = vst [vmem:[%s257 + $0x1c] sm:$0xf] %v566
        %583 = vst [vmem:[%s257 + $0x20] sm:$0xf] %v567
        %584 = vst [vmem:[%s257 + $0x24] sm:$0xf] %v568
        %585 = vst [vmem:[%s257 + $0x28] sm:$0xf] %v569
        %586 = vst [vmem:[%s257 + $0x2c] sm:$0xf] %v570
        %587 = vst [vmem:[%s257 + $0x30] sm:$0xf] %v571
        %588 = vst [vmem:[%s257 + $0x34] sm:$0xf] %v572
        %589 = vst [vmem:[%s257 + $0x38] sm:$0xf] %v573
        %590 = vst [vmem:[%s257 + $0x3c] sm:$0xf] %v574
      $region40: #{graphmae_forward.10} parent=31 // pred_fallthru
        _
      %s591 = smul.u32 16, %s19
      %p592 = scmp.lt.s32.totalorder %s591, 47
      %s593 = scalar_select %p592, %s591, 47
      %p594 = scmp.lt.s32.totalorder %s20, 0
      %s595 = scalar_select %p594, %s20, 0
      %s596 = sadd.s32 %s595, %s593
      %s597 = smul.addr %s596, 4
      %s598 = scalar_lea.vmem %s3, %s597
      // Predicated region
      $region41: #{graphmae_forward.10} parent=31 // pred_check
        %p599 = pneg %p135
      $region42: #{graphmae_forward.10} parent=31 // pred_check_branch
        %601 = sbr.rel (%p599) target = $region44
      $region43: #{graphmae_forward.10} parent=31 // pred_region
        %s602 = smul.u32 16, %s19
      $region44: #{graphmae_forward.10} parent=31 // pred_fallthru
        _
    $region32: #{graphmae_forward.10} parent=5 // pred_fallthru
      _
    %p603 = scmp.le.s32.totalorder 2, %s9
    // Predicated region
    $region45: #{graphmae_forward.10} parent=5 // pred_check
      %p604 = pneg %p603
    $region46: #{graphmae_forward.10} parent=5 // pred_check_branch
      %606 = sbr.rel (%p604) target = $region48
    $region47: #{graphmae_forward.10} parent=5 // pred_region
      %s607 = ssub.s32 %s9, 2
      // Predicated region
      $region49: #{graphmae_forward.10} parent=47 // pred_check
        %p608 = pneg %p141
      $region50: #{graphmae_forward.10} parent=47 // pred_check_branch
        %610 = sbr.rel (%p608) target = $region52
      $region51: #{graphmae_forward.10} parent=47 // pred_region
        %s611 = smul.u32 16, %s22
        %p612 = scmp.lt.s32.totalorder %s611, 47
        %s613 = scalar_select %p612, %s611, 47
        %p614 = scmp.lt.s32.totalorder %s23, 0
        %s615 = scalar_select %p614, %s23, 0
        %s616 = sadd.s32 %s615, %s613
        %s617 = smul.addr %s616, 4
        %s618 = scalar_lea.vmem %s3, %s617
      $region52: #{graphmae_forward.10} parent=47 // pred_fallthru
        _
    $region48: #{graphmae_forward.10} parent=5 // pred_fallthru
      _
  $region6: #{graphmae_forward.10} parent=0 // loop_footer
    %s13 = sadd.s32 1, %s9
  $region7: #{graphmae_forward.10} parent=0 // loop_footer_branch
    %8 = sbr.rel target = $region3
  $region8: #{graphmae_forward.10} parent=0 // loop_exit
    _

// kernel: graphmae_forward.11
$region0: #{graphmae_forward.11}
  #allocation0 [shape = 'u32[]', space=smem, size = 0x4, offset = 0x4, fixed_abs, tag = 'smem constant byte address 0x4 - core index']
  #allocation1 [shape = 'u32[72,128]{1,0:T(1,128)}', space=vmem, size = 0x9000, scoped, tag = 'internal scratch']
  #allocation2 [shape = 'f32[128,128]{1,0:T(8,128)}', space=vmem, size = 0x10000, scoped, tag = 'scratch operand']
  %s0 = inlined_call_operand.vmem [shape: bf16[384,128], index: 0, kind: input, shape index: {}]
  %s1 = inlined_call_operand.vmem [shape: bf16[128,128], index: 1, kind: input, shape index: {}]
  %s2 = inlined_call_operand.vmem [shape: f32[1,128], index: 2, kind: input, shape index: {}]
  %s3 = inlined_call_operand.vmem [shape: f32[384,128], index: 3, kind: output, shape index: {}]
  %s4 = sld [smem:[#allocation0]]
  $region53: #{graphmae_forward.11} parent=0
    _
  %s6 = ssub.s32 1, %s4
  %s7 = scalar_select 0, %s6, %s4
  loop: start=0, step=1, limit=5
  $region2: #{graphmae_forward.11} parent=0 // loop_pre_header
    _
  $region3: #{graphmae_forward.11} parent=0 // loop_header
    %s9 = sphi 0, %s13
    %p10 = scmp.ge.s32.totalorder %s9, 5
    %s16 = sphi 0, %s35
    %s17 = sphi 0, %s31
    %s18 = sphi 0, %s27
    %s19 = sphi 0, %s16
    %s20 = sphi 0, %s17
    %s21 = sphi 0, %s18
    %s22 = sphi 0, %s19
    %s23 = sphi 0, %s20
    %s24 = sphi 0, %s21
    %s40 = sphi 0, %s42
    %s43 = sphi 0, %s40
    %s44 = sphi 0, %s43
    %s60 = sphi 0, %s44
    %s68 = sphi 0, %s70
    %s71 = sphi 0, %s68
    %s72 = sphi 0, %s71
    %s88 = sphi 0, %s72
    %s94 = sphi 0, %s96
    %s97 = sphi 0, %s94
    %s98 = sphi 0, %s97
    %s114 = sphi 0, %s98
    %s122 = sphi 0, %s124
    %s125 = sphi 0, %s122
    %s126 = sphi 0, %s125
    %s142 = sphi 0, %s126
  $region4: #{graphmae_forward.11} parent=0 // loop_header_branch
    %12 = sbr.rel (%p10) target = $region8
  $region5: #{graphmae_forward.11} parent=0 // loop_body
    %s14 = ssub.s32 %s9, 1
    %s15 = ssub.s32 %s9, 2
    %s25 = sadd.s32 1, %s18
    %p26 = scmp.ge.s32.totalorder %s25, 1
    %s27 = scalar_select %p26, 0, %s25
    %s28 = sadd.s32 1, %s17
    %s29 = scalar_select %p26, %s28, %s17
    %p30 = scmp.ge.s32.totalorder %s29, 1
    %s31 = scalar_select %p30, 0, %s29
    %s32 = sadd.s32 1, %s16
    %s33 = scalar_select %p30, %s32, %s16
    %p34 = scmp.ge.s32.totalorder %s33, 3
    %s35 = scalar_select %p34, 0, %s33
    %s36 = ssub.s32 %s16, %s35
    %s37 = ssub.s32 %s18, %s27
    %s38 = sor.u32 %s36, %s37
    %p39 = scmp.eq.s32.totalorder %s38, 0
    %s41 = sadd.s32 %s40, 1
    %s42 = scalar_select %p39, %s40, %s41
    %p45 = pneg %p39
    %p46 = scmp.eq.s32.totalorder %s9, 2
    %p47 = por %p45, %p46
    %p48 = scmp.ne.s32.totalorder %s40, %s43
    %p49 = scmp.eq.s32.totalorder %s9, 0
    %p50 = por %p48, %p49
    %p51 = scmp.ne.s32.totalorder %s40, %s43
    %p52 = scmp.eq.s32.totalorder %s14, 2
    %p53 = por %p51, %p52
    %p54 = scmp.ne.s32.totalorder %s43, %s44
    %p55 = scmp.eq.s32.totalorder %s14, 0
    %p56 = por %p54, %p55
    %p57 = scmp.ne.s32.totalorder %s43, %s44
    %p58 = scmp.eq.s32.totalorder %s15, 2
    %p59 = por %p57, %p58
    %p61 = scmp.ne.s32.totalorder %s44, %s60
    %p62 = scmp.eq.s32.totalorder %s15, 0
    %p63 = por %p61, %p62
    %s64 = ssub.s32 %s18, %s27
    %s65 = ssub.s32 %s17, %s31
    %s66 = sor.u32 %s64, %s65
    %p67 = scmp.eq.s32.totalorder %s66, 0
    %s69 = sadd.s32 %s68, 1
    %s70 = scalar_select %p67, %s68, %s69
    %p73 = pneg %p67
    %p74 = scmp.eq.s32.totalorder %s9, 2
    %p75 = por %p73, %p74
    %p76 = scmp.ne.s32.totalorder %s68, %s71
    %p77 = scmp.eq.s32.totalorder %s9, 0
    %p78 = por %p76, %p77
    %p79 = scmp.ne.s32.totalorder %s68, %s71
    %p80 = scmp.eq.s32.totalorder %s14, 2
    %p81 = por %p79, %p80
    %p82 = scmp.ne.s32.totalorder %s71, %s72
    %p83 = scmp.eq.s32.totalorder %s14, 0
    %p84 = por %p82, %p83
    %p85 = scmp.ne.s32.totalorder %s71, %s72
    %p86 = scmp.eq.s32.totalorder %s15, 2
    %p87 = por %p85, %p86
    %p89 = scmp.ne.s32.totalorder %s72, %s88
    %p90 = scmp.eq.s32.totalorder %s15, 0
    %p91 = por %p89, %p90
    %s92 = ssub.s32 %s17, %s31
    %p93 = scmp.eq.s32.totalorder %s92, 0
    %s95 = sadd.s32 %s94, 1
    %s96 = scalar_select %p93, %s94, %s95
    %p99 = pneg %p93
    %p100 = scmp.eq.s32.totalorder %s9, 2
    %p101 = por %p99, %p100
    %p102 = scmp.ne.s32.totalorder %s94, %s97
    %p103 = scmp.eq.s32.totalorder %s9, 0
    %p104 = por %p102, %p103
    %p105 = scmp.ne.s32.totalorder %s94, %s97
    %p106 = scmp.eq.s32.totalorder %s14, 2
    %p107 = por %p105, %p106
    %p108 = scmp.ne.s32.totalorder %s97, %s98
    %p109 = scmp.eq.s32.totalorder %s14, 0
    %p110 = por %p108, %p109
    %p111 = scmp.ne.s32.totalorder %s97, %s98
    %p112 = scmp.eq.s32.totalorder %s15, 2
    %p113 = por %p111, %p112
    %p115 = scmp.ne.s32.totalorder %s98, %s114
    %p116 = scmp.eq.s32.totalorder %s15, 0
    %p117 = por %p115, %p116
    %s118 = ssub.s32 %s16, %s35
    %s119 = ssub.s32 %s17, %s31
    %s120 = sor.u32 %s118, %s119
    %p121 = scmp.eq.s32.totalorder %s120, 0
    %s123 = sadd.s32 %s122, 1
    %s124 = scalar_select %p121, %s122, %s123
    %p127 = pneg %p121
    %p128 = scmp.eq.s32.totalorder %s9, 2
    %p129 = por %p127, %p128
    %p130 = scmp.ne.s32.totalorder %s122, %s125
    %p131 = scmp.eq.s32.totalorder %s9, 0
    %p132 = por %p130, %p131
    %p133 = scmp.ne.s32.totalorder %s122, %s125
    %p134 = scmp.eq.s32.totalorder %s14, 2
    %p135 = por %p133, %p134
    %p136 = scmp.ne.s32.totalorder %s125, %s126
    %p137 = scmp.eq.s32.totalorder %s14, 0
    %p138 = por %p136, %p137
    %p139 = scmp.ne.s32.totalorder %s125, %s126
    %p140 = scmp.eq.s32.totalorder %s15, 2
    %p141 = por %p139, %p140
    %p143 = scmp.ne.s32.totalorder %s126, %s142
    %p144 = scmp.eq.s32.totalorder %s15, 0
    %p145 = por %p143, %p144
    %p146 = scmp.le.s32.totalorder 1, %s9
    %p147 = scmp.lt.s32.totalorder %s9, 4
    %p148 = pnand %p146, %p147
    %p149 = pneg %p148
    // Predicated region
    $region9: #{graphmae_forward.11} parent=5 // pred_check
      _
    $region10: #{graphmae_forward.11} parent=5 // pred_check_branch
      %151 = sbr.rel (%p148) target = $region12
    $region11: #{graphmae_forward.11} parent=5 // pred_region
      %s152 = ssub.s32 %s9, 1
      // Predicated region
      $region13: #{graphmae_forward.11} parent=11 // pred_check
        %p153 = pneg %p84
      $region14: #{graphmae_forward.11} parent=11 // pred_check_branch
        %155 = sbr.rel (%p153) target = $region16
      $region15: #{graphmae_forward.11} parent=11 // pred_region
        %s156 = smul.u32 16, %s21
        %p157 = scmp.lt.s32.totalorder %s156, 15
        %s158 = scalar_select %p157, %s156, 15
        %p159 = scmp.lt.s32.totalorder %s20, 0
        %s160 = scalar_select %p159, %s20, 0
        %s161 = sadd.s32 %s160, %s158
        %s162 = smul.addr %s161, 4
        %s163 = scalar_lea.vmem %s1, %s162
        %s164 = smul.u32 16, %s21
      $region16: #{graphmae_forward.11} parent=11 // pred_fallthru
        _
      // Predicated region
      $region17: #{graphmae_forward.11} parent=11 // pred_check
        %p165 = pneg %p110
      $region18: #{graphmae_forward.11} parent=11 // pred_check_branch
        %167 = sbr.rel (%p165) target = $region20
      $region19: #{graphmae_forward.11} parent=11 // pred_region
        %p168 = scmp.lt.s32.totalorder %s20, 0
        %s169 = scalar_select %p168, %s20, 0
        %s170 = scalar_lea.vmem %s2, %s169
      $region20: #{graphmae_forward.11} parent=11 // pred_fallthru
        _
    $region12: #{graphmae_forward.11} parent=5 // pred_fallthru
      _
    %p171 = scmp.lt.s32.totalorder %s9, 3
    // Predicated region
    $region21: #{graphmae_forward.11} parent=5 // pred_check
      %p172 = pneg %p171
    $region22: #{graphmae_forward.11} parent=5 // pred_check_branch
      %174 = sbr.rel (%p172) target = $region24
    $region23: #{graphmae_forward.11} parent=5 // pred_region
      // Predicated region
      $region25: #{graphmae_forward.11} parent=23 // pred_check
        %p175 = pneg %p50
      $region26: #{graphmae_forward.11} parent=23 // pred_check_branch
        %177 = sbr.rel (%p175) target = $region28
      $region27: #{graphmae_forward.11} parent=23 // pred_region
        %s178 = smul.u32 16, %s16
        %p179 = scmp.lt.s32.totalorder %s178, 47
        %s180 = scalar_select %p179, %s178, 47
        %p181 = scmp.lt.s32.totalorder %s18, 0
        %s182 = scalar_select %p181, %s18, 0
        %s183 = sadd.s32 %s182, %s180
        %s184 = smul.addr %s183, 4
        %s185 = scalar_lea.vmem %s0, %s184
        %s186 = smul.u32 16, %s16
      $region28: #{graphmae_forward.11} parent=23 // pred_fallthru
        _
    $region24: #{graphmae_forward.11} parent=5 // pred_fallthru
      _
    %p187 = scmp.le.s32.totalorder 1, %s9
    %p188 = scmp.lt.s32.totalorder %s9, 4
    %p189 = pnand %p187, %p188
    %p190 = pneg %p189
    // Predicated region
    $region29: #{graphmae_forward.11} parent=5 // pred_check
      _
    $region30: #{graphmae_forward.11} parent=5 // pred_check_branch
      %192 = sbr.rel (%p189) target = $region32
    $region31: #{graphmae_forward.11} parent=5 // pred_region
      %s193 = ssub.s32 %s9, 1
      %s194 = smul.u32 16, %s19
      %p195 = scmp.lt.s32.totalorder %s194, 47
      %s196 = scalar_select %p195, %s194, 47
      %p197 = scmp.lt.s32.totalorder %s21, 0
      %s198 = scalar_select %p197, %s21, 0
      %s199 = sadd.s32 %s198, %s196
      %s200 = smul.addr %s199, 4
      %s201 = scalar_lea.vmem %s0, %s200
      %p202 = pneg %p56
      %p203 = pneg %p53
      %s204 = smul.u32 16, %s21
      %p205 = scmp.lt.s32.totalorder %s204, 15
      %s206 = scalar_select %p205, %s204, 15
      %p207 = scmp.lt.s32.totalorder %s20, 0
      %s208 = scalar_select %p207, %s20, 0
      %s209 = sadd.s32 %s208, %s206
      %s210 = smul.addr %s209, 4
      %s211 = scalar_lea.vmem %s1, %s210
      %p212 = pneg %p84
      %p213 = pneg %p81
      %p214 = scmp.lt.s32.totalorder %s20, 0
      %s215 = scalar_select %p214, %s20, 0
      %s216 = scalar_lea.vmem %s2, %s215
      %p217 = pneg %p110
      %p218 = pneg %p107
      %p219 = pneg %p138
      %p220 = pneg %p135
      %s221 = smul.u32 16, %s19
      %p222 = scmp.lt.s32.totalorder %s221, 47
      %s223 = scalar_select %p222, %s221, 47
      %p224 = scmp.lt.s32.totalorder %s20, 0
      %s225 = scalar_select %p224, %s20, 0
      %s226 = sadd.s32 %s225, %s223
      %s227 = smul.addr %s226, 8
      %s228 = scalar_lea.vmem %s3, %s227
      %s229 = smul.u32 16, %s19
      %p230 = scmp.lt.s32.totalorder %s229, 47
      %s231 = scalar_select %p230, %s229, 47
      %p232 = scmp.lt.s32.totalorder %s21, 0
      %s233 = scalar_select %p232, %s21, 0
      %s234 = sadd.s32 %s233, %s231
      %s235 = smul.addr %s234, 4
      %s236 = scalar_lea.vmem %s0, %s235
      %s237 = smul.u32 16, %s19
      %s238 = smul.u32 16, %s21
      %p239 = scmp.lt.s32.totalorder %s238, 15
      %s240 = scalar_select %p239, %s238, 15
      %p241 = scmp.lt.s32.totalorder %s20, 0
      %s242 = scalar_select %p241, %s20, 0
      %s243 = sadd.s32 %s242, %s240
      %s244 = smul.addr %s243, 4
      %s245 = scalar_lea.vmem %s1, %s244
      %s246 = smul.u32 16, %s21
      %p247 = scmp.lt.s32.totalorder %s20, 0
      %s248 = scalar_select %p247, %s20, 0
      %s249 = scalar_lea.vmem %s2, %s248
      %s250 = smul.u32 16, %s19
      %p251 = scmp.lt.s32.totalorder %s250, 47
      %s252 = scalar_select %p251, %s250, 47
      %p253 = scmp.lt.s32.totalorder %s20, 0
      %s254 = scalar_select %p253, %s20, 0
      %s255 = sadd.s32 %s254, %s252
      %s256 = smul.addr %s255, 8
      %s257 = scalar_lea.vmem %s3, %s256
      %s258 = smul.u32 16, %s19
      %p259 = scmp.eq.s32.totalorder %s21, 0
      // Predicated region
      $region33: #{graphmae_forward.11} parent=31 // pred_check
        %p260 = pneg %p259
      $region34: #{graphmae_forward.11} parent=31 // pred_check_branch
        %262 = sbr.rel (%p260) target = $region36
      $region35: #{graphmae_forward.11} parent=31 // pred_region
        %263 = vst [vmem:[#allocation2] sm:$0xff] 0.0
        %264 = vst [vmem:[#allocation2 + $0x8] sm:$0xff] 0.0
        %265 = vst [vmem:[#allocation2 + $0x10] sm:$0xff] 0.0
        %266 = vst [vmem:[#allocation2 + $0x18] sm:$0xff] 0.0
        %267 = vst [vmem:[#allocation2 + $0x20] sm:$0xff] 0.0
        %268 = vst [vmem:[#allocation2 + $0x28] sm:$0xff] 0.0
        %269 = vst [vmem:[#allocation2 + $0x30] sm:$0xff] 0.0
        %270 = vst [vmem:[#allocation2 + $0x38] sm:$0xff] 0.0
        %271 = vst [vmem:[#allocation2 + $0x40] sm:$0xff] 0.0
        %272 = vst [vmem:[#allocation2 + $0x48] sm:$0xff] 0.0
        %273 = vst [vmem:[#allocation2 + $0x50] sm:$0xff] 0.0
        %274 = vst [vmem:[#allocation2 + $0x58] sm:$0xff] 0.0
        %275 = vst [vmem:[#allocation2 + $0x60] sm:$0xff] 0.0
        %276 = vst [vmem:[#allocation2 + $0x68] sm:$0xff] 0.0
        %277 = vst [vmem:[#allocation2 + $0x70] sm:$0xff] 0.0
        %278 = vst [vmem:[#allocation2 + $0x78] sm:$0xff] 0.0
      $region36: #{graphmae_forward.11} parent=31 // pred_fallthru
        _
      %v279 = vld [vmem:[%s236] sm:$0xf]
      %v280 = vld [vmem:[%s236 + $0x4] sm:$0xf]
      %v281 = vld [vmem:[%s236 + $0x8] sm:$0xf]
      %v282 = vld [vmem:[%s236 + $0xc] sm:$0xf]
      %v283 = vld [vmem:[%s236 + $0x10] sm:$0xf]
      %v284 = vld [vmem:[%s236 + $0x14] sm:$0xf]
      %v285 = vld [vmem:[%s236 + $0x18] sm:$0xf]
      %v286 = vld [vmem:[%s236 + $0x1c] sm:$0xf]
      %v287 = vld [vmem:[%s236 + $0x20] sm:$0xf]
      %v288 = vld [vmem:[%s236 + $0x24] sm:$0xf]
      %v289 = vld [vmem:[%s236 + $0x28] sm:$0xf]
      %v290 = vld [vmem:[%s236 + $0x2c] sm:$0xf]
      %v291 = vld [vmem:[%s236 + $0x30] sm:$0xf]
      %v292 = vld [vmem:[%s236 + $0x34] sm:$0xf]
      %v293 = vld [vmem:[%s236 + $0x38] sm:$0xf]
      %v294 = vld [vmem:[%s236 + $0x3c] sm:$0xf]
      %v295 = vld [vmem:[#allocation2] sm:$0xff]
      %v296 = vld [vmem:[#allocation2 + $0x8] sm:$0xff]
      %v297 = vld [vmem:[#allocation2 + $0x10] sm:$0xff]
      %v298 = vld [vmem:[#allocation2 + $0x18] sm:$0xff]
      %v299 = vld [vmem:[#allocation2 + $0x20] sm:$0xff]
      %v300 = vld [vmem:[#allocation2 + $0x28] sm:$0xff]
      %v301 = vld [vmem:[#allocation2 + $0x30] sm:$0xff]
      %v302 = vld [vmem:[#allocation2 + $0x38] sm:$0xff]
      %v303 = vld [vmem:[#allocation2 + $0x40] sm:$0xff]
      %v304 = vld [vmem:[#allocation2 + $0x48] sm:$0xff]
      %v305 = vld [vmem:[#allocation2 + $0x50] sm:$0xff]
      %v306 = vld [vmem:[#allocation2 + $0x58] sm:$0xff]
      %v307 = vld [vmem:[#allocation2 + $0x60] sm:$0xff]
      %v308 = vld [vmem:[#allocation2 + $0x68] sm:$0xff]
      %v309 = vld [vmem:[#allocation2 + $0x70] sm:$0xff]
      %v310 = vld [vmem:[#allocation2 + $0x78] sm:$0xff]
      %v311 = vld [vmem:[%s245] sm:$0xf]
      %v312 = vld [vmem:[%s245 + $0x4] sm:$0xf]
      %v313 = vld [vmem:[%s245 + $0x8] sm:$0xf]
      %v314 = vld [vmem:[%s245 + $0xc] sm:$0xf]
      %v315 = vld [vmem:[%s245 + $0x10] sm:$0xf]
      %v316 = vld [vmem:[%s245 + $0x14] sm:$0xf]
      %v317 = vld [vmem:[%s245 + $0x18] sm:$0xf]
      %v318 = vld [vmem:[%s245 + $0x1c] sm:$0xf]
      %v319 = vld [vmem:[%s245 + $0x20] sm:$0xf]
      %v320 = vld [vmem:[%s245 + $0x24] sm:$0xf]
      %v321 = vld [vmem:[%s245 + $0x28] sm:$0xf]
      %v322 = vld [vmem:[%s245 + $0x2c] sm:$0xf]
      %v323 = vld [vmem:[%s245 + $0x30] sm:$0xf]
      %v324 = vld [vmem:[%s245 + $0x34] sm:$0xf]
      %v325 = vld [vmem:[%s245 + $0x38] sm:$0xf]
      %v326 = vld [vmem:[%s245 + $0x3c] sm:$0xf]
      %v343 = vunpack.c.l.b16 %v279
      %v344 = vunpack.c.l.b16 %v280
      %v345 = vunpack.c.l.b16 %v281
      %v346 = vunpack.c.l.b16 %v282
      %v347 = vunpack.c.l.b16 %v283
      %v348 = vunpack.c.l.b16 %v284
      %v349 = vunpack.c.l.b16 %v285
      %v350 = vunpack.c.l.b16 %v286
      %v351 = vunpack.c.l.b16 %v287
      %v352 = vunpack.c.l.b16 %v288
      %v353 = vunpack.c.l.b16 %v289
      %v354 = vunpack.c.l.b16 %v290
      %v355 = vunpack.c.l.b16 %v291
      %v356 = vunpack.c.l.b16 %v292
      %v357 = vunpack.c.l.b16 %v293
      %v358 = vunpack.c.l.b16 %v294
      %v359 = vpack.c.b16 %v344, %v343
      %v360 = vpack.c.b16 %v346, %v345
      %v361 = vpack.c.b16 %v348, %v347
      %v362 = vpack.c.b16 %v350, %v349
      %v363 = vpack.c.b16 %v352, %v351
      %v364 = vpack.c.b16 %v354, %v353
      %v365 = vpack.c.b16 %v356, %v355
      %v366 = vpack.c.b16 %v358, %v357
      %v391 = vunpack.c.l.b16 %v311
      %v392 = vunpack.c.l.b16 %v312
      %v393 = vunpack.c.l.b16 %v313
      %v394 = vunpack.c.l.b16 %v314
      %v395 = vunpack.c.l.b16 %v315
      %v396 = vunpack.c.l.b16 %v316
      %v397 = vunpack.c.l.b16 %v317
      %v398 = vunpack.c.l.b16 %v318
      %v399 = vunpack.c.l.b16 %v319
      %v400 = vunpack.c.l.b16 %v320
      %v401 = vunpack.c.l.b16 %v321
      %v402 = vunpack.c.l.b16 %v322
      %v403 = vunpack.c.l.b16 %v323
      %v404 = vunpack.c.l.b16 %v324
      %v405 = vunpack.c.l.b16 %v325
      %v406 = vunpack.c.l.b16 %v326
      %v407 = vpack.c.b16 %v392, %v391
      %v408 = vpack.c.b16 %v394, %v393
      %v409 = vpack.c.b16 %v396, %v395
      %v410 = vpack.c.b16 %v398, %v397
      %v411 = vpack.c.b16 %v400, %v399
      %v412 = vpack.c.b16 %v402, %v401
      %v413 = vpack.c.b16 %v404, %v403
      %v414 = vpack.c.b16 %v406, %v405
      %423 = vmatpush.bf16.msra.mxu0 %v414
      %424 = vmatpush.bf16.msra.mxu0 %v413
      %425 = vmatpush.bf16.msra.mxu0 %v412
      %426 = vmatpush.bf16.msra.mxu0 %v411
      %427 = vmatpush.bf16.msra.mxu0 %v410
      %428 = vmatpush.bf16.msra.mxu0 %v409
      %429 = vmatpush.bf16.msra.mxu0 %v408
      %430 = vmatpush.bf16.msra.mxu0 %v407
      %431 = vmatmul.bf16.gmra.mxu0 %v359
      %v432 = vpop.f32.mrf.mxu0
      %v433 = vadd.f32 0.0, %v432
      %v434 = vpop.f32.mrf.mxu0
      %v435 = vadd.f32 0.0, %v434
      %436 = vmatmul.bf16.gmra.mxu0 %v360
      %v437 = vpop.f32.mrf.mxu0
      %v438 = vadd.f32 0.0, %v437
      %v439 = vpop.f32.mrf.mxu0
      %v440 = vadd.f32 0.0, %v439
      %441 = vmatmul.bf16.gmra.mxu0 %v361
      %v442 = vpop.f32.mrf.mxu0
      %v443 = vadd.f32 0.0, %v442
      %v444 = vpop.f32.mrf.mxu0
      %v445 = vadd.f32 0.0, %v444
      %446 = vmatmul.bf16.gmra.mxu0 %v362
      %v447 = vpop.f32.mrf.mxu0
      %v448 = vadd.f32 0.0, %v447
      %v449 = vpop.f32.mrf.mxu0
      %v450 = vadd.f32 0.0, %v449
      %451 = vmatmul.bf16.gmra.mxu0 %v363
      %v452 = vpop.f32.mrf.mxu0
      %v453 = vadd.f32 0.0, %v452
      %v454 = vpop.f32.mrf.mxu0
      %v455 = vadd.f32 0.0, %v454
      %456 = vmatmul.bf16.gmra.mxu0 %v364
      %v457 = vpop.f32.mrf.mxu0
      %v458 = vadd.f32 0.0, %v457
      %v459 = vpop.f32.mrf.mxu0
      %v460 = vadd.f32 0.0, %v459
      %461 = vmatmul.bf16.gmra.mxu0 %v365
      %v462 = vpop.f32.mrf.mxu0
      %v463 = vadd.f32 0.0, %v462
      %v464 = vpop.f32.mrf.mxu0
      %v465 = vadd.f32 0.0, %v464
      %466 = vmatmul.bf16.gmra.mxu0 %v366
      %v467 = vpop.f32.mrf.mxu0
      %v468 = vadd.f32 0.0, %v467
      %v469 = vpop.f32.mrf.mxu0
      %v470 = vadd.f32 0.0, %v469
      %471 = vdwg.mxu0
      %v472 = vadd.f32 %v295, %v433
      %v473 = vadd.f32 %v296, %v435
      %v474 = vadd.f32 %v297, %v438
      %v475 = vadd.f32 %v298, %v440
      %v476 = vadd.f32 %v299, %v443
      %v477 = vadd.f32 %v300, %v445
      %v478 = vadd.f32 %v301, %v448
      %v479 = vadd.f32 %v302, %v450
      %v480 = vadd.f32 %v303, %v453
      %v481 = vadd.f32 %v304, %v455
      %v482 = vadd.f32 %v305, %v458
      %v483 = vadd.f32 %v306, %v460
      %v484 = vadd.f32 %v307, %v463
      %v485 = vadd.f32 %v308, %v465
      %v486 = vadd.f32 %v309, %v468
      %v487 = vadd.f32 %v310, %v470
      %488 = vst [vmem:[#allocation2] sm:$0xff] %v472
      %489 = vst [vmem:[#allocation2 + $0x8] sm:$0xff] %v473
      %490 = vst [vmem:[#allocation2 + $0x10] sm:$0xff] %v474
      %491 = vst [vmem:[#allocation2 + $0x18] sm:$0xff] %v475
      %492 = vst [vmem:[#allocation2 + $0x20] sm:$0xff] %v476
      %493 = vst [vmem:[#allocation2 + $0x28] sm:$0xff] %v477
      %494 = vst [vmem:[#allocation2 + $0x30] sm:$0xff] %v478
      %495 = vst [vmem:[#allocation2 + $0x38] sm:$0xff] %v479
      %496 = vst [vmem:[#allocation2 + $0x40] sm:$0xff] %v480
      %497 = vst [vmem:[#allocation2 + $0x48] sm:$0xff] %v481
      %498 = vst [vmem:[#allocation2 + $0x50] sm:$0xff] %v482
      %499 = vst [vmem:[#allocation2 + $0x58] sm:$0xff] %v483
      %500 = vst [vmem:[#allocation2 + $0x60] sm:$0xff] %v484
      %501 = vst [vmem:[#allocation2 + $0x68] sm:$0xff] %v485
      %502 = vst [vmem:[#allocation2 + $0x70] sm:$0xff] %v486
      %503 = vst [vmem:[#allocation2 + $0x78] sm:$0xff] %v487
      // Predicated region
      $region37: #{graphmae_forward.11} parent=31 // pred_check
        %p504 = pneg %p259
      $region38: #{graphmae_forward.11} parent=31 // pred_check_branch
        %506 = sbr.rel (%p504) target = $region40
      $region39: #{graphmae_forward.11} parent=31 // pred_region
        %v507 = vld [vmem:[#allocation2] sm:$0xff]
        %v508 = vld [vmem:[#allocation2 + $0x8] sm:$0xff]
        %v509 = vld [vmem:[#allocation2 + $0x10] sm:$0xff]
        %v510 = vld [vmem:[#allocation2 + $0x18] sm:$0xff]
        %v511 = vld [vmem:[#allocation2 + $0x20] sm:$0xff]
        %v512 = vld [vmem:[#allocation2 + $0x28] sm:$0xff]
        %v513 = vld [vmem:[#allocation2 + $0x30] sm:$0xff]
        %v514 = vld [vmem:[#allocation2 + $0x38] sm:$0xff]
        %v515 = vld [vmem:[#allocation2 + $0x40] sm:$0xff]
        %v516 = vld [vmem:[#allocation2 + $0x48] sm:$0xff]
        %v517 = vld [vmem:[#allocation2 + $0x50] sm:$0xff]
        %v518 = vld [vmem:[#allocation2 + $0x58] sm:$0xff]
        %v519 = vld [vmem:[#allocation2 + $0x60] sm:$0xff]
        %v520 = vld [vmem:[#allocation2 + $0x68] sm:$0xff]
        %v521 = vld [vmem:[#allocation2 + $0x70] sm:$0xff]
        %v522 = vld [vmem:[#allocation2 + $0x78] sm:$0xff]
        %v523 = vld [vmem:[%s249] sm:$0x1]
        %v525 = vperm.slane %v523, 0
        %v527 = vadd.f32 %v507, %v525
        %v528 = vadd.f32 %v508, %v525
        %v529 = vadd.f32 %v509, %v525
        %v530 = vadd.f32 %v510, %v525
        %v531 = vadd.f32 %v511, %v525
        %v532 = vadd.f32 %v512, %v525
        %v533 = vadd.f32 %v513, %v525
        %v534 = vadd.f32 %v514, %v525
        %v535 = vadd.f32 %v515, %v525
        %v536 = vadd.f32 %v516, %v525
        %v537 = vadd.f32 %v517, %v525
        %v538 = vadd.f32 %v518, %v525
        %v539 = vadd.f32 %v519, %v525
        %v540 = vadd.f32 %v520, %v525
        %v541 = vadd.f32 %v521, %v525
        %v542 = vadd.f32 %v522, %v525
        %543 = vst [vmem:[%s257] sm:$0xff] %v527
        %544 = vst [vmem:[%s257 + $0x8] sm:$0xff] %v528
        %545 = vst [vmem:[%s257 + $0x10] sm:$0xff] %v529
        %546 = vst [vmem:[%s257 + $0x18] sm:$0xff] %v530
        %547 = vst [vmem:[%s257 + $0x20] sm:$0xff] %v531
        %548 = vst [vmem:[%s257 + $0x28] sm:$0xff] %v532
        %549 = vst [vmem:[%s257 + $0x30] sm:$0xff] %v533
        %550 = vst [vmem:[%s257 + $0x38] sm:$0xff] %v534
        %551 = vst [vmem:[%s257 + $0x40] sm:$0xff] %v535
        %552 = vst [vmem:[%s257 + $0x48] sm:$0xff] %v536
        %553 = vst [vmem:[%s257 + $0x50] sm:$0xff] %v537
        %554 = vst [vmem:[%s257 + $0x58] sm:$0xff] %v538
        %555 = vst [vmem:[%s257 + $0x60] sm:$0xff] %v539
        %556 = vst [vmem:[%s257 + $0x68] sm:$0xff] %v540
        %557 = vst [vmem:[%s257 + $0x70] sm:$0xff] %v541
        %558 = vst [vmem:[%s257 + $0x78] sm:$0xff] %v542
      $region40: #{graphmae_forward.11} parent=31 // pred_fallthru
        _
      %s559 = smul.u32 16, %s19
      %p560 = scmp.lt.s32.totalorder %s559, 47
      %s561 = scalar_select %p560, %s559, 47
      %p562 = scmp.lt.s32.totalorder %s20, 0
      %s563 = scalar_select %p562, %s20, 0
      %s564 = sadd.s32 %s563, %s561
      %s565 = smul.addr %s564, 8
      %s566 = scalar_lea.vmem %s3, %s565
      // Predicated region
      $region41: #{graphmae_forward.11} parent=31 // pred_check
        %p567 = pneg %p135
      $region42: #{graphmae_forward.11} parent=31 // pred_check_branch
        %569 = sbr.rel (%p567) target = $region44
      $region43: #{graphmae_forward.11} parent=31 // pred_region
        %s570 = smul.u32 16, %s19
      $region44: #{graphmae_forward.11} parent=31 // pred_fallthru
        _
    $region32: #{graphmae_forward.11} parent=5 // pred_fallthru
      _
    %p571 = scmp.le.s32.totalorder 2, %s9
    // Predicated region
    $region45: #{graphmae_forward.11} parent=5 // pred_check
      %p572 = pneg %p571
    $region46: #{graphmae_forward.11} parent=5 // pred_check_branch
      %574 = sbr.rel (%p572) target = $region48
    $region47: #{graphmae_forward.11} parent=5 // pred_region
      %s575 = ssub.s32 %s9, 2
      // Predicated region
      $region49: #{graphmae_forward.11} parent=47 // pred_check
        %p576 = pneg %p141
      $region50: #{graphmae_forward.11} parent=47 // pred_check_branch
        %578 = sbr.rel (%p576) target = $region52
      $region51: #{graphmae_forward.11} parent=47 // pred_region
        %s579 = smul.u32 16, %s22
        %p580 = scmp.lt.s32.totalorder %s579, 47
        %s581 = scalar_select %p580, %s579, 47
        %p582 = scmp.lt.s32.totalorder %s23, 0
        %s583 = scalar_select %p582, %s23, 0
        %s584 = sadd.s32 %s583, %s581
        %s585 = smul.addr %s584, 8
        %s586 = scalar_lea.vmem %s3, %s585
      $region52: #{graphmae_forward.11} parent=47 // pred_fallthru
        _
    $region48: #{graphmae_forward.11} parent=5 // pred_fallthru
      _
  $region6: #{graphmae_forward.11} parent=0 // loop_footer
    %s13 = sadd.s32 1, %s9
  $region7: #{graphmae_forward.11} parent=0 // loop_footer_branch
    %8 = sbr.rel target = $region3
  $region8: #{graphmae_forward.11} parent=0 // loop_exit
    _

</llo_original>
